<compile_context>
chip_gen: v6e
topology: v6e:2x2x1
jax: 0.10.0
libtpu: 0.0.40
codegen_flags: <defaults>
</compile_context>

<pallas_src>
import functools
import math

import jax
import jax.numpy as jnp
from jax.experimental import pallas as pl
from jax.experimental.pallas import tpu as pltpu

MIN_RATING = 1
MAX_RATING = 5
N_RATINGS = MAX_RATING - MIN_RATING + 1
NEG_INF = -1e30


# --------------------------------- helpers --------------------------------- #
def _round_up(x, m):
    return -(-x // m) * m


def _pick_tile(total, target, quantum):
    """Largest multiple of `quantum` dividing `total`, at most max(target, quantum)."""
    t = max(quantum, min(total, target))
    t = (t // quantum) * quantum
    while total % t:
        t -= quantum
    return t


def _nbytes(shape, dtype):
    return math.prod(shape) * jnp.dtype(dtype).itemsize


def _vmem_limit(block_bytes, scratch_bytes=0):
    # double-buffered blocks + scratch + slack; clamped to a range safe on v5e/v6e/v7x.
    total = 2 * block_bytes + scratch_bytes + (1 << 20)
    return int(min(max(total, 4 << 20), 32 << 20))


# ------------------- Call A: encoder + GRU recurrence kernel ---------------- #
def encdec_kernel(n_layers_mlp,
                  emb_ref, w0_ref, b0_ref, wh_ref, bh_ref, wout_ref, bout_ref,
                  wenc_e_ref, wenc_r_ref, benc_ref,
                  x_ref, wih3_ref, bih3_ref, whh3_ref, bhh3_ref,
                  rating_ref, hall_ref, xg_ref):
    emb = emb_ref[...]                                   # (Bp, 2D), MXU dtype
    Bp = emb.shape[0]
    Hp = benc_ref.shape[-1]

    # ---- NRTEncoder rating MLP: Linear+Sigmoid, n x (Linear+Sigmoid), Linear(H,1)
    h = jax.nn.sigmoid(
        jnp.dot(emb, w0_ref[...], preferred_element_type=jnp.float32) + b0_ref[...])
    for l in range(n_layers_mlp):
        wl = wh_ref[l]
        h = jax.nn.sigmoid(
            jnp.dot(h.astype(wl.dtype), wl, preferred_element_type=jnp.float32)
            + bh_ref[l])
    # final Linear(H, 1) as broadcast-mul + lane reduction (avoids an N=1 matmul)
    rating = jnp.sum(h * wout_ref[...], axis=-1, keepdims=True) + bout_ref[...]
    rating_ref[...] = rating

    # clamp -> truncating int cast (values positive, so trunc == floor) -> one-hot
    r_idx = (jnp.clip(rating, float(MIN_RATING), float(MAX_RATING))
             .astype(jnp.int32) - MIN_RATING)            # (Bp, 1)

    # encoder_state = tanh([U, I, one_hot] @ W_enc + b_enc); one-hot part done as
    # a select-and-add over N_RATINGS rows (VPU selects, no K=5 matmul).
    enc = (jnp.dot(emb, wenc_e_ref[...], preferred_element_type=jnp.float32)
           + benc_ref[...])
    enc_r = jnp.zeros((Bp, Hp), jnp.float32)
    for k in range(N_RATINGS):
        enc_r = enc_r + (r_idx == k).astype(jnp.float32) * wenc_r_ref[k]
    h0 = jnp.tanh(enc + enc_r)                           # (Bp, Hp); padded lanes = 0

    # ---- GRU: hoisted input-to-hidden projection (all timesteps / gates at once)
    xg_ref[...] = (jnp.dot(x_ref[...], wih3_ref[...],
                           preferred_element_type=jnp.float32) + bih3_ref[...])

    whh3 = whh3_ref[...]                                 # (Hp, 3Hp), MXU dtype
    bhh3 = bhh3_ref[...]                                 # (1, 3Hp), f32
    T = x_ref.shape[0] // Bp

    def step(t, hprev):                                  # hprev: (Bp, Hp) f32
        row = pl.multiple_of(t * Bp, Bp)
        gx = xg_ref[pl.ds(row, Bp), :]                   # (Bp, 3Hp) f32
        gh = jnp.dot(hprev.astype(whh3.dtype), whh3,
                     preferred_element_type=jnp.float32) + bhh3
        # PyTorch GRU gate order r, z, n; gate blocks are 128-lane aligned views.
        r = jax.nn.sigmoid(gx[:, 0:Hp] + gh[:, 0:Hp])
        z = jax.nn.sigmoid(gx[:, Hp:2 * Hp] + gh[:, Hp:2 * Hp])
        n = jnp.tanh(gx[:, 2 * Hp:3 * Hp] + r * gh[:, 2 * Hp:3 * Hp])
        h_new = (1.0 - z) * n + z * hprev
        hall_ref[pl.ds(row, Bp), :] = h_new.astype(hall_ref.dtype)
        return h_new

    # Loop body is now just the tiny gate update -> full unroll is cheap and fast.
    jax.lax.fori_loop(0, T, step, h0, unroll=True)


def encdec_forward(emb, x2d, p, n_layers_mlp):
    Bp = emb.shape[0]
    TB = x2d.shape[0]
    Hp = p["benc"].shape[-1]
    mxu_dtype = p["wih3"].dtype

    args = (emb, p["w0"], p["b0"], p["wh"], p["bh"], p["wout"], p["bout"],
            p["wenc_e"], p["wenc_r"], p["benc"],
            x2d, p["wih3"], p["bih3"], p["whh3"], p["bhh3"])
    in_specs = [pl.BlockSpec(a.shape, lambda i, nd=a.ndim: (0,) * nd) for a in args]
    out_shapes = (jax.ShapeDtypeStruct((Bp, 1), jnp.float32),
                  jax.ShapeDtypeStruct((TB, Hp), mxu_dtype))
    out_specs = (pl.BlockSpec((Bp, 1), lambda i: (0, 0)),
                 pl.BlockSpec((TB, Hp), lambda i: (0, 0)))

    scratch_bytes = _nbytes((TB, 3 * Hp), jnp.float32)
    block_bytes = (sum(_nbytes(a.shape, a.dtype) for a in args)
                   + sum(_nbytes(o.shape, o.dtype) for o in out_shapes))

    # TODO(synk): for production batch sizes add a leading "parallel" batch-block
    # grid axis (v7x dual TensorCore); at Bp=8 (one sublane tile) it cannot split.
    return pl.pallas_call(
        functools.partial(encdec_kernel, n_layers_mlp),
        out_shape=out_shapes,
        grid=(1,),
        in_specs=in_specs,
        out_specs=out_specs,
        scratch_shapes=[pltpu.VMEM((TB, 3 * Hp), jnp.float32)],
        compiler_params=pltpu.CompilerParams(
            dimension_semantics=("arbitrary",),
            vmem_limit_bytes=_vmem_limit(block_bytes, scratch_bytes)),
    )(*args)


# --------------- Call B1: tiled vocab projection -> logsumexp --------------- #
def lse_kernel(h_ref, w_ref, b_ref, lse_ref, m_sc, l_sc):
    j = pl.program_id(1)

    @pl.when(j == 0)
    def _():
        m_sc[...] = jnp.full_like(m_sc, -jnp.inf)
        l_sc[...] = jnp.zeros_like(l_sc)

    logits = (jnp.dot(h_ref[...], w_ref[...], preferred_element_type=jnp.float32)
              + b_ref[...])                              # (TM, TV) f32
    m_prev = m_sc[...]
    m_new = jnp.maximum(m_prev, jnp.max(logits, axis=-1, keepdims=True))
    l_sc[...] = (l_sc[...] * jnp.exp(m_prev - m_new)
                 + jnp.sum(jnp.exp(logits - m_new), axis=-1, keepdims=True))
    m_sc[...] = m_new

    @pl.when(j == pl.num_programs(1) - 1)
    def _():
        lse_ref[...] = m_sc[...] + jnp.log(l_sc[...])


def lse_forward(h_all, wlin_p, blin_p, row_tile=256, v_tile=512):
    TB, Hp = h_all.shape
    Vp = blin_p.shape[-1]
    TM = _pick_tile(TB, row_tile, 8)
    TV = _pick_tile(Vp, v_tile, 128)
    grid = (TB // TM, Vp // TV)

    block_bytes = (_nbytes((TM, Hp), h_all.dtype) + _nbytes((Hp, TV), wlin_p.dtype)
                   + _nbytes((1, TV), blin_p.dtype) + _nbytes((TM, 1), jnp.float32))
    return pl.pallas_call(
        lse_kernel,
        out_shape=jax.ShapeDtypeStruct((TB, 1), jnp.float32),
        grid=grid,
        in_specs=[pl.BlockSpec((TM, Hp), lambda i, j: (i, 0)),
                  pl.BlockSpec((Hp, TV), lambda i, j: (0, j)),
                  pl.BlockSpec((1, TV), lambda i, j: (0, j))],
        out_specs=pl.BlockSpec((TM, 1), lambda i, j: (i, 0)),
        scratch_shapes=[pltpu.VMEM((TM, 1), jnp.float32),
                        pltpu.VMEM((TM, 1), jnp.float32)],
        compiler_params=pltpu.CompilerParams(
            dimension_semantics=("parallel", "arbitrary"),
            vmem_limit_bytes=_vmem_limit(block_bytes, 2 * TM * 4)),
    )(h_all, wlin_p, blin_p)


# ---------- Call B2: tiled vocab projection -> normalized log-probs --------- #
def logprob_kernel(h_ref, w_ref, b_ref, lse_ref, out_ref):
    logits = (jnp.dot(h_ref[...], w_ref[...], preferred_element_type=jnp.float32)
              + b_ref[...])
    out_ref[...] = logits - lse_ref[...]                 # lane-dense (TM, TV) store


def logprob_forward(h_all, wlin_p, blin_p, lse, row_tile=256, v_tile=512):
    TB, Hp = h_all.shape
    Vp = blin_p.shape[-1]
    TM = _pick_tile(TB, row_tile, 8)
    TV = _pick_tile(Vp, v_tile, 128)
    grid = (TB // TM, Vp // TV)

    block_bytes = (_nbytes((TM, Hp), h_all.dtype) + _nbytes((Hp, TV), wlin_p.dtype)
                   + _nbytes((1, TV), blin_p.dtype) + _nbytes((TM, 1), jnp.float32)
                   + _nbytes((TM, TV), jnp.float32))
    return pl.pallas_call(
        logprob_kernel,
        out_shape=jax.ShapeDtypeStruct((TB, Vp), jnp.float32),
        grid=grid,
        in_specs=[pl.BlockSpec((TM, Hp), lambda i, j: (i, 0)),
                  pl.BlockSpec((Hp, TV), lambda i, j: (0, j)),
                  pl.BlockSpec((1, TV), lambda i, j: (0, j)),
                  pl.BlockSpec((TM, 1), lambda i, j: (i, 0))],
        out_specs=pl.BlockSpec((TM, TV), lambda i, j: (i, j)),
        compiler_params=pltpu.CompilerParams(
            dimension_semantics=("parallel", "parallel"),
            vmem_limit_bytes=_vmem_limit(block_bytes)),
    )(h_all, wlin_p, blin_p, lse)


# ------------------------- weight prep / padding ---------------------------- #
def _prep_params(params, Hp, Vp, mxu_dtype):
    """Pad/stack weights: lane-aligned GRU gates (stride Hp), padded vocab Linear,
    encoder-state weights padded to Hp.  Only matmul weight matrices get mxu_dtype;
    biases and elementwise weights stay f32."""
    e, d = params["enc"], params["dec"]
    H = e["b0"].shape[-1]
    D = d["wih"].shape[1]
    V = d["blin"].shape[-1]

    def pad_cols(a, n):
        return jnp.pad(a, ((0, 0), (0, n - a.shape[-1])))

    wih3 = jnp.zeros((D, 3 * Hp), jnp.float32)
    whh3 = jnp.zeros((Hp, 3 * Hp), jnp.float32)
    bih3 = jnp.zeros((1, 3 * Hp), jnp.float32)
    bhh3 = jnp.zeros((1, 3 * Hp), jnp.float32)
    for g in range(3):                                   # gate order r, z, n
        wih3 = wih3.at[:, g * Hp:g * Hp + H].set(d["wih"][g])
        whh3 = whh3.at[:H, g * Hp:g * Hp + H].set(d["whh"][g])
        bih3 = bih3.at[:, g * Hp:g * Hp + H].set(d["bih"][g])
        bhh3 = bhh3.at[:, g * Hp:g * Hp + H].set(d["bhh"][g])

    wlin_p = jnp.zeros((Hp, Vp), jnp.float32).at[:H, :V].set(d["wlin"])
    blin_p = jnp.concatenate(
        [d["blin"], jnp.full((1, Vp - V), NEG_INF, jnp.float32)], axis=1)

    return {
        "w0": e["w0"].astype(mxu_dtype), "b0": e["b0"],
        "wh": e["wh"].astype(mxu_dtype), "bh": e["bh"],
        "wout": e["wout"], "bout": e["bout"],
        "wenc_e": pad_cols(e["wenc_e"], Hp).astype(mxu_dtype),
        "wenc_r": pad_cols(e["wenc_r"], Hp),
        "benc": pad_cols(e["benc"], Hp),
        "wih3": wih3.astype(mxu_dtype), "bih3": bih3,
        "whh3": whh3.astype(mxu_dtype), "bhh3": bhh3,
        "wlin_p": wlin_p.astype(mxu_dtype), "blin_p": blin_p,
    }


# ------------------------------- NRT forward -------------------------------- #
def nrt_forward(params, user, item, seq, n_layers_mlp, mxu_dtype=jnp.float32):
    B = user.shape[0]
    T = seq.shape[1]
    D = params["user_emb"].shape[1]
    H = params["enc"]["b0"].shape[-1]
    V = params["dec"]["blin"].shape[-1]
    Bp = _round_up(max(B, 8), 8)       # sublane multiple
    Hp = _round_up(H, 128)             # lane-aligned gate stride / hidden pad
    Vp = _round_up(V, 128)             # lane multiple

    # Embedding gathers are plain-JAX glue.
    # TODO(synk): at production word_emb sizes, fuse this gather into Call A via
    # PrefetchScalarGridSpec scalar prefetch + per-row async copies.
    u_emb = jnp.take(params["user_emb"], user, axis=0)             # (B, D)
    i_emb = jnp.take(params["item_emb"], item, axis=0)             # (B, D)
    emb = jnp.pad(jnp.concatenate([u_emb, i_emb], axis=1), ((0, Bp - B), (0, 0)))

    # Word embeddings gathered already time-major (no (B,T,D)->(T,B,D) transpose).
    seq_emb_tm = jnp.take(params["word_emb"], seq.T, axis=0)       # (T, B, D)
    seq_emb_tm = jnp.pad(seq_emb_tm, ((0, 0), (0, Bp - B), (0, 0)))
    x2d = seq_emb_tm.reshape(T * Bp, D)                            # (T*Bp, D)

    p = _prep_params(params, Hp, Vp, mxu_dtype)

    rating_p, h_all = encdec_forward(emb.astype(mxu_dtype),
                                     x2d.astype(mxu_dtype), p, n_layers_mlp)
    lse = lse_forward(h_all, p["wlin_p"], p["blin_p"])
    out2d = logprob_forward(h_all, p["wlin_p"], p["blin_p"], lse)

    rating = rating_p[:B, 0]
    # Batch-first output required by the module contract; at scale fold this
    # (T,B,V)->(B,T,V) transpose into the consumer instead of materializing it.
    log_word_prob = out2d.reshape(T, Bp, Vp)[:, :B, :V].transpose(1, 0, 2)
    return rating, log_word_prob


# ------------------------ deterministic parameter init ---------------------- #
def init_params(key, n_users, n_items, n_tokens, d_model, hidden, n_layers_mlp):
    keys = jax.random.split(key, 16)

    def u(k, shape, s=0.1):
        return jax.random.uniform(k, shape, jnp.float32, -s, s)

    gru_s = 1.0 / hidden ** 0.5
    return {
        "user_emb": u(keys[0], (n_users, d_model)),
        "item_emb": u(keys[1], (n_items, d_model)),
        "word_emb": u(keys[2], (n_tokens, d_model)),
        "enc": {
            "w0": u(keys[3], (2 * d_model, hidden)),
            "b0": jnp.zeros((1, hidden), jnp.float32),
            "wh": u(keys[4], (n_layers_mlp, hidden, hidden)),
            "bh": jnp.zeros((n_layers_mlp, 1, hidden), jnp.float32),
            "wout": u(keys[5], (1, hidden)),
            "bout": jnp.zeros((1, 1), jnp.float32),
            "wenc_e": u(keys[6], (2 * d_model, hidden)),
            "wenc_r": u(keys[7], (N_RATINGS, hidden)),
            "benc": jnp.zeros((1, hidden), jnp.float32),
        },
        "dec": {
            "wih": u(keys[8], (3, d_model, hidden), gru_s),
            "whh": u(keys[9], (3, hidden, hidden), gru_s),
            "bih": u(keys[10], (3, 1, hidden), gru_s),
            "bhh": u(keys[11], (3, 1, hidden), gru_s),
            "wlin": u(keys[12], (hidden, n_tokens)),
            "blin": jnp.zeros((1, n_tokens), jnp.float32),
        },
    }


# ------------------------------ pure-JAX reference --------------------------- #
def nrt_reference(params, user, item, seq, n_layers_mlp):
    p, e, d = params, params["enc"], params["dec"]
    u_emb = p["user_emb"][user]
    i_emb = p["item_emb"][item]
    emb = jnp.concatenate([u_emb, i_emb], axis=1)
    h = jax.nn.sigmoid(emb @ e["w0"] + e["b0"])
    for l in range(n_layers_mlp):
        h = jax.nn.sigmoid(h @ e["wh"][l] + e["bh"][l])
    rating = jnp.sum(h * e["wout"], axis=-1, keepdims=True) + e["bout"]
    r_idx = jnp.clip(rating, float(MIN_RATING), float(MAX_RATING)).astype(jnp.int32) - MIN_RATING
    one_hot = jax.nn.one_hot(r_idx[:, 0], N_RATINGS, dtype=jnp.float32)
    state = jnp.tanh(emb @ e["wenc_e"] + one_hot @ e["wenc_r"] + e["benc"])
    rating = rating[:, 0]

    seq_emb = p["word_emb"][seq]
    h_t = state
    outs = []
    for t in range(seq.shape[1]):
        x = seq_emb[:, t, :]
        r = jax.nn.sigmoid(x @ d["wih"][0] + d["bih"][0] + h_t @ d["whh"][0] + d["bhh"][0])
        z = jax.nn.sigmoid(x @ d["wih"][1] + d["bih"][1] + h_t @ d["whh"][1] + d["bhh"][1])
        n = jnp.tanh(x @ d["wih"][2] + d["bih"][2] + r * (h_t @ d["whh"][2] + d["bhh"][2]))
        h_t = (1.0 - z) * n + z * h_t
        logits = h_t @ d["wlin"] + d["blin"]
        outs.append(jax.nn.log_softmax(logits, axis=-1))
    return rating, jnp.stack(outs, axis=1)


if __name__ == "__main__":
    n_users, n_items, n_tokens = 10, 12, 50
    d_model, hidden = 32, 32
    n_layers_mlp = 4
    B, T = 2, 8

    key = jax.random.PRNGKey(0)
    pkey, ukey, ikey, skey = jax.random.split(key, 4)
    params = init_params(pkey, n_users, n_items, n_tokens, d_model, hidden, n_layers_mlp)
    user = jax.random.randint(ukey, (B,), 0, n_users)
    item = jax.random.randint(ikey, (B,), 0, n_items)
    seq = jax.random.randint(skey, (B, T), 0, n_tokens)

    r_ref, lp_ref = nrt_reference(params, user, item, seq, n_layers_mlp)

    # f32 MXU path: tight check against the f32 reference.
    fwd = jax.jit(functools.partial(nrt_forward, n_layers_mlp=n_layers_mlp))
    rating, log_word_prob = fwd(params, user, item, seq)
    jax.block_until_ready((rating, log_word_prob))
    assert rating.shape == (B,) and log_word_prob.shape == (B, T, n_tokens)
    assert jnp.allclose(rating, r_ref, atol=2e-3, rtol=1e-3), "rating mismatch (f32)"
    assert jnp.allclose(log_word_prob, lp_ref, atol=2e-3, rtol=1e-3), "log_softmax mismatch (f32)"

    # bf16 MXU path (production setting on v6e/v7x): loose check.
    fwd_bf16 = jax.jit(functools.partial(nrt_forward, n_layers_mlp=n_layers_mlp,
                                         mxu_dtype=jnp.bfloat16))
    r_bf, lp_bf = fwd_bf16(params, user, item, seq)
    jax.block_until_ready((r_bf, lp_bf))
    assert jnp.allclose(r_bf, r_ref, atol=5e-2, rtol=5e-2), "rating mismatch (bf16)"
    assert jnp.allclose(lp_bf, lp_ref, atol=5e-2, rtol=5e-2), "log_softmax mismatch (bf16)"

    print("KERNEL_OK")
</pallas_src>

<mosaic_0001>
module attributes {stable_mosaic.version = 11 : i64} {
  func.func @logprob_kernel(%arg0: i32, %arg1: i32, %arg2: memref<64x128xf32, #tpu.memory_space<vmem>>, %arg3: memref<128x128xf32, #tpu.memory_space<vmem>>, %arg4: memref<1x128xf32, #tpu.memory_space<vmem>>, %arg5: memref<64x1xf32, #tpu.memory_space<vmem>>, %arg6: memref<64x128xf32, #tpu.memory_space<vmem>>) attributes {dimension_semantics = [#tpu.dimension_semantics<parallel>, #tpu.dimension_semantics<parallel>], iteration_bounds = array<i64: 1, 1>, scalar_prefetch = 0 : i64, scratch_operands = 0 : i64, tpu.core_type = #tpu.core_type<tc>, window_params = [{transform_indices = @transform_0, window_bounds = array<i64: 64, 128>}, {transform_indices = @transform_1, window_bounds = array<i64: 128, 128>}, {transform_indices = @transform_2, window_bounds = array<i64: 1, 128>}, {transform_indices = @transform_3, window_bounds = array<i64: 64, 1>}, {transform_indices = @transform_4, window_bounds = array<i64: 64, 128>}]} {
    %c0 = arith.constant 0 : index
    %c0_0 = arith.constant 0 : index
    %0 = vector.load %arg2[%c0, %c0_0] : memref<64x128xf32, #tpu.memory_space<vmem>>, vector<64x128xf32>
    %c0_1 = arith.constant 0 : index
    %c0_2 = arith.constant 0 : index
    %1 = vector.load %arg3[%c0_1, %c0_2] : memref<128x128xf32, #tpu.memory_space<vmem>>, vector<128x128xf32>
    %cst = arith.constant dense<0.000000e+00> : vector<64x128xf32>
    %2 = tpu.matmul %0, %1, %cst {dimension_numbers = #tpu.dot_dimension_numbers<[1], [0], [0], [1], [0, 0, 1, 1], [], []>} : vector<64x128xf32>, vector<128x128xf32>, vector<64x128xf32> -> vector<64x128xf32>
    %c0_3 = arith.constant 0 : index
    %c0_4 = arith.constant 0 : index
    %3 = vector.load %arg4[%c0_3, %c0_4] : memref<1x128xf32, #tpu.memory_space<vmem>>, vector<1x128xf32>
    %4 = vector.broadcast %3 : vector<1x128xf32> to vector<64x128xf32>
    %5 = arith.addf %2, %4 : vector<64x128xf32>
    %c0_5 = arith.constant 0 : index
    %c0_6 = arith.constant 0 : index
    %6 = vector.load %arg5[%c0_5, %c0_6] : memref<64x1xf32, #tpu.memory_space<vmem>>, vector<64x1xf32>
    %7 = vector.broadcast %6 : vector<64x1xf32> to vector<64x128xf32>
    %8 = arith.subf %5, %7 : vector<64x128xf32>
    %c0_7 = arith.constant 0 : index
    %c0_8 = arith.constant 0 : index
    %9 = vector.load %arg6[%c0_7, %c0_8] : memref<64x128xf32, #tpu.memory_space<vmem>>, vector<64x128xf32>
    tpu.vector_store %arg6[%c0_7, %c0_8], %8 {strides = array<i32>} : memref<64x128xf32, #tpu.memory_space<vmem>>, vector<64x128xf32>,
    return
  }
  func.func @transform_0(%arg0: i32, %arg1: i32) -> (i32, i32) {
    %c0_i32 = arith.constant 0 : i32
    %c0_i32_0 = arith.constant 0 : i32
    return %arg0, %c0_i32 : i32, i32
  }
  func.func @transform_1(%arg0: i32, %arg1: i32) -> (i32, i32) {
    %c0_i32 = arith.constant 0 : i32
    %c0_i32_0 = arith.constant 0 : i32
    return %c0_i32, %arg1 : i32, i32
  }
  func.func @transform_2(%arg0: i32, %arg1: i32) -> (i32, i32) {
    %c0_i32 = arith.constant 0 : i32
    %c0_i32_0 = arith.constant 0 : i32
    return %c0_i32, %arg1 : i32, i32
  }
  func.func @transform_3(%arg0: i32, %arg1: i32) -> (i32, i32) {
    %c0_i32 = arith.constant 0 : i32
    %c0_i32_0 = arith.constant 0 : i32
    return %arg0, %c0_i32 : i32, i32
  }
  func.func @transform_4(%arg0: i32, %arg1: i32) -> (i32, i32) {
    %c0_i32 = arith.constant 0 : i32
    return %arg0, %arg1 : i32, i32
  }
}

module attributes {stable_mosaic.version = 11 : i64} {
  func.func @encdec_kernel(%arg0: i32, %arg1: memref<8x64xf32, #tpu.memory_space<vmem>>, %arg2: memref<64x32xf32, #tpu.memory_space<vmem>>, %arg3: memref<1x32xf32, #tpu.memory_space<vmem>>, %arg4: memref<4x32x32xf32, #tpu.memory_space<vmem>>, %arg5: memref<4x1x32xf32, #tpu.memory_space<vmem>>, %arg6: memref<1x32xf32, #tpu.memory_space<vmem>>, %arg7: memref<1x1xf32, #tpu.memory_space<vmem>>, %arg8: memref<64x128xf32, #tpu.memory_space<vmem>>, %arg9: memref<5x128xf32, #tpu.memory_space<vmem>>, %arg10: memref<1x128xf32, #tpu.memory_space<vmem>>, %arg11: memref<64x32xf32, #tpu.memory_space<vmem>>, %arg12: memref<32x384xf32, #tpu.memory_space<vmem>>, %arg13: memref<1x384xf32, #tpu.memory_space<vmem>>, %arg14: memref<128x384xf32, #tpu.memory_space<vmem>>, %arg15: memref<1x384xf32, #tpu.memory_space<vmem>>, %arg16: memref<8x1xf32, #tpu.memory_space<vmem>>, %arg17: memref<64x128xf32, #tpu.memory_space<vmem>>, %arg18: memref<64x384xf32, #tpu.memory_space<vmem>>) attributes {dimension_semantics = [#tpu.dimension_semantics<arbitrary>], iteration_bounds = array<i64: 1>, scalar_prefetch = 0 : i64, scratch_operands = 1 : i64, tpu.core_type = #tpu.core_type<tc>, window_params = [{pipeline_mode = #tpu.pipeline_mode<synchronous>, transform_indices = @transform_0, window_bounds = array<i64: 8, 64>}, {pipeline_mode = #tpu.pipeline_mode<synchronous>, transform_indices = @transform_1, window_bounds = array<i64: 64, 32>}, {pipeline_mode = #tpu.pipeline_mode<synchronous>, transform_indices = @transform_2, window_bounds = array<i64: 1, 32>}, {pipeline_mode = #tpu.pipeline_mode<synchronous>, transform_indices = @transform_3, window_bounds = array<i64: 4, 32, 32>}, {pipeline_mode = #tpu.pipeline_mode<synchronous>, transform_indices = @transform_4, window_bounds = array<i64: 4, 1, 32>}, {pipeline_mode = #tpu.pipeline_mode<synchronous>, transform_indices = @transform_5, window_bounds = array<i64: 1, 32>}, {pipeline_mode = #tpu.pipeline_mode<synchronous>, transform_indices = @transform_6, window_bounds = array<i64: 1, 1>}, {pipeline_mode = #tpu.pipeline_mode<synchronous>, transform_indices = @transform_7, window_bounds = array<i64: 64, 128>}, {pipeline_mode = #tpu.pipeline_mode<synchronous>, transform_indices = @transform_8, window_bounds = array<i64: 5, 128>}, {pipeline_mode = #tpu.pipeline_mode<synchronous>, transform_indices = @transform_9, window_bounds = array<i64: 1, 128>}, {pipeline_mode = #tpu.pipeline_mode<synchronous>, transform_indices = @transform_10, window_bounds = array<i64: 64, 32>}, {pipeline_mode = #tpu.pipeline_mode<synchronous>, transform_indices = @transform_11, window_bounds = array<i64: 32, 384>}, {pipeline_mode = #tpu.pipeline_mode<synchronous>, transform_indices = @transform_12, window_bounds = array<i64: 1, 384>}, {pipeline_mode = #tpu.pipeline_mode<synchronous>, transform_indices = @transform_13, window_bounds = array<i64: 128, 384>}, {pipeline_mode = #tpu.pipeline_mode<synchronous>, transform_indices = @transform_14, window_bounds = array<i64: 1, 384>}, {pipeline_mode = #tpu.pipeline_mode<synchronous>, transform_indices = @transform_15, window_bounds = array<i64: 8, 1>}, {pipeline_mode = #tpu.pipeline_mode<synchronous>, transform_indices = @transform_16, window_bounds = array<i64: 64, 128>}]} {
    %c0 = arith.constant 0 : index
    %c0_0 = arith.constant 0 : index
    %0 = vector.load %arg1[%c0, %c0_0] : memref<8x64xf32, #tpu.memory_space<vmem>>, vector<8x64xf32>
    %c0_1 = arith.constant 0 : index
    %c0_2 = arith.constant 0 : index
    %1 = vector.load %arg2[%c0_1, %c0_2] : memref<64x32xf32, #tpu.memory_space<vmem>>, vector<64x32xf32>
    %cst = arith.constant dense<0.000000e+00> : vector<8x32xf32>
    %2 = tpu.matmul %0, %1, %cst {dimension_numbers = #tpu.dot_dimension_numbers<[1], [0], [0], [1], [0, 0, 1, 1], [], []>} : vector<8x64xf32>, vector<64x32xf32>, vector<8x32xf32> -> vector<8x32xf32>
    %c0_3 = arith.constant 0 : index
    %c0_4 = arith.constant 0 : index
    %3 = vector.load %arg3[%c0_3, %c0_4] : memref<1x32xf32, #tpu.memory_space<vmem>>, vector<1x32xf32>
    %4 = vector.broadcast %3 : vector<1x32xf32> to vector<8x32xf32>
    %5 = arith.addf %2, %4 : vector<8x32xf32>
    %6 = arith.negf %5 : vector<8x32xf32>
    %7 = math.exp %6 : vector<8x32xf32>
    %cst_5 = arith.constant 1.000000e+00 : f32
    %8 = vector.broadcast %cst_5 : f32 to vector<8x32xf32>
    %9 = arith.addf %8, %7 : vector<8x32xf32>
    %10 = arith.divf %8, %9 : vector<8x32xf32>
    %c0_6 = arith.constant 0 : index
    %c0_7 = arith.constant 0 : index
    %c0_8 = arith.constant 0 : index
    %11 = vector.load %arg4[%c0_6, %c0_7, %c0_8] : memref<4x32x32xf32, #tpu.memory_space<vmem>>, vector<1x32x32xf32>
    %12 = vector.shape_cast %11 : vector<1x32x32xf32> to vector<32x32xf32>
    %cst_9 = arith.constant dense<0.000000e+00> : vector<8x32xf32>
    %13 = tpu.matmul %10, %12, %cst_9 {dimension_numbers = #tpu.dot_dimension_numbers<[1], [0], [0], [1], [0, 0, 1, 1], [], []>} : vector<8x32xf32>, vector<32x32xf32>, vector<8x32xf32> -> vector<8x32xf32>
    %c0_10 = arith.constant 0 : index
    %c0_11 = arith.constant 0 : index
    %c0_12 = arith.constant 0 : index
    %14 = vector.load %arg5[%c0_10, %c0_11, %c0_12] : memref<4x1x32xf32, #tpu.memory_space<vmem>>, vector<1x1x32xf32>
    %15 = vector.shape_cast %14 : vector<1x1x32xf32> to vector<1x32xf32>
    %16 = vector.broadcast %15 : vector<1x32xf32> to vector<8x32xf32>
    %17 = arith.addf %13, %16 : vector<8x32xf32>
    %18 = arith.negf %17 : vector<8x32xf32>
    %19 = math.exp %18 : vector<8x32xf32>
    %cst_13 = arith.constant 1.000000e+00 : f32
    %20 = vector.broadcast %cst_13 : f32 to vector<8x32xf32>
    %21 = arith.addf %20, %19 : vector<8x32xf32>
    %22 = arith.divf %20, %21 : vector<8x32xf32>
    %c1 = arith.constant 1 : index
    %c0_14 = arith.constant 0 : index
    %c0_15 = arith.constant 0 : index
    %23 = vector.load %arg4[%c1, %c0_14, %c0_15] : memref<4x32x32xf32, #tpu.memory_space<vmem>>, vector<1x32x32xf32>
    %24 = vector.shape_cast %23 : vector<1x32x32xf32> to vector<32x32xf32>
    %cst_16 = arith.constant dense<0.000000e+00> : vector<8x32xf32>
    %25 = tpu.matmul %22, %24, %cst_16 {dimension_numbers = #tpu.dot_dimension_numbers<[1], [0], [0], [1], [0, 0, 1, 1], [], []>} : vector<8x32xf32>, vector<32x32xf32>, vector<8x32xf32> -> vector<8x32xf32>
    %c1_17 = arith.constant 1 : index
    %c0_18 = arith.constant 0 : index
    %c0_19 = arith.constant 0 : index
    %26 = vector.load %arg5[%c1_17, %c0_18, %c0_19] : memref<4x1x32xf32, #tpu.memory_space<vmem>>, vector<1x1x32xf32>
    %27 = vector.shape_cast %26 : vector<1x1x32xf32> to vector<1x32xf32>
    %28 = vector.broadcast %27 : vector<1x32xf32> to vector<8x32xf32>
    %29 = arith.addf %25, %28 : vector<8x32xf32>
    %30 = arith.negf %29 : vector<8x32xf32>
    %31 = math.exp %30 : vector<8x32xf32>
    %cst_20 = arith.constant 1.000000e+00 : f32
    %32 = vector.broadcast %cst_20 : f32 to vector<8x32xf32>
    %33 = arith.addf %32, %31 : vector<8x32xf32>
    %34 = arith.divf %32, %33 : vector<8x32xf32>
    %c2 = arith.constant 2 : index
    %c0_21 = arith.constant 0 : index
    %c0_22 = arith.constant 0 : index
    %35 = vector.load %arg4[%c2, %c0_21, %c0_22] : memref<4x32x32xf32, #tpu.memory_space<vmem>>, vector<1x32x32xf32>
    %36 = vector.shape_cast %35 : vector<1x32x32xf32> to vector<32x32xf32>
    %cst_23 = arith.constant dense<0.000000e+00> : vector<8x32xf32>
    %37 = tpu.matmul %34, %36, %cst_23 {dimension_numbers = #tpu.dot_dimension_numbers<[1], [0], [0], [1], [0, 0, 1, 1], [], []>} : vector<8x32xf32>, vector<32x32xf32>, vector<8x32xf32> -> vector<8x32xf32>
    %c2_24 = arith.constant 2 : index
    %c0_25 = arith.constant 0 : index
    %c0_26 = arith.constant 0 : index
    %38 = vector.load %arg5[%c2_24, %c0_25, %c0_26] : memref<4x1x32xf32, #tpu.memory_space<vmem>>, vector<1x1x32xf32>
    %39 = vector.shape_cast %38 : vector<1x1x32xf32> to vector<1x32xf32>
    %40 = vector.broadcast %39 : vector<1x32xf32> to vector<8x32xf32>
    %41 = arith.addf %37, %40 : vector<8x32xf32>
    %42 = arith.negf %41 : vector<8x32xf32>
    %43 = math.exp %42 : vector<8x32xf32>
    %cst_27 = arith.constant 1.000000e+00 : f32
    %44 = vector.broadcast %cst_27 : f32 to vector<8x32xf32>
    %45 = arith.addf %44, %43 : vector<8x32xf32>
    %46 = arith.divf %44, %45 : vector<8x32xf32>
    %c3 = arith.constant 3 : index
    %c0_28 = arith.constant 0 : index
    %c0_29 = arith.constant 0 : index
    %47 = vector.load %arg4[%c3, %c0_28, %c0_29] : memref<4x32x32xf32, #tpu.memory_space<vmem>>, vector<1x32x32xf32>
    %48 = vector.shape_cast %47 : vector<1x32x32xf32> to vector<32x32xf32>
    %cst_30 = arith.constant dense<0.000000e+00> : vector<8x32xf32>
    %49 = tpu.matmul %46, %48, %cst_30 {dimension_numbers = #tpu.dot_dimension_numbers<[1], [0], [0], [1], [0, 0, 1, 1], [], []>} : vector<8x32xf32>, vector<32x32xf32>, vector<8x32xf32> -> vector<8x32xf32>
    %c3_31 = arith.constant 3 : index
    %c0_32 = arith.constant 0 : index
    %c0_33 = arith.constant 0 : index
    %50 = vector.load %arg5[%c3_31, %c0_32, %c0_33] : memref<4x1x32xf32, #tpu.memory_space<vmem>>, vector<1x1x32xf32>
    %51 = vector.shape_cast %50 : vector<1x1x32xf32> to vector<1x32xf32>
    %52 = vector.broadcast %51 : vector<1x32xf32> to vector<8x32xf32>
    %53 = arith.addf %49, %52 : vector<8x32xf32>
    %54 = arith.negf %53 : vector<8x32xf32>
    %55 = math.exp %54 : vector<8x32xf32>
    %cst_34 = arith.constant 1.000000e+00 : f32
    %56 = vector.broadcast %cst_34 : f32 to vector<8x32xf32>
    %57 = arith.addf %56, %55 : vector<8x32xf32>
    %58 = arith.divf %56, %57 : vector<8x32xf32>
    %c0_35 = arith.constant 0 : index
    %c0_36 = arith.constant 0 : index
    %59 = vector.load %arg6[%c0_35, %c0_36] : memref<1x32xf32, #tpu.memory_space<vmem>>, vector<1x32xf32>
    %60 = vector.broadcast %59 : vector<1x32xf32> to vector<8x32xf32>
    %61 = arith.mulf %58, %60 : vector<8x32xf32>
    %cst_37 = arith.constant dense<0.000000e+00> : vector<8xf32>
    %62 = vector.multi_reduction <add>, %61, %cst_37 [1] : vector<8x32xf32> to vector<8xf32>
    %63 = vector.shape_cast %62 : vector<8xf32> to vector<8x1xf32>
    %c0_38 = arith.constant 0 : index
    %c0_39 = arith.constant 0 : index
    %64 = vector.load %arg7[%c0_38, %c0_39] : memref<1x1xf32, #tpu.memory_space<vmem>>, vector<1x1xf32>
    %65 = vector.broadcast %64 : vector<1x1xf32> to vector<8x1xf32>
    %66 = arith.addf %63, %65 : vector<8x1xf32>
    %c0_40 = arith.constant 0 : index
    %c0_41 = arith.constant 0 : index
    %67 = vector.load %arg16[%c0_40, %c0_41] : memref<8x1xf32, #tpu.memory_space<vmem>>, vector<8x1xf32>
    tpu.vector_store %arg16[%c0_40, %c0_41], %66 {strides = array<i32>} : memref<8x1xf32, #tpu.memory_space<vmem>>, vector<8x1xf32>,
    %cst_42 = arith.constant 1.000000e+00 : f32
    %cst_43 = arith.constant 5.000000e+00 : f32
    %68 = vector.broadcast %cst_42 : f32 to vector<8x1xf32>
    %69 = arith.maximumf %68, %66 : vector<8x1xf32>
    %70 = vector.broadcast %cst_43 : f32 to vector<8x1xf32>
    %71 = arith.minimumf %70, %69 : vector<8x1xf32>
    %72 = arith.fptosi %71 : vector<8x1xf32> to vector<8x1xi32>
    %c1_i32 = arith.constant 1 : i32
    %73 = vector.broadcast %c1_i32 : i32 to vector<8x1xi32>
    %74 = arith.subi %72, %73 : vector<8x1xi32>
    %c0_44 = arith.constant 0 : index
    %c0_45 = arith.constant 0 : index
    %75 = vector.load %arg8[%c0_44, %c0_45] : memref<64x128xf32, #tpu.memory_space<vmem>>, vector<64x128xf32>
    %cst_46 = arith.constant dense<0.000000e+00> : vector<8x128xf32>
    %76 = tpu.matmul %0, %75, %cst_46 {dimension_numbers = #tpu.dot_dimension_numbers<[1], [0], [0], [1], [0, 0, 1, 1], [], []>} : vector<8x64xf32>, vector<64x128xf32>, vector<8x128xf32> -> vector<8x128xf32>
    %c0_47 = arith.constant 0 : index
    %c0_48 = arith.constant 0 : index
    %77 = vector.load %arg10[%c0_47, %c0_48] : memref<1x128xf32, #tpu.memory_space<vmem>>, vector<1x128xf32>
    %78 = vector.broadcast %77 : vector<1x128xf32> to vector<8x128xf32>
    %79 = arith.addf %76, %78 : vector<8x128xf32>
    %cst_49 = arith.constant 0.000000e+00 : f32
    %80 = vector.broadcast %cst_49 : f32 to vector<8x128xf32>
    %c0_i32 = arith.constant 0 : i32
    %81 = vector.broadcast %c0_i32 : i32 to vector<8x1xi32>
    %82 = arith.cmpi eq, %74, %81 : vector<8x1xi32>
    %83 = arith.extui %82 : vector<8x1xi1> to vector<8x1xi32>
    %84 = arith.sitofp %83 : vector<8x1xi32> to vector<8x1xf32>
    %c0_50 = arith.constant 0 : index
    %c0_51 = arith.constant 0 : index
    %85 = vector.load %arg9[%c0_50, %c0_51] : memref<5x128xf32, #tpu.memory_space<vmem>>, vector<1x128xf32>
    %86 = vector.shape_cast %85 : vector<1x128xf32> to vector<128xf32>
    %87 = vector.shape_cast %86 : vector<128xf32> to vector<1x128xf32>
    %88 = vector.broadcast %84 : vector<8x1xf32> to vector<8x128xf32>
    %89 = vector.broadcast %87 : vector<1x128xf32> to vector<8x128xf32>
    %90 = arith.mulf %88, %89 : vector<8x128xf32>
    %91 = arith.addf %80, %90 : vector<8x128xf32>
    %c1_i32_52 = arith.constant 1 : i32
    %92 = vector.broadcast %c1_i32_52 : i32 to vector<8x1xi32>
    %93 = arith.cmpi eq, %74, %92 : vector<8x1xi32>
    %94 = arith.extui %93 : vector<8x1xi1> to vector<8x1xi32>
    %95 = arith.sitofp %94 : vector<8x1xi32> to vector<8x1xf32>
    %c1_53 = arith.constant 1 : index
    %c0_54 = arith.constant 0 : index
    %96 = vector.load %arg9[%c1_53, %c0_54] : memref<5x128xf32, #tpu.memory_space<vmem>>, vector<1x128xf32>
    %97 = vector.shape_cast %96 : vector<1x128xf32> to vector<128xf32>
    %98 = vector.shape_cast %97 : vector<128xf32> to vector<1x128xf32>
    %99 = vector.broadcast %95 : vector<8x1xf32> to vector<8x128xf32>
    %100 = vector.broadcast %98 : vector<1x128xf32> to vector<8x128xf32>
    %101 = arith.mulf %99, %100 : vector<8x128xf32>
    %102 = arith.addf %91, %101 : vector<8x128xf32>
    %c2_i32 = arith.constant 2 : i32
    %103 = vector.broadcast %c2_i32 : i32 to vector<8x1xi32>
    %104 = arith.cmpi eq, %74, %103 : vector<8x1xi32>
    %105 = arith.extui %104 : vector<8x1xi1> to vector<8x1xi32>
    %106 = arith.sitofp %105 : vector<8x1xi32> to vector<8x1xf32>
    %c2_55 = arith.constant 2 : index
    %c0_56 = arith.constant 0 : index
    %107 = vector.load %arg9[%c2_55, %c0_56] : memref<5x128xf32, #tpu.memory_space<vmem>>, vector<1x128xf32>
    %108 = vector.shape_cast %107 : vector<1x128xf32> to vector<128xf32>
    %109 = vector.shape_cast %108 : vector<128xf32> to vector<1x128xf32>
    %110 = vector.broadcast %106 : vector<8x1xf32> to vector<8x128xf32>
    %111 = vector.broadcast %109 : vector<1x128xf32> to vector<8x128xf32>
    %112 = arith.mulf %110, %111 : vector<8x128xf32>
    %113 = arith.addf %102, %112 : vector<8x128xf32>
    %c3_i32 = arith.constant 3 : i32
    %114 = vector.broadcast %c3_i32 : i32 to vector<8x1xi32>
    %115 = arith.cmpi eq, %74, %114 : vector<8x1xi32>
    %116 = arith.extui %115 : vector<8x1xi1> to vector<8x1xi32>
    %117 = arith.sitofp %116 : vector<8x1xi32> to vector<8x1xf32>
    %c3_57 = arith.constant 3 : index
    %c0_58 = arith.constant 0 : index
    %118 = vector.load %arg9[%c3_57, %c0_58] : memref<5x128xf32, #tpu.memory_space<vmem>>, vector<1x128xf32>
    %119 = vector.shape_cast %118 : vector<1x128xf32> to vector<128xf32>
    %120 = vector.shape_cast %119 : vector<128xf32> to vector<1x128xf32>
    %121 = vector.broadcast %117 : vector<8x1xf32> to vector<8x128xf32>
    %122 = vector.broadcast %120 : vector<1x128xf32> to vector<8x128xf32>
    %123 = arith.mulf %121, %122 : vector<8x128xf32>
    %124 = arith.addf %113, %123 : vector<8x128xf32>
    %c4_i32 = arith.constant 4 : i32
    %125 = vector.broadcast %c4_i32 : i32 to vector<8x1xi32>
    %126 = arith.cmpi eq, %74, %125 : vector<8x1xi32>
    %127 = arith.extui %126 : vector<8x1xi1> to vector<8x1xi32>
    %128 = arith.sitofp %127 : vector<8x1xi32> to vector<8x1xf32>
    %c4 = arith.constant 4 : index
    %c0_59 = arith.constant 0 : index
    %129 = vector.load %arg9[%c4, %c0_59] : memref<5x128xf32, #tpu.memory_space<vmem>>, vector<1x128xf32>
    %130 = vector.shape_cast %129 : vector<1x128xf32> to vector<128xf32>
    %131 = vector.shape_cast %130 : vector<128xf32> to vector<1x128xf32>
    %132 = vector.broadcast %128 : vector<8x1xf32> to vector<8x128xf32>
    %133 = vector.broadcast %131 : vector<1x128xf32> to vector<8x128xf32>
    %134 = arith.mulf %132, %133 : vector<8x128xf32>
    %135 = arith.addf %124, %134 : vector<8x128xf32>
    %136 = arith.addf %79, %135 : vector<8x128xf32>
    %137 = math.tanh %136 : vector<8x128xf32>
    %c0_60 = arith.constant 0 : index
    %c0_61 = arith.constant 0 : index
    %138 = vector.load %arg11[%c0_60, %c0_61] : memref<64x32xf32, #tpu.memory_space<vmem>>, vector<64x32xf32>
    %c0_62 = arith.constant 0 : index
    %c0_63 = arith.constant 0 : index
    %139 = vector.load %arg12[%c0_62, %c0_63] : memref<32x384xf32, #tpu.memory_space<vmem>>, vector<32x384xf32>
    %cst_64 = arith.constant dense<0.000000e+00> : vector<64x384xf32>
    %140 = tpu.matmul %138, %139, %cst_64 {dimension_numbers = #tpu.dot_dimension_numbers<[1], [0], [0], [1], [0, 0, 1, 1], [], []>} : vector<64x32xf32>, vector<32x384xf32>, vector<64x384xf32> -> vector<64x384xf32>
    %c0_65 = arith.constant 0 : index
    %c0_66 = arith.constant 0 : index
    %141 = vector.load %arg13[%c0_65, %c0_66] : memref<1x384xf32, #tpu.memory_space<vmem>>, vector<1x384xf32>
    %142 = vector.broadcast %141 : vector<1x384xf32> to vector<64x384xf32>
    %143 = arith.addf %140, %142 : vector<64x384xf32>
    %c0_67 = arith.constant 0 : index
    %c0_68 = arith.constant 0 : index
    %144 = vector.load %arg18[%c0_67, %c0_68] : memref<64x384xf32, #tpu.memory_space<vmem>>, vector<64x384xf32>
    tpu.vector_store %arg18[%c0_67, %c0_68], %143 {strides = array<i32>} : memref<64x384xf32, #tpu.memory_space<vmem>>, vector<64x384xf32>,
    %c0_69 = arith.constant 0 : index
    %c0_70 = arith.constant 0 : index
    %145 = vector.load %arg14[%c0_69, %c0_70] : memref<128x384xf32, #tpu.memory_space<vmem>>, vector<128x384xf32>
    %c0_71 = arith.constant 0 : index
    %c0_72 = arith.constant 0 : index
    %146 = vector.load %arg15[%c0_71, %c0_72] : memref<1x384xf32, #tpu.memory_space<vmem>>, vector<1x384xf32>
    %c0_i32_73 = arith.constant 0 : i32
    %c8_i32 = arith.constant 8 : i32
    %147 = arith.muli %c0_i32_73, %c8_i32 : i32
    %148 = tpu.assume_multiple %147, 8 : i32
    %149 = arith.index_cast %148 : i32 to index
    %c0_74 = arith.constant 0 : index
    %150 = vector.load %arg18[%149, %c0_74] : memref<64x384xf32, #tpu.memory_space<vmem>>, vector<8x384xf32>
    %cst_75 = arith.constant dense<0.000000e+00> : vector<8x384xf32>
    %151 = tpu.matmul %137, %145, %cst_75 {dimension_numbers = #tpu.dot_dimension_numbers<[1], [0], [0], [1], [0, 0, 1, 1], [], []>} : vector<8x128xf32>, vector<128x384xf32>, vector<8x384xf32> -> vector<8x384xf32>
    %152 = vector.broadcast %146 : vector<1x384xf32> to vector<8x384xf32>
    %153 = arith.addf %151, %152 : vector<8x384xf32>
    %154 = vector.extract_strided_slice %150 {offsets = [0, 0], sizes = [8, 128], strides = [1, 1]} : vector<8x384xf32> to vector<8x128xf32>
    %155 = vector.extract_strided_slice %153 {offsets = [0, 0], sizes = [8, 128], strides = [1, 1]} : vector<8x384xf32> to vector<8x128xf32>
    %156 = arith.addf %154, %155 : vector<8x128xf32>
    %157 = arith.negf %156 : vector<8x128xf32>
    %158 = math.exp %157 : vector<8x128xf32>
    %cst_76 = arith.constant 1.000000e+00 : f32
    %159 = vector.broadcast %cst_76 : f32 to vector<8x128xf32>
    %160 = arith.addf %159, %158 : vector<8x128xf32>
    %161 = arith.divf %159, %160 : vector<8x128xf32>
    %162 = vector.extract_strided_slice %150 {offsets = [0, 128], sizes = [8, 128], strides = [1, 1]} : vector<8x384xf32> to vector<8x128xf32>
    %163 = vector.extract_strided_slice %153 {offsets = [0, 128], sizes = [8, 128], strides = [1, 1]} : vector<8x384xf32> to vector<8x128xf32>
    %164 = arith.addf %162, %163 : vector<8x128xf32>
    %165 = arith.negf %164 : vector<8x128xf32>
    %166 = math.exp %165 : vector<8x128xf32>
    %cst_77 = arith.constant 1.000000e+00 : f32
    %167 = vector.broadcast %cst_77 : f32 to vector<8x128xf32>
    %168 = arith.addf %167, %166 : vector<8x128xf32>
    %169 = arith.divf %167, %168 : vector<8x128xf32>
    %170 = vector.extract_strided_slice %150 {offsets = [0, 256], sizes = [8, 128], strides = [1, 1]} : vector<8x384xf32> to vector<8x128xf32>
    %171 = vector.extract_strided_slice %153 {offsets = [0, 256], sizes = [8, 128], strides = [1, 1]} : vector<8x384xf32> to vector<8x128xf32>
    %172 = arith.mulf %161, %171 : vector<8x128xf32>
    %173 = arith.addf %170, %172 : vector<8x128xf32>
    %174 = math.tanh %173 : vector<8x128xf32>
    %cst_78 = arith.constant 1.000000e+00 : f32
    %175 = vector.broadcast %cst_78 : f32 to vector<8x128xf32>
    %176 = arith.subf %175, %169 : vector<8x128xf32>
    %177 = arith.mulf %176, %174 : vector<8x128xf32>
    %178 = arith.mulf %169, %137 : vector<8x128xf32>
    %179 = arith.addf %177, %178 : vector<8x128xf32>
    %180 = arith.index_cast %148 : i32 to index
    %c0_79 = arith.constant 0 : index
    %181 = vector.load %arg17[%180, %c0_79] : memref<64x128xf32, #tpu.memory_space<vmem>>, vector<8x128xf32>
    tpu.vector_store %arg17[%180, %c0_79], %179 {strides = array<i32>} : memref<64x128xf32, #tpu.memory_space<vmem>>, vector<8x128xf32>,
    %c1_i32_80 = arith.constant 1 : i32
    %c8_i32_81 = arith.constant 8 : i32
    %182 = arith.muli %c1_i32_80, %c8_i32_81 : i32
    %183 = tpu.assume_multiple %182, 8 : i32
    %184 = arith.index_cast %183 : i32 to index
    %c0_82 = arith.constant 0 : index
    %185 = vector.load %arg18[%184, %c0_82] : memref<64x384xf32, #tpu.memory_space<vmem>>, vector<8x384xf32>
    %cst_83 = arith.constant dense<0.000000e+00> : vector<8x384xf32>
    %186 = tpu.matmul %179, %145, %cst_83 {dimension_numbers = #tpu.dot_dimension_numbers<[1], [0], [0], [1], [0, 0, 1, 1], [], []>} : vector<8x128xf32>, vector<128x384xf32>, vector<8x384xf32> -> vector<8x384xf32>
    %187 = vector.broadcast %146 : vector<1x384xf32> to vector<8x384xf32>
    %188 = arith.addf %186, %187 : vector<8x384xf32>
    %189 = vector.extract_strided_slice %185 {offsets = [0, 0], sizes = [8, 128], strides = [1, 1]} : vector<8x384xf32> to vector<8x128xf32>
    %190 = vector.extract_strided_slice %188 {offsets = [0, 0], sizes = [8, 128], strides = [1, 1]} : vector<8x384xf32> to vector<8x128xf32>
    %191 = arith.addf %189, %190 : vector<8x128xf32>
    %192 = arith.negf %191 : vector<8x128xf32>
    %193 = math.exp %192 : vector<8x128xf32>
    %cst_84 = arith.constant 1.000000e+00 : f32
    %194 = vector.broadcast %cst_84 : f32 to vector<8x128xf32>
    %195 = arith.addf %194, %193 : vector<8x128xf32>
    %196 = arith.divf %194, %195 : vector<8x128xf32>
    %197 = vector.extract_strided_slice %185 {offsets = [0, 128], sizes = [8, 128], strides = [1, 1]} : vector<8x384xf32> to vector<8x128xf32>
    %198 = vector.extract_strided_slice %188 {offsets = [0, 128], sizes = [8, 128], strides = [1, 1]} : vector<8x384xf32> to vector<8x128xf32>
    %199 = arith.addf %197, %198 : vector<8x128xf32>
    %200 = arith.negf %199 : vector<8x128xf32>
    %201 = math.exp %200 : vector<8x128xf32>
    %cst_85 = arith.constant 1.000000e+00 : f32
    %202 = vector.broadcast %cst_85 : f32 to vector<8x128xf32>
    %203 = arith.addf %202, %201 : vector<8x128xf32>
    %204 = arith.divf %202, %203 : vector<8x128xf32>
    %205 = vector.extract_strided_slice %185 {offsets = [0, 256], sizes = [8, 128], strides = [1, 1]} : vector<8x384xf32> to vector<8x128xf32>
    %206 = vector.extract_strided_slice %188 {offsets = [0, 256], sizes = [8, 128], strides = [1, 1]} : vector<8x384xf32> to vector<8x128xf32>
    %207 = arith.mulf %196, %206 : vector<8x128xf32>
    %208 = arith.addf %205, %207 : vector<8x128xf32>
    %209 = math.tanh %208 : vector<8x128xf32>
    %cst_86 = arith.constant 1.000000e+00 : f32
    %210 = vector.broadcast %cst_86 : f32 to vector<8x128xf32>
    %211 = arith.subf %210, %204 : vector<8x128xf32>
    %212 = arith.mulf %211, %209 : vector<8x128xf32>
    %213 = arith.mulf %204, %179 : vector<8x128xf32>
    %214 = arith.addf %212, %213 : vector<8x128xf32>
    %215 = arith.index_cast %183 : i32 to index
    %c0_87 = arith.constant 0 : index
    %216 = vector.load %arg17[%215, %c0_87] : memref<64x128xf32, #tpu.memory_space<vmem>>, vector<8x128xf32>
    tpu.vector_store %arg17[%215, %c0_87], %214 {strides = array<i32>} : memref<64x128xf32, #tpu.memory_space<vmem>>, vector<8x128xf32>,
    %c2_i32_88 = arith.constant 2 : i32
    %c8_i32_89 = arith.constant 8 : i32
    %217 = arith.muli %c2_i32_88, %c8_i32_89 : i32
    %218 = tpu.assume_multiple %217, 8 : i32
    %219 = arith.index_cast %218 : i32 to index
    %c0_90 = arith.constant 0 : index
    %220 = vector.load %arg18[%219, %c0_90] : memref<64x384xf32, #tpu.memory_space<vmem>>, vector<8x384xf32>
    %cst_91 = arith.constant dense<0.000000e+00> : vector<8x384xf32>
    %221 = tpu.matmul %214, %145, %cst_91 {dimension_numbers = #tpu.dot_dimension_numbers<[1], [0], [0], [1], [0, 0, 1, 1], [], []>} : vector<8x128xf32>, vector<128x384xf32>, vector<8x384xf32> -> vector<8x384xf32>
    %222 = vector.broadcast %146 : vector<1x384xf32> to vector<8x384xf32>
    %223 = arith.addf %221, %222 : vector<8x384xf32>
    %224 = vector.extract_strided_slice %220 {offsets = [0, 0], sizes = [8, 128], strides = [1, 1]} : vector<8x384xf32> to vector<8x128xf32>
    %225 = vector.extract_strided_slice %223 {offsets = [0, 0], sizes = [8, 128], strides = [1, 1]} : vector<8x384xf32> to vector<8x128xf32>
    %226 = arith.addf %224, %225 : vector<8x128xf32>
    %227 = arith.negf %226 : vector<8x128xf32>
    %228 = math.exp %227 : vector<8x128xf32>
    %cst_92 = arith.constant 1.000000e+00 : f32
    %229 = vector.broadcast %cst_92 : f32 to vector<8x128xf32>
    %230 = arith.addf %229, %228 : vector<8x128xf32>
    %231 = arith.divf %229, %230 : vector<8x128xf32>
    %232 = vector.extract_strided_slice %220 {offsets = [0, 128], sizes = [8, 128], strides = [1, 1]} : vector<8x384xf32> to vector<8x128xf32>
    %233 = vector.extract_strided_slice %223 {offsets = [0, 128], sizes = [8, 128], strides = [1, 1]} : vector<8x384xf32> to vector<8x128xf32>
    %234 = arith.addf %232, %233 : vector<8x128xf32>
    %235 = arith.negf %234 : vector<8x128xf32>
    %236 = math.exp %235 : vector<8x128xf32>
    %cst_93 = arith.constant 1.000000e+00 : f32
    %237 = vector.broadcast %cst_93 : f32 to vector<8x128xf32>
    %238 = arith.addf %237, %236 : vector<8x128xf32>
    %239 = arith.divf %237, %238 : vector<8x128xf32>
    %240 = vector.extract_strided_slice %220 {offsets = [0, 256], sizes = [8, 128], strides = [1, 1]} : vector<8x384xf32> to vector<8x128xf32>
    %241 = vector.extract_strided_slice %223 {offsets = [0, 256], sizes = [8, 128], strides = [1, 1]} : vector<8x384xf32> to vector<8x128xf32>
    %242 = arith.mulf %231, %241 : vector<8x128xf32>
    %243 = arith.addf %240, %242 : vector<8x128xf32>
    %244 = math.tanh %243 : vector<8x128xf32>
    %cst_94 = arith.constant 1.000000e+00 : f32
    %245 = vector.broadcast %cst_94 : f32 to vector<8x128xf32>
    %246 = arith.subf %245, %239 : vector<8x128xf32>
    %247 = arith.mulf %246, %244 : vector<8x128xf32>
    %248 = arith.mulf %239, %214 : vector<8x128xf32>
    %249 = arith.addf %247, %248 : vector<8x128xf32>
    %250 = arith.index_cast %218 : i32 to index
    %c0_95 = arith.constant 0 : index
    %251 = vector.load %arg17[%250, %c0_95] : memref<64x128xf32, #tpu.memory_space<vmem>>, vector<8x128xf32>
    tpu.vector_store %arg17[%250, %c0_95], %249 {strides = array<i32>} : memref<64x128xf32, #tpu.memory_space<vmem>>, vector<8x128xf32>,
    %c3_i32_96 = arith.constant 3 : i32
    %c8_i32_97 = arith.constant 8 : i32
    %252 = arith.muli %c3_i32_96, %c8_i32_97 : i32
    %253 = tpu.assume_multiple %252, 8 : i32
    %254 = arith.index_cast %253 : i32 to index
    %c0_98 = arith.constant 0 : index
    %255 = vector.load %arg18[%254, %c0_98] : memref<64x384xf32, #tpu.memory_space<vmem>>, vector<8x384xf32>
    %cst_99 = arith.constant dense<0.000000e+00> : vector<8x384xf32>
    %256 = tpu.matmul %249, %145, %cst_99 {dimension_numbers = #tpu.dot_dimension_numbers<[1], [0], [0], [1], [0, 0, 1, 1], [], []>} : vector<8x128xf32>, vector<128x384xf32>, vector<8x384xf32> -> vector<8x384xf32>
    %257 = vector.broadcast %146 : vector<1x384xf32> to vector<8x384xf32>
    %258 = arith.addf %256, %257 : vector<8x384xf32>
    %259 = vector.extract_strided_slice %255 {offsets = [0, 0], sizes = [8, 128], strides = [1, 1]} : vector<8x384xf32> to vector<8x128xf32>
    %260 = vector.extract_strided_slice %258 {offsets = [0, 0], sizes = [8, 128], strides = [1, 1]} : vector<8x384xf32> to vector<8x128xf32>
    %261 = arith.addf %259, %260 : vector<8x128xf32>
    %262 = arith.negf %261 : vector<8x128xf32>
    %263 = math.exp %262 : vector<8x128xf32>
    %cst_100 = arith.constant 1.000000e+00 : f32
    %264 = vector.broadcast %cst_100 : f32 to vector<8x128xf32>
    %265 = arith.addf %264, %263 : vector<8x128xf32>
    %266 = arith.divf %264, %265 : vector<8x128xf32>
    %267 = vector.extract_strided_slice %255 {offsets = [0, 128], sizes = [8, 128], strides = [1, 1]} : vector<8x384xf32> to vector<8x128xf32>
    %268 = vector.extract_strided_slice %258 {offsets = [0, 128], sizes = [8, 128], strides = [1, 1]} : vector<8x384xf32> to vector<8x128xf32>
    %269 = arith.addf %267, %268 : vector<8x128xf32>
    %270 = arith.negf %269 : vector<8x128xf32>
    %271 = math.exp %270 : vector<8x128xf32>
    %cst_101 = arith.constant 1.000000e+00 : f32
    %272 = vector.broadcast %cst_101 : f32 to vector<8x128xf32>
    %273 = arith.addf %272, %271 : vector<8x128xf32>
    %274 = arith.divf %272, %273 : vector<8x128xf32>
    %275 = vector.extract_strided_slice %255 {offsets = [0, 256], sizes = [8, 128], strides = [1, 1]} : vector<8x384xf32> to vector<8x128xf32>
    %276 = vector.extract_strided_slice %258 {offsets = [0, 256], sizes = [8, 128], strides = [1, 1]} : vector<8x384xf32> to vector<8x128xf32>
    %277 = arith.mulf %266, %276 : vector<8x128xf32>
    %278 = arith.addf %275, %277 : vector<8x128xf32>
    %279 = math.tanh %278 : vector<8x128xf32>
    %cst_102 = arith.constant 1.000000e+00 : f32
    %280 = vector.broadcast %cst_102 : f32 to vector<8x128xf32>
    %281 = arith.subf %280, %274 : vector<8x128xf32>
    %282 = arith.mulf %281, %279 : vector<8x128xf32>
    %283 = arith.mulf %274, %249 : vector<8x128xf32>
    %284 = arith.addf %282, %283 : vector<8x128xf32>
    %285 = arith.index_cast %253 : i32 to index
    %c0_103 = arith.constant 0 : index
    %286 = vector.load %arg17[%285, %c0_103] : memref<64x128xf32, #tpu.memory_space<vmem>>, vector<8x128xf32>
    tpu.vector_store %arg17[%285, %c0_103], %284 {strides = array<i32>} : memref<64x128xf32, #tpu.memory_space<vmem>>, vector<8x128xf32>,
    %c4_i32_104 = arith.constant 4 : i32
    %c8_i32_105 = arith.constant 8 : i32
    %287 = arith.muli %c4_i32_104, %c8_i32_105 : i32
    %288 = tpu.assume_multiple %287, 8 : i32
    %289 = arith.index_cast %288 : i32 to index
    %c0_106 = arith.constant 0 : index
    %290 = vector.load %arg18[%289, %c0_106] : memref<64x384xf32, #tpu.memory_space<vmem>>, vector<8x384xf32>
    %cst_107 = arith.constant dense<0.000000e+00> : vector<8x384xf32>
    %291 = tpu.matmul %284, %145, %cst_107 {dimension_numbers = #tpu.dot_dimension_numbers<[1], [0], [0], [1], [0, 0, 1, 1], [], []>} : vector<8x128xf32>, vector<128x384xf32>, vector<8x384xf32> -> vector<8x384xf32>
    %292 = vector.broadcast %146 : vector<1x384xf32> to vector<8x384xf32>
    %293 = arith.addf %291, %292 : vector<8x384xf32>
    %294 = vector.extract_strided_slice %290 {offsets = [0, 0], sizes = [8, 128], strides = [1, 1]} : vector<8x384xf32> to vector<8x128xf32>
    %295 = vector.extract_strided_slice %293 {offsets = [0, 0], sizes = [8, 128], strides = [1, 1]} : vector<8x384xf32> to vector<8x128xf32>
    %296 = arith.addf %294, %295 : vector<8x128xf32>
    %297 = arith.negf %296 : vector<8x128xf32>
    %298 = math.exp %297 : vector<8x128xf32>
    %cst_108 = arith.constant 1.000000e+00 : f32
    %299 = vector.broadcast %cst_108 : f32 to vector<8x128xf32>
    %300 = arith.addf %299, %298 : vector<8x128xf32>
    %301 = arith.divf %299, %300 : vector<8x128xf32>
    %302 = vector.extract_strided_slice %290 {offsets = [0, 128], sizes = [8, 128], strides = [1, 1]} : vector<8x384xf32> to vector<8x128xf32>
    %303 = vector.extract_strided_slice %293 {offsets = [0, 128], sizes = [8, 128], strides = [1, 1]} : vector<8x384xf32> to vector<8x128xf32>
    %304 = arith.addf %302, %303 : vector<8x128xf32>
    %305 = arith.negf %304 : vector<8x128xf32>
    %306 = math.exp %305 : vector<8x128xf32>
    %cst_109 = arith.constant 1.000000e+00 : f32
    %307 = vector.broadcast %cst_109 : f32 to vector<8x128xf32>
    %308 = arith.addf %307, %306 : vector<8x128xf32>
    %309 = arith.divf %307, %308 : vector<8x128xf32>
    %310 = vector.extract_strided_slice %290 {offsets = [0, 256], sizes = [8, 128], strides = [1, 1]} : vector<8x384xf32> to vector<8x128xf32>
    %311 = vector.extract_strided_slice %293 {offsets = [0, 256], sizes = [8, 128], strides = [1, 1]} : vector<8x384xf32> to vector<8x128xf32>
    %312 = arith.mulf %301, %311 : vector<8x128xf32>
    %313 = arith.addf %310, %312 : vector<8x128xf32>
    %314 = math.tanh %313 : vector<8x128xf32>
    %cst_110 = arith.constant 1.000000e+00 : f32
    %315 = vector.broadcast %cst_110 : f32 to vector<8x128xf32>
    %316 = arith.subf %315, %309 : vector<8x128xf32>
    %317 = arith.mulf %316, %314 : vector<8x128xf32>
    %318 = arith.mulf %309, %284 : vector<8x128xf32>
    %319 = arith.addf %317, %318 : vector<8x128xf32>
    %320 = arith.index_cast %288 : i32 to index
    %c0_111 = arith.constant 0 : index
    %321 = vector.load %arg17[%320, %c0_111] : memref<64x128xf32, #tpu.memory_space<vmem>>, vector<8x128xf32>
    tpu.vector_store %arg17[%320, %c0_111], %319 {strides = array<i32>} : memref<64x128xf32, #tpu.memory_space<vmem>>, vector<8x128xf32>,
    %c5_i32 = arith.constant 5 : i32
    %c8_i32_112 = arith.constant 8 : i32
    %322 = arith.muli %c5_i32, %c8_i32_112 : i32
    %323 = tpu.assume_multiple %322, 8 : i32
    %324 = arith.index_cast %323 : i32 to index
    %c0_113 = arith.constant 0 : index
    %325 = vector.load %arg18[%324, %c0_113] : memref<64x384xf32, #tpu.memory_space<vmem>>, vector<8x384xf32>
    %cst_114 = arith.constant dense<0.000000e+00> : vector<8x384xf32>
    %326 = tpu.matmul %319, %145, %cst_114 {dimension_numbers = #tpu.dot_dimension_numbers<[1], [0], [0], [1], [0, 0, 1, 1], [], []>} : vector<8x128xf32>, vector<128x384xf32>, vector<8x384xf32> -> vector<8x384xf32>
    %327 = vector.broadcast %146 : vector<1x384xf32> to vector<8x384xf32>
    %328 = arith.addf %326, %327 : vector<8x384xf32>
    %329 = vector.extract_strided_slice %325 {offsets = [0, 0], sizes = [8, 128], strides = [1, 1]} : vector<8x384xf32> to vector<8x128xf32>
    %330 = vector.extract_strided_slice %328 {offsets = [0, 0], sizes = [8, 128], strides = [1, 1]} : vector<8x384xf32> to vector<8x128xf32>
    %331 = arith.addf %329, %330 : vector<8x128xf32>
    %332 = arith.negf %331 : vector<8x128xf32>
    %333 = math.exp %332 : vector<8x128xf32>
    %cst_115 = arith.constant 1.000000e+00 : f32
    %334 = vector.broadcast %cst_115 : f32 to vector<8x128xf32>
    %335 = arith.addf %334, %333 : vector<8x128xf32>
    %336 = arith.divf %334, %335 : vector<8x128xf32>
    %337 = vector.extract_strided_slice %325 {offsets = [0, 128], sizes = [8, 128], strides = [1, 1]} : vector<8x384xf32> to vector<8x128xf32>
    %338 = vector.extract_strided_slice %328 {offsets = [0, 128], sizes = [8, 128], strides = [1, 1]} : vector<8x384xf32> to vector<8x128xf32>
    %339 = arith.addf %337, %338 : vector<8x128xf32>
    %340 = arith.negf %339 : vector<8x128xf32>
    %341 = math.exp %340 : vector<8x128xf32>
    %cst_116 = arith.constant 1.000000e+00 : f32
    %342 = vector.broadcast %cst_116 : f32 to vector<8x128xf32>
    %343 = arith.addf %342, %341 : vector<8x128xf32>
    %344 = arith.divf %342, %343 : vector<8x128xf32>
    %345 = vector.extract_strided_slice %325 {offsets = [0, 256], sizes = [8, 128], strides = [1, 1]} : vector<8x384xf32> to vector<8x128xf32>
    %346 = vector.extract_strided_slice %328 {offsets = [0, 256], sizes = [8, 128], strides = [1, 1]} : vector<8x384xf32> to vector<8x128xf32>
    %347 = arith.mulf %336, %346 : vector<8x128xf32>
    %348 = arith.addf %345, %347 : vector<8x128xf32>
    %349 = math.tanh %348 : vector<8x128xf32>
    %cst_117 = arith.constant 1.000000e+00 : f32
    %350 = vector.broadcast %cst_117 : f32 to vector<8x128xf32>
    %351 = arith.subf %350, %344 : vector<8x128xf32>
    %352 = arith.mulf %351, %349 : vector<8x128xf32>
    %353 = arith.mulf %344, %319 : vector<8x128xf32>
    %354 = arith.addf %352, %353 : vector<8x128xf32>
    %355 = arith.index_cast %323 : i32 to index
    %c0_118 = arith.constant 0 : index
    %356 = vector.load %arg17[%355, %c0_118] : memref<64x128xf32, #tpu.memory_space<vmem>>, vector<8x128xf32>
    tpu.vector_store %arg17[%355, %c0_118], %354 {strides = array<i32>} : memref<64x128xf32, #tpu.memory_space<vmem>>, vector<8x128xf32>,
    %c6_i32 = arith.constant 6 : i32
    %c8_i32_119 = arith.constant 8 : i32
    %357 = arith.muli %c6_i32, %c8_i32_119 : i32
    %358 = tpu.assume_multiple %357, 8 : i32
    %359 = arith.index_cast %358 : i32 to index
    %c0_120 = arith.constant 0 : index
    %360 = vector.load %arg18[%359, %c0_120] : memref<64x384xf32, #tpu.memory_space<vmem>>, vector<8x384xf32>
    %cst_121 = arith.constant dense<0.000000e+00> : vector<8x384xf32>
    %361 = tpu.matmul %354, %145, %cst_121 {dimension_numbers = #tpu.dot_dimension_numbers<[1], [0], [0], [1], [0, 0, 1, 1], [], []>} : vector<8x128xf32>, vector<128x384xf32>, vector<8x384xf32> -> vector<8x384xf32>
    %362 = vector.broadcast %146 : vector<1x384xf32> to vector<8x384xf32>
    %363 = arith.addf %361, %362 : vector<8x384xf32>
    %364 = vector.extract_strided_slice %360 {offsets = [0, 0], sizes = [8, 128], strides = [1, 1]} : vector<8x384xf32> to vector<8x128xf32>
    %365 = vector.extract_strided_slice %363 {offsets = [0, 0], sizes = [8, 128], strides = [1, 1]} : vector<8x384xf32> to vector<8x128xf32>
    %366 = arith.addf %364, %365 : vector<8x128xf32>
    %367 = arith.negf %366 : vector<8x128xf32>
    %368 = math.exp %367 : vector<8x128xf32>
    %cst_122 = arith.constant 1.000000e+00 : f32
    %369 = vector.broadcast %cst_122 : f32 to vector<8x128xf32>
    %370 = arith.addf %369, %368 : vector<8x128xf32>
    %371 = arith.divf %369, %370 : vector<8x128xf32>
    %372 = vector.extract_strided_slice %360 {offsets = [0, 128], sizes = [8, 128], strides = [1, 1]} : vector<8x384xf32> to vector<8x128xf32>
    %373 = vector.extract_strided_slice %363 {offsets = [0, 128], sizes = [8, 128], strides = [1, 1]} : vector<8x384xf32> to vector<8x128xf32>
    %374 = arith.addf %372, %373 : vector<8x128xf32>
    %375 = arith.negf %374 : vector<8x128xf32>
    %376 = math.exp %375 : vector<8x128xf32>
    %cst_123 = arith.constant 1.000000e+00 : f32
    %377 = vector.broadcast %cst_123 : f32 to vector<8x128xf32>
    %378 = arith.addf %377, %376 : vector<8x128xf32>
    %379 = arith.divf %377, %378 : vector<8x128xf32>
    %380 = vector.extract_strided_slice %360 {offsets = [0, 256], sizes = [8, 128], strides = [1, 1]} : vector<8x384xf32> to vector<8x128xf32>
    %381 = vector.extract_strided_slice %363 {offsets = [0, 256], sizes = [8, 128], strides = [1, 1]} : vector<8x384xf32> to vector<8x128xf32>
    %382 = arith.mulf %371, %381 : vector<8x128xf32>
    %383 = arith.addf %380, %382 : vector<8x128xf32>
    %384 = math.tanh %383 : vector<8x128xf32>
    %cst_124 = arith.constant 1.000000e+00 : f32
    %385 = vector.broadcast %cst_124 : f32 to vector<8x128xf32>
    %386 = arith.subf %385, %379 : vector<8x128xf32>
    %387 = arith.mulf %386, %384 : vector<8x128xf32>
    %388 = arith.mulf %379, %354 : vector<8x128xf32>
    %389 = arith.addf %387, %388 : vector<8x128xf32>
    %390 = arith.index_cast %358 : i32 to index
    %c0_125 = arith.constant 0 : index
    %391 = vector.load %arg17[%390, %c0_125] : memref<64x128xf32, #tpu.memory_space<vmem>>, vector<8x128xf32>
    tpu.vector_store %arg17[%390, %c0_125], %389 {strides = array<i32>} : memref<64x128xf32, #tpu.memory_space<vmem>>, vector<8x128xf32>,
    %c7_i32 = arith.constant 7 : i32
    %c8_i32_126 = arith.constant 8 : i32
    %392 = arith.muli %c7_i32, %c8_i32_126 : i32
    %393 = tpu.assume_multiple %392, 8 : i32
    %394 = arith.index_cast %393 : i32 to index
    %c0_127 = arith.constant 0 : index
    %395 = vector.load %arg18[%394, %c0_127] : memref<64x384xf32, #tpu.memory_space<vmem>>, vector<8x384xf32>
    %cst_128 = arith.constant dense<0.000000e+00> : vector<8x384xf32>
    %396 = tpu.matmul %389, %145, %cst_128 {dimension_numbers = #tpu.dot_dimension_numbers<[1], [0], [0], [1], [0, 0, 1, 1], [], []>} : vector<8x128xf32>, vector<128x384xf32>, vector<8x384xf32> -> vector<8x384xf32>
    %397 = vector.broadcast %146 : vector<1x384xf32> to vector<8x384xf32>
    %398 = arith.addf %396, %397 : vector<8x384xf32>
    %399 = vector.extract_strided_slice %395 {offsets = [0, 0], sizes = [8, 128], strides = [1, 1]} : vector<8x384xf32> to vector<8x128xf32>
    %400 = vector.extract_strided_slice %398 {offsets = [0, 0], sizes = [8, 128], strides = [1, 1]} : vector<8x384xf32> to vector<8x128xf32>
    %401 = arith.addf %399, %400 : vector<8x128xf32>
    %402 = arith.negf %401 : vector<8x128xf32>
    %403 = math.exp %402 : vector<8x128xf32>
    %cst_129 = arith.constant 1.000000e+00 : f32
    %404 = vector.broadcast %cst_129 : f32 to vector<8x128xf32>
    %405 = arith.addf %404, %403 : vector<8x128xf32>
    %406 = arith.divf %404, %405 : vector<8x128xf32>
    %407 = vector.extract_strided_slice %395 {offsets = [0, 128], sizes = [8, 128], strides = [1, 1]} : vector<8x384xf32> to vector<8x128xf32>
    %408 = vector.extract_strided_slice %398 {offsets = [0, 128], sizes = [8, 128], strides = [1, 1]} : vector<8x384xf32> to vector<8x128xf32>
    %409 = arith.addf %407, %408 : vector<8x128xf32>
    %410 = arith.negf %409 : vector<8x128xf32>
    %411 = math.exp %410 : vector<8x128xf32>
    %cst_130 = arith.constant 1.000000e+00 : f32
    %412 = vector.broadcast %cst_130 : f32 to vector<8x128xf32>
    %413 = arith.addf %412, %411 : vector<8x128xf32>
    %414 = arith.divf %412, %413 : vector<8x128xf32>
    %415 = vector.extract_strided_slice %395 {offsets = [0, 256], sizes = [8, 128], strides = [1, 1]} : vector<8x384xf32> to vector<8x128xf32>
    %416 = vector.extract_strided_slice %398 {offsets = [0, 256], sizes = [8, 128], strides = [1, 1]} : vector<8x384xf32> to vector<8x128xf32>
    %417 = arith.mulf %406, %416 : vector<8x128xf32>
    %418 = arith.addf %415, %417 : vector<8x128xf32>
    %419 = math.tanh %418 : vector<8x128xf32>
    %cst_131 = arith.constant 1.000000e+00 : f32
    %420 = vector.broadcast %cst_131 : f32 to vector<8x128xf32>
    %421 = arith.subf %420, %414 : vector<8x128xf32>
    %422 = arith.mulf %421, %419 : vector<8x128xf32>
    %423 = arith.mulf %414, %389 : vector<8x128xf32>
    %424 = arith.addf %422, %423 : vector<8x128xf32>
    %425 = arith.index_cast %393 : i32 to index
    %c0_132 = arith.constant 0 : index
    %426 = vector.load %arg17[%425, %c0_132] : memref<64x128xf32, #tpu.memory_space<vmem>>, vector<8x128xf32>
    tpu.vector_store %arg17[%425, %c0_132], %424 {strides = array<i32>} : memref<64x128xf32, #tpu.memory_space<vmem>>, vector<8x128xf32>,
    %c8_i32_133 = arith.constant 8 : i32
    return
  }
  func.func @transform_0(%arg0: i32) -> (i32, i32) {
    %c0_i32 = arith.constant 0 : i32
    %c0_i32_0 = arith.constant 0 : i32
    %c0_i32_1 = arith.constant 0 : i32
    return %c0_i32, %c0_i32_0 : i32, i32
  }
  func.func @transform_1(%arg0: i32) -> (i32, i32) {
    %c0_i32 = arith.constant 0 : i32
    %c0_i32_0 = arith.constant 0 : i32
    %c0_i32_1 = arith.constant 0 : i32
    return %c0_i32, %c0_i32_0 : i32, i32
  }
  func.func @transform_2(%arg0: i32) -> (i32, i32) {
    %c0_i32 = arith.constant 0 : i32
    %c0_i32_0 = arith.constant 0 : i32
    %c0_i32_1 = arith.constant 0 : i32
    return %c0_i32, %c0_i32_0 : i32, i32
  }
  func.func @transform_3(%arg0: i32) -> (i32, i32, i32) {
    %c0_i32 = arith.constant 0 : i32
    %c0_i32_0 = arith.constant 0 : i32
    %c0_i32_1 = arith.constant 0 : i32
    %c0_i32_2 = arith.constant 0 : i32
    return %c0_i32, %c0_i32_0, %c0_i32_1 : i32, i32, i32
  }
  func.func @transform_4(%arg0: i32) -> (i32, i32, i32) {
    %c0_i32 = arith.constant 0 : i32
    %c0_i32_0 = arith.constant 0 : i32
    %c0_i32_1 = arith.constant 0 : i32
    %c0_i32_2 = arith.constant 0 : i32
    return %c0_i32, %c0_i32_0, %c0_i32_1 : i32, i32, i32
  }
  func.func @transform_5(%arg0: i32) -> (i32, i32) {
    %c0_i32 = arith.constant 0 : i32
    %c0_i32_0 = arith.constant 0 : i32
    %c0_i32_1 = arith.constant 0 : i32
    return %c0_i32, %c0_i32_0 : i32, i32
  }
  func.func @transform_6(%arg0: i32) -> (i32, i32) {
    %c0_i32 = arith.constant 0 : i32
    %c0_i32_0 = arith.constant 0 : i32
    %c0_i32_1 = arith.constant 0 : i32
    return %c0_i32, %c0_i32_0 : i32, i32
  }
  func.func @transform_7(%arg0: i32) -> (i32, i32) {
    %c0_i32 = arith.constant 0 : i32
    %c0_i32_0 = arith.constant 0 : i32
    %c0_i32_1 = arith.constant 0 : i32
    return %c0_i32, %c0_i32_0 : i32, i32
  }
  func.func @transform_8(%arg0: i32) -> (i32, i32) {
    %c0_i32 = arith.constant 0 : i32
    %c0_i32_0 = arith.constant 0 : i32
    %c0_i32_1 = arith.constant 0 : i32
    return %c0_i32, %c0_i32_0 : i32, i32
  }
  func.func @transform_9(%arg0: i32) -> (i32, i32) {
    %c0_i32 = arith.constant 0 : i32
    %c0_i32_0 = arith.constant 0 : i32
    %c0_i32_1 = arith.constant 0 : i32
    return %c0_i32, %c0_i32_0 : i32, i32
  }
  func.func @transform_10(%arg0: i32) -> (i32, i32) {
    %c0_i32 = arith.constant 0 : i32
    %c0_i32_0 = arith.constant 0 : i32
    %c0_i32_1 = arith.constant 0 : i32
    return %c0_i32, %c0_i32_0 : i32, i32
  }
  func.func @transform_11(%arg0: i32) -> (i32, i32) {
    %c0_i32 = arith.constant 0 : i32
    %c0_i32_0 = arith.constant 0 : i32
    %c0_i32_1 = arith.constant 0 : i32
    return %c0_i32, %c0_i32_0 : i32, i32
  }
  func.func @transform_12(%arg0: i32) -> (i32, i32) {
    %c0_i32 = arith.constant 0 : i32
    %c0_i32_0 = arith.constant 0 : i32
    %c0_i32_1 = arith.constant 0 : i32
    return %c0_i32, %c0_i32_0 : i32, i32
  }
  func.func @transform_13(%arg0: i32) -> (i32, i32) {
    %c0_i32 = arith.constant 0 : i32
    %c0_i32_0 = arith.constant 0 : i32
    %c0_i32_1 = arith.constant 0 : i32
    return %c0_i32, %c0_i32_0 : i32, i32
  }
  func.func @transform_14(%arg0: i32) -> (i32, i32) {
    %c0_i32 = arith.constant 0 : i32
    %c0_i32_0 = arith.constant 0 : i32
    %c0_i32_1 = arith.constant 0 : i32
    return %c0_i32, %c0_i32_0 : i32, i32
  }
  func.func @transform_15(%arg0: i32) -> (i32, i32) {
    %c0_i32 = arith.constant 0 : i32
    %c0_i32_0 = arith.constant 0 : i32
    %c0_i32_1 = arith.constant 0 : i32
    return %c0_i32, %c0_i32_0 : i32, i32
  }
  func.func @transform_16(%arg0: i32) -> (i32, i32) {
    %c0_i32 = arith.constant 0 : i32
    %c0_i32_0 = arith.constant 0 : i32
    %c0_i32_1 = arith.constant 0 : i32
    return %c0_i32, %c0_i32_0 : i32, i32
  }
}

module attributes {stable_mosaic.version = 11 : i64} {
  func.func @lse_kernel(%arg0: i32, %arg1: i32, %arg2: memref<64x128xf32, #tpu.memory_space<vmem>>, %arg3: memref<128x128xf32, #tpu.memory_space<vmem>>, %arg4: memref<1x128xf32, #tpu.memory_space<vmem>>, %arg5: memref<64x1xf32, #tpu.memory_space<vmem>>, %arg6: memref<64x1xf32, #tpu.memory_space<vmem>>, %arg7: memref<64x1xf32, #tpu.memory_space<vmem>>) attributes {dimension_semantics = [#tpu.dimension_semantics<parallel>, #tpu.dimension_semantics<arbitrary>], iteration_bounds = array<i64: 1, 1>, scalar_prefetch = 0 : i64, scratch_operands = 2 : i64, tpu.core_type = #tpu.core_type<tc>, window_params = [{transform_indices = @transform_0, window_bounds = array<i64: 64, 128>}, {transform_indices = @transform_1, window_bounds = array<i64: 128, 128>}, {transform_indices = @transform_2, window_bounds = array<i64: 1, 128>}, {transform_indices = @transform_3, window_bounds = array<i64: 64, 1>}]} {
    %c0_i32 = arith.constant 0 : i32
    %0 = arith.cmpi eq, %arg1, %c0_i32 : i32
    %1 = arith.extui %0 : i1 to i32
    %c0_i32_0 = arith.constant 0 : i32
    %2 = arith.cmpi ne, %1, %c0_i32_0 : i32
    scf.if %2 {
      %cst_18 = arith.constant 0xFF800000 : f32
      %28 = vector.broadcast %cst_18 : f32 to vector<64x1xf32>
      %c0_19 = arith.constant 0 : index
      %c0_20 = arith.constant 0 : index
      %29 = vector.load %arg6[%c0_19, %c0_20] : memref<64x1xf32, #tpu.memory_space<vmem>>, vector<64x1xf32>
      tpu.vector_store %arg6[%c0_19, %c0_20], %28 {strides = array<i32>} : memref<64x1xf32, #tpu.memory_space<vmem>>, vector<64x1xf32>,
      %cst_21 = arith.constant 0.000000e+00 : f32
      %30 = vector.broadcast %cst_21 : f32 to vector<64x1xf32>
      %c0_22 = arith.constant 0 : index
      %c0_23 = arith.constant 0 : index
      %31 = vector.load %arg7[%c0_22, %c0_23] : memref<64x1xf32, #tpu.memory_space<vmem>>, vector<64x1xf32>
      tpu.vector_store %arg7[%c0_22, %c0_23], %30 {strides = array<i32>} : memref<64x1xf32, #tpu.memory_space<vmem>>, vector<64x1xf32>,
    } else {
    }
    %c0 = arith.constant 0 : index
    %c0_1 = arith.constant 0 : index
    %3 = vector.load %arg2[%c0, %c0_1] : memref<64x128xf32, #tpu.memory_space<vmem>>, vector<64x128xf32>
    %c0_2 = arith.constant 0 : index
    %c0_3 = arith.constant 0 : index
    %4 = vector.load %arg3[%c0_2, %c0_3] : memref<128x128xf32, #tpu.memory_space<vmem>>, vector<128x128xf32>
    %cst = arith.constant dense<0.000000e+00> : vector<64x128xf32>
    %5 = tpu.matmul %3, %4, %cst {dimension_numbers = #tpu.dot_dimension_numbers<[1], [0], [0], [1], [0, 0, 1, 1], [], []>} : vector<64x128xf32>, vector<128x128xf32>, vector<64x128xf32> -> vector<64x128xf32>
    %c0_4 = arith.constant 0 : index
    %c0_5 = arith.constant 0 : index
    %6 = vector.load %arg4[%c0_4, %c0_5] : memref<1x128xf32, #tpu.memory_space<vmem>>, vector<1x128xf32>
    %7 = vector.broadcast %6 : vector<1x128xf32> to vector<64x128xf32>
    %8 = arith.addf %5, %7 : vector<64x128xf32>
    %c0_6 = arith.constant 0 : index
    %c0_7 = arith.constant 0 : index
    %9 = vector.load %arg6[%c0_6, %c0_7] : memref<64x1xf32, #tpu.memory_space<vmem>>, vector<64x1xf32>
    %cst_8 = arith.constant dense<0xFF800000> : vector<64xf32>
    %10 = vector.multi_reduction <maximumf>, %8, %cst_8 [1] : vector<64x128xf32> to vector<64xf32>
    %11 = vector.shape_cast %10 : vector<64xf32> to vector<64x1xf32>
    %12 = arith.maximumf %9, %11 : vector<64x1xf32>
    %c0_9 = arith.constant 0 : index
    %c0_10 = arith.constant 0 : index
    %13 = vector.load %arg7[%c0_9, %c0_10] : memref<64x1xf32, #tpu.memory_space<vmem>>, vector<64x1xf32>
    %14 = arith.subf %9, %12 : vector<64x1xf32>
    %15 = math.exp %14 : vector<64x1xf32>
    %16 = arith.mulf %13, %15 : vector<64x1xf32>
    %17 = vector.broadcast %12 : vector<64x1xf32> to vector<64x128xf32>
    %18 = arith.subf %8, %17 : vector<64x128xf32>
    %19 = math.exp %18 : vector<64x128xf32>
    %cst_11 = arith.constant dense<0.000000e+00> : vector<64xf32>
    %20 = vector.multi_reduction <add>, %19, %cst_11 [1] : vector<64x128xf32> to vector<64xf32>
    %21 = vector.shape_cast %20 : vector<64xf32> to vector<64x1xf32>
    %22 = arith.addf %16, %21 : vector<64x1xf32>
    %c0_12 = arith.constant 0 : index
    %c0_13 = arith.constant 0 : index
    %23 = vector.load %arg7[%c0_12, %c0_13] : memref<64x1xf32, #tpu.memory_space<vmem>>, vector<64x1xf32>
    tpu.vector_store %arg7[%c0_12, %c0_13], %22 {strides = array<i32>} : memref<64x1xf32, #tpu.memory_space<vmem>>, vector<64x1xf32>,
    %c0_14 = arith.constant 0 : index
    %c0_15 = arith.constant 0 : index
    %24 = vector.load %arg6[%c0_14, %c0_15] : memref<64x1xf32, #tpu.memory_space<vmem>>, vector<64x1xf32>
    tpu.vector_store %arg6[%c0_14, %c0_15], %12 {strides = array<i32>} : memref<64x1xf32, #tpu.memory_space<vmem>>, vector<64x1xf32>,
    %c0_i32_16 = arith.constant 0 : i32
    %25 = arith.cmpi eq, %arg1, %c0_i32_16 : i32
    %26 = arith.extui %25 : i1 to i32
    %c0_i32_17 = arith.constant 0 : i32
    %27 = arith.cmpi ne, %26, %c0_i32_17 : i32
    scf.if %27 {
      %c0_18 = arith.constant 0 : index
      %c0_19 = arith.constant 0 : index
      %28 = vector.load %arg6[%c0_18, %c0_19] : memref<64x1xf32, #tpu.memory_space<vmem>>, vector<64x1xf32>
      %c0_20 = arith.constant 0 : index
      %c0_21 = arith.constant 0 : index
      %29 = vector.load %arg7[%c0_20, %c0_21] : memref<64x1xf32, #tpu.memory_space<vmem>>, vector<64x1xf32>
      %30 = math.log %29 : vector<64x1xf32>
      %31 = arith.addf %28, %30 : vector<64x1xf32>
      %c0_22 = arith.constant 0 : index
      %c0_23 = arith.constant 0 : index
      %32 = vector.load %arg5[%c0_22, %c0_23] : memref<64x1xf32, #tpu.memory_space<vmem>>, vector<64x1xf32>
      tpu.vector_store %arg5[%c0_22, %c0_23], %31 {strides = array<i32>} : memref<64x1xf32, #tpu.memory_space<vmem>>, vector<64x1xf32>,
    } else {
    }
    return
  }
  func.func @transform_0(%arg0: i32, %arg1: i32) -> (i32, i32) {
    %c0_i32 = arith.constant 0 : i32
    %c0_i32_0 = arith.constant 0 : i32
    return %arg0, %c0_i32 : i32, i32
  }
  func.func @transform_1(%arg0: i32, %arg1: i32) -> (i32, i32) {
    %c0_i32 = arith.constant 0 : i32
    %c0_i32_0 = arith.constant 0 : i32
    return %c0_i32, %arg1 : i32, i32
  }
  func.func @transform_2(%arg0: i32, %arg1: i32) -> (i32, i32) {
    %c0_i32 = arith.constant 0 : i32
    %c0_i32_0 = arith.constant 0 : i32
    return %c0_i32, %arg1 : i32, i32
  }
  func.func @transform_3(%arg0: i32, %arg1: i32) -> (i32, i32) {
    %c0_i32 = arith.constant 0 : i32
    %c0_i32_0 = arith.constant 0 : i32
    return %arg0, %c0_i32 : i32, i32
  }
}

</mosaic_0001>

<llo_original>
// kernel: nrt_forward.5
$region0: #{nrt_forward.5}
  #allocation0 [shape = 'u32[]', space=smem, size = 0x4, offset = 0x4, fixed_abs, tag = 'smem constant byte address 0x4 - core index']
  #allocation1 [shape = 'u32[144,128]{1,0:T(1,128)}', space=vmem, size = 0x12000, scoped, tag = 'internal scratch']
  %s0 = inlined_call_operand.vmem [shape: f32[64,128], index: 0, kind: input, shape index: {}]
  %s1 = inlined_call_operand.vmem [shape: f32[128,128], index: 1, kind: input, shape index: {}]
  %s2 = inlined_call_operand.vmem [shape: f32[1,128], index: 2, kind: input, shape index: {}]
  %s3 = inlined_call_operand.vmem [shape: f32[64,1], index: 3, kind: input, shape index: {}]
  %s4 = inlined_call_operand.vmem [shape: f32[64,128], index: 4, kind: output, shape index: {}]
  %s5 = sld [smem:[#allocation0]]
  $region26: #{nrt_forward.5} parent=0
    _
  %s7 = ssub.s32 1, %s5
  %s8 = scalar_select 0, %s7, %s5
  // Predicated region
  $region2: #{nrt_forward.5} parent=0 // pred_check
    _
  $region3: #{nrt_forward.5} parent=0 // pred_check_branch
    %10 = sbr.rel (0) target = $region5
  $region4: #{nrt_forward.5} parent=0 // pred_region
    _
  $region5: #{nrt_forward.5} parent=0 // pred_fallthru
    _
  // Predicated region
  $region6: #{nrt_forward.5} parent=0 // pred_check
    _
  $region7: #{nrt_forward.5} parent=0 // pred_check_branch
    %12 = sbr.rel (0) target = $region9
  $region8: #{nrt_forward.5} parent=0 // pred_region
    _
  $region9: #{nrt_forward.5} parent=0 // pred_fallthru
    _
  // Predicated region
  $region10: #{nrt_forward.5} parent=0 // pred_check
    _
  $region11: #{nrt_forward.5} parent=0 // pred_check_branch
    %14 = sbr.rel (0) target = $region13
  $region12: #{nrt_forward.5} parent=0 // pred_region
    _
  $region13: #{nrt_forward.5} parent=0 // pred_fallthru
    _
  // Predicated region
  $region14: #{nrt_forward.5} parent=0 // pred_check
    _
  $region15: #{nrt_forward.5} parent=0 // pred_check_branch
    %16 = sbr.rel (0) target = $region17
  $region16: #{nrt_forward.5} parent=0 // pred_region
    _
  $region17: #{nrt_forward.5} parent=0 // pred_fallthru
    _
  %v17 = vld [vmem:[%s0] sm:$0xff]
  %v18 = vld [vmem:[%s0 + $0x8] sm:$0xff]
  %v19 = vld [vmem:[%s0 + $0x10] sm:$0xff]
  %v20 = vld [vmem:[%s0 + $0x18] sm:$0xff]
  %v21 = vld [vmem:[%s0 + $0x20] sm:$0xff]
  %v22 = vld [vmem:[%s0 + $0x28] sm:$0xff]
  %v23 = vld [vmem:[%s0 + $0x30] sm:$0xff]
  %v24 = vld [vmem:[%s0 + $0x38] sm:$0xff]
  %v25 = vld [vmem:[%s1] sm:$0xff]
  %v26 = vld [vmem:[%s1 + $0x8] sm:$0xff]
  %v27 = vld [vmem:[%s1 + $0x10] sm:$0xff]
  %v28 = vld [vmem:[%s1 + $0x18] sm:$0xff]
  %v29 = vld [vmem:[%s1 + $0x20] sm:$0xff]
  %v30 = vld [vmem:[%s1 + $0x28] sm:$0xff]
  %v31 = vld [vmem:[%s1 + $0x30] sm:$0xff]
  %v32 = vld [vmem:[%s1 + $0x38] sm:$0xff]
  %v33 = vld [vmem:[%s1 + $0x40] sm:$0xff]
  %v34 = vld [vmem:[%s1 + $0x48] sm:$0xff]
  %v35 = vld [vmem:[%s1 + $0x50] sm:$0xff]
  %v36 = vld [vmem:[%s1 + $0x58] sm:$0xff]
  %v37 = vld [vmem:[%s1 + $0x60] sm:$0xff]
  %v38 = vld [vmem:[%s1 + $0x68] sm:$0xff]
  %v39 = vld [vmem:[%s1 + $0x70] sm:$0xff]
  %v40 = vld [vmem:[%s1 + $0x78] sm:$0xff]
  %v41 = vld [vmem:[%s2] sm:$0x1]
  %v43 = vlaneseq
  %v44 = vshrl.u32 %v43, 7
  %v45 = vsub.s32 0, %v44
  %v46 = vrot.slane %v41, %v45
  %48 = vmatprep.subr.mxu0 0.0
  %49 = vmatpush1.msra.mxu0 %v40
  %50 = vmatprep.subr.mxu0 0.0
  %51 = vmatpush1.msra.mxu0 %v39
  %52 = vmatprep.subr.mxu0 0.0
  %53 = vmatpush1.msra.mxu0 %v38
  %54 = vmatprep.subr.mxu0 0.0
  %55 = vmatpush1.msra.mxu0 %v37
  %56 = vmatprep.subr.mxu0 0.0
  %57 = vmatpush1.msra.mxu0 %v36
  %58 = vmatprep.subr.mxu0 0.0
  %59 = vmatpush1.msra.mxu0 %v35
  %60 = vmatprep.subr.mxu0 0.0
  %61 = vmatpush1.msra.mxu0 %v34
  %62 = vmatprep.subr.mxu0 0.0
  %63 = vmatpush1.msra.mxu0 %v33
  %64 = vmatprep.subr.mxu0 0.0
  %65 = vmatpush1.msra.mxu0 %v32
  %66 = vmatprep.subr.mxu0 0.0
  %67 = vmatpush1.msra.mxu0 %v31
  %68 = vmatprep.subr.mxu0 0.0
  %69 = vmatpush1.msra.mxu0 %v30
  %70 = vmatprep.subr.mxu0 0.0
  %71 = vmatpush1.msra.mxu0 %v29
  %72 = vmatprep.subr.mxu0 0.0
  %73 = vmatpush1.msra.mxu0 %v28
  %74 = vmatprep.subr.mxu0 0.0
  %75 = vmatpush1.msra.mxu0 %v27
  %76 = vmatprep.subr.mxu0 0.0
  %77 = vmatpush1.msra.mxu0 %v26
  %78 = vmatprep.subr.mxu0 0.0
  %79 = vmatpush1.msra.mxu0 %v25
  %80 = vmatprep.subr.mxu0 0.0
  %81 = vmatpush2.msra.mxu0 0.0
  %82 = vmatprep.subr.mxu0 0.0
  %83 = vmatpush2.msra.mxu0 0.0
  %84 = vmatprep.subr.mxu0 0.0
  %85 = vmatpush2.msra.mxu0 0.0
  %86 = vmatprep.subr.mxu0 0.0
  %87 = vmatpush2.msra.mxu0 0.0
  %88 = vmatprep.subr.mxu0 0.0
  %89 = vmatpush2.msra.mxu0 0.0
  %90 = vmatprep.subr.mxu0 0.0
  %91 = vmatpush2.msra.mxu0 0.0
  %92 = vmatprep.subr.mxu0 0.0
  %93 = vmatpush2.msra.mxu0 0.0
  %94 = vmatprep.subr.mxu0 0.0
  %95 = vmatpush2.msra.mxu0 0.0
  %96 = vmatprep.subr.mxu0 0.0
  %97 = vmatpush2.msra.mxu0 0.0
  %98 = vmatprep.subr.mxu0 0.0
  %99 = vmatpush2.msra.mxu0 0.0
  %100 = vmatprep.subr.mxu0 0.0
  %101 = vmatpush2.msra.mxu0 0.0
  %102 = vmatprep.subr.mxu0 0.0
  %103 = vmatpush2.msra.mxu0 0.0
  %104 = vmatprep.subr.mxu0 0.0
  %105 = vmatpush2.msra.mxu0 0.0
  %106 = vmatprep.subr.mxu0 0.0
  %107 = vmatpush2.msra.mxu0 0.0
  %108 = vmatprep.subr.mxu0 0.0
  %109 = vmatpush2.msra.mxu0 0.0
  %110 = vmatprep.subr.mxu0 0.0
  %111 = vmatpush2.msra.mxu0 0.0
  %112 = vmatprep.mubr.f32.mxu0 0.0
  %113 = vmatmul.mubr.f32.gmra.mxu0 %v17
  %v114 = vpop.f32.mrf.mxu0
  %v115 = vadd.f32 %v46, %v114
  %v116 = vpop.f32.mrf.mxu0
  %117 = vmatprep.mubr.f32.mxu0 0.0
  %118 = vmatmul.mubr.f32.gmra.mxu0 %v18
  %v119 = vpop.f32.mrf.mxu0
  %v120 = vadd.f32 %v46, %v119
  %v121 = vpop.f32.mrf.mxu0
  %122 = vmatprep.mubr.f32.mxu0 0.0
  %123 = vmatmul.mubr.f32.gmra.mxu0 %v19
  %v124 = vpop.f32.mrf.mxu0
  %v125 = vadd.f32 %v46, %v124
  %v126 = vpop.f32.mrf.mxu0
  %127 = vmatprep.mubr.f32.mxu0 0.0
  %128 = vmatmul.mubr.f32.gmra.mxu0 %v20
  %v129 = vpop.f32.mrf.mxu0
  %v130 = vadd.f32 %v46, %v129
  %v131 = vpop.f32.mrf.mxu0
  %132 = vmatprep.mubr.f32.mxu0 0.0
  %133 = vmatmul.mubr.f32.gmra.mxu0 %v21
  %v134 = vpop.f32.mrf.mxu0
  %v135 = vadd.f32 %v46, %v134
  %v136 = vpop.f32.mrf.mxu0
  %137 = vmatprep.mubr.f32.mxu0 0.0
  %138 = vmatmul.mubr.f32.gmra.mxu0 %v22
  %v139 = vpop.f32.mrf.mxu0
  %v140 = vadd.f32 %v46, %v139
  %v141 = vpop.f32.mrf.mxu0
  %142 = vmatprep.mubr.f32.mxu0 0.0
  %143 = vmatmul.mubr.f32.gmra.mxu0 %v23
  %v144 = vpop.f32.mrf.mxu0
  %v145 = vadd.f32 %v46, %v144
  %v146 = vpop.f32.mrf.mxu0
  %147 = vmatprep.mubr.f32.mxu0 0.0
  %148 = vmatmul.mubr.f32.gmra.mxu0 %v24
  %v149 = vpop.f32.mrf.mxu0
  %v150 = vadd.f32 %v46, %v149
  %v151 = vpop.f32.mrf.mxu0
  %152 = vdwg.mxu0
  %v153 = vld [vmem:[%s3] sm:$0xff]
  %v154 = vld [vmem:[%s3 + $0x8] sm:$0xff]
  %v155 = vld [vmem:[%s3 + $0x10] sm:$0xff]
  %v156 = vld [vmem:[%s3 + $0x18] sm:$0xff]
  %v157 = vld [vmem:[%s3 + $0x20] sm:$0xff]
  %v158 = vld [vmem:[%s3 + $0x28] sm:$0xff]
  %v159 = vld [vmem:[%s3 + $0x30] sm:$0xff]
  %v160 = vld [vmem:[%s3 + $0x38] sm:$0xff]
  %162 = vset.pattern.permute.xlu0 0
  %163 = vperm.xlu0 %162, %v153
  %v164 = vpop.permute.xlu0 %163
  %167 = vset.pattern.permute.xlu0 0
  %168 = vperm.xlu0 %167, %v154
  %v169 = vpop.permute.xlu0 %168
  %172 = vset.pattern.permute.xlu0 0
  %173 = vperm.xlu0 %172, %v155
  %v174 = vpop.permute.xlu0 %173
  %177 = vset.pattern.permute.xlu0 0
  %178 = vperm.xlu0 %177, %v156
  %v179 = vpop.permute.xlu0 %178
  %182 = vset.pattern.permute.xlu0 0
  %183 = vperm.xlu0 %182, %v157
  %v184 = vpop.permute.xlu0 %183
  %187 = vset.pattern.permute.xlu0 0
  %188 = vperm.xlu0 %187, %v158
  %v189 = vpop.permute.xlu0 %188
  %192 = vset.pattern.permute.xlu0 0
  %193 = vperm.xlu0 %192, %v159
  %v194 = vpop.permute.xlu0 %193
  %197 = vset.pattern.permute.xlu0 0
  %198 = vperm.xlu0 %197, %v160
  %v199 = vpop.permute.xlu0 %198
  %v201 = vsub.f32 %v115, %v164
  %v202 = vsub.f32 %v120, %v169
  %v203 = vsub.f32 %v125, %v174
  %v204 = vsub.f32 %v130, %v179
  %v205 = vsub.f32 %v135, %v184
  %v206 = vsub.f32 %v140, %v189
  %v207 = vsub.f32 %v145, %v194
  %v208 = vsub.f32 %v150, %v199
  %209 = vst [vmem:[%s4] sm:$0xff] %v201
  %210 = vst [vmem:[%s4 + $0x8] sm:$0xff] %v202
  %211 = vst [vmem:[%s4 + $0x10] sm:$0xff] %v203
  %212 = vst [vmem:[%s4 + $0x18] sm:$0xff] %v204
  %213 = vst [vmem:[%s4 + $0x20] sm:$0xff] %v205
  %214 = vst [vmem:[%s4 + $0x28] sm:$0xff] %v206
  %215 = vst [vmem:[%s4 + $0x30] sm:$0xff] %v207
  %216 = vst [vmem:[%s4 + $0x38] sm:$0xff] %v208
  // Predicated region
  $region18: #{nrt_forward.5} parent=0 // pred_check
    _
  $region19: #{nrt_forward.5} parent=0 // pred_check_branch
    %218 = sbr.rel (0) target = $region21
  $region20: #{nrt_forward.5} parent=0 // pred_region
    _
  $region21: #{nrt_forward.5} parent=0 // pred_fallthru
    _
  // Predicated region
  $region22: #{nrt_forward.5} parent=0 // pred_check
    _
  $region23: #{nrt_forward.5} parent=0 // pred_check_branch
    %220 = sbr.rel (0) target = $region25
  $region24: #{nrt_forward.5} parent=0 // pred_region
    _
  $region25: #{nrt_forward.5} parent=0 // pred_fallthru
    _

// kernel: nrt_forward.4
$region0: #{nrt_forward.4}
  #allocation0 [shape = 'u32[]', space=smem, size = 0x4, offset = 0x4, fixed_abs, tag = 'smem constant byte address 0x4 - core index']
  #allocation1 [shape = 'u32[144,128]{1,0:T(1,128)}', space=vmem, size = 0x12000, scoped, tag = 'internal scratch']
  #allocation2 [shape = 'f32[64,1]{1,0:T(8,128)}', space=vmem, size = 0x8000, scoped, tag = 'scratch operand']
  #allocation3 [shape = 'f32[64,1]{1,0:T(8,128)}', space=vmem, size = 0x8000, scoped, tag = 'scratch operand']
  %s0 = inlined_call_operand.vmem [shape: f32[64,128], index: 0, kind: input, shape index: {}]
  %s1 = inlined_call_operand.vmem [shape: f32[128,128], index: 1, kind: input, shape index: {}]
  %s2 = inlined_call_operand.vmem [shape: f32[1,128], index: 2, kind: input, shape index: {}]
  %s3 = inlined_call_operand.vmem [shape: f32[64,1], index: 3, kind: output, shape index: {}]
  %s4 = sld [smem:[#allocation0]]
  $region30: #{nrt_forward.4} parent=0
    _
  %s6 = ssub.s32 1, %s4
  %s7 = scalar_select 0, %s6, %s4
  // Predicated region
  $region2: #{nrt_forward.4} parent=0 // pred_check
    _
  $region3: #{nrt_forward.4} parent=0 // pred_check_branch
    %9 = sbr.rel (0) target = $region5
  $region4: #{nrt_forward.4} parent=0 // pred_region
    _
  $region5: #{nrt_forward.4} parent=0 // pred_fallthru
    _
  // Predicated region
  $region6: #{nrt_forward.4} parent=0 // pred_check
    _
  $region7: #{nrt_forward.4} parent=0 // pred_check_branch
    %11 = sbr.rel (0) target = $region9
  $region8: #{nrt_forward.4} parent=0 // pred_region
    _
  $region9: #{nrt_forward.4} parent=0 // pred_fallthru
    _
  // Predicated region
  $region10: #{nrt_forward.4} parent=0 // pred_check
    _
  $region11: #{nrt_forward.4} parent=0 // pred_check_branch
    %13 = sbr.rel (0) target = $region13
  $region12: #{nrt_forward.4} parent=0 // pred_region
    _
  $region13: #{nrt_forward.4} parent=0 // pred_fallthru
    _
  %p14 = scmp.eq.s32.totalorder 0, 0
  // Predicated region
  $region14: #{nrt_forward.4} parent=0 // pred_check
    %p15 = pneg %p14
  $region15: #{nrt_forward.4} parent=0 // pred_check_branch
    %17 = sbr.rel (%p15) target = $region17
  $region16: #{nrt_forward.4} parent=0 // pred_region
    %vm18 = vcmask 7168
    %19 = vst.msk [vmem:[#allocation2] sm:$0xff] %vm18, -inf
    %20 = vst.msk [vmem:[#allocation2 + $0x8] sm:$0xff] %vm18, -inf
    %21 = vst.msk [vmem:[#allocation2 + $0x10] sm:$0xff] %vm18, -inf
    %22 = vst.msk [vmem:[#allocation2 + $0x18] sm:$0xff] %vm18, -inf
    %23 = vst.msk [vmem:[#allocation2 + $0x20] sm:$0xff] %vm18, -inf
    %24 = vst.msk [vmem:[#allocation2 + $0x28] sm:$0xff] %vm18, -inf
    %25 = vst.msk [vmem:[#allocation2 + $0x30] sm:$0xff] %vm18, -inf
    %26 = vst.msk [vmem:[#allocation2 + $0x38] sm:$0xff] %vm18, -inf
    %27 = vst.msk [vmem:[#allocation3] sm:$0xff] %vm18, 0.0
    %28 = vst.msk [vmem:[#allocation3 + $0x8] sm:$0xff] %vm18, 0.0
    %29 = vst.msk [vmem:[#allocation3 + $0x10] sm:$0xff] %vm18, 0.0
    %30 = vst.msk [vmem:[#allocation3 + $0x18] sm:$0xff] %vm18, 0.0
    %31 = vst.msk [vmem:[#allocation3 + $0x20] sm:$0xff] %vm18, 0.0
    %32 = vst.msk [vmem:[#allocation3 + $0x28] sm:$0xff] %vm18, 0.0
    %33 = vst.msk [vmem:[#allocation3 + $0x30] sm:$0xff] %vm18, 0.0
    %34 = vst.msk [vmem:[#allocation3 + $0x38] sm:$0xff] %vm18, 0.0
  $region17: #{nrt_forward.4} parent=0 // pred_fallthru
    _
  %v35 = vld [vmem:[%s0] sm:$0xff]
  %v36 = vld [vmem:[%s0 + $0x8] sm:$0xff]
  %v37 = vld [vmem:[%s0 + $0x10] sm:$0xff]
  %v38 = vld [vmem:[%s0 + $0x18] sm:$0xff]
  %v39 = vld [vmem:[%s0 + $0x20] sm:$0xff]
  %v40 = vld [vmem:[%s0 + $0x28] sm:$0xff]
  %v41 = vld [vmem:[%s0 + $0x30] sm:$0xff]
  %v42 = vld [vmem:[%s0 + $0x38] sm:$0xff]
  %v43 = vld [vmem:[%s1] sm:$0xff]
  %v44 = vld [vmem:[%s1 + $0x8] sm:$0xff]
  %v45 = vld [vmem:[%s1 + $0x10] sm:$0xff]
  %v46 = vld [vmem:[%s1 + $0x18] sm:$0xff]
  %v47 = vld [vmem:[%s1 + $0x20] sm:$0xff]
  %v48 = vld [vmem:[%s1 + $0x28] sm:$0xff]
  %v49 = vld [vmem:[%s1 + $0x30] sm:$0xff]
  %v50 = vld [vmem:[%s1 + $0x38] sm:$0xff]
  %v51 = vld [vmem:[%s1 + $0x40] sm:$0xff]
  %v52 = vld [vmem:[%s1 + $0x48] sm:$0xff]
  %v53 = vld [vmem:[%s1 + $0x50] sm:$0xff]
  %v54 = vld [vmem:[%s1 + $0x58] sm:$0xff]
  %v55 = vld [vmem:[%s1 + $0x60] sm:$0xff]
  %v56 = vld [vmem:[%s1 + $0x68] sm:$0xff]
  %v57 = vld [vmem:[%s1 + $0x70] sm:$0xff]
  %v58 = vld [vmem:[%s1 + $0x78] sm:$0xff]
  %v59 = vld [vmem:[%s2] sm:$0x1]
  %v61 = vlaneseq
  %v62 = vshrl.u32 %v61, 7
  %v63 = vsub.s32 0, %v62
  %v64 = vrot.slane %v59, %v63
  %66 = vmatprep.subr.mxu0 0.0
  %67 = vmatpush1.msra.mxu0 %v58
  %68 = vmatprep.subr.mxu0 0.0
  %69 = vmatpush1.msra.mxu0 %v57
  %70 = vmatprep.subr.mxu0 0.0
  %71 = vmatpush1.msra.mxu0 %v56
  %72 = vmatprep.subr.mxu0 0.0
  %73 = vmatpush1.msra.mxu0 %v55
  %74 = vmatprep.subr.mxu0 0.0
  %75 = vmatpush1.msra.mxu0 %v54
  %76 = vmatprep.subr.mxu0 0.0
  %77 = vmatpush1.msra.mxu0 %v53
  %78 = vmatprep.subr.mxu0 0.0
  %79 = vmatpush1.msra.mxu0 %v52
  %80 = vmatprep.subr.mxu0 0.0
  %81 = vmatpush1.msra.mxu0 %v51
  %82 = vmatprep.subr.mxu0 0.0
  %83 = vmatpush1.msra.mxu0 %v50
  %84 = vmatprep.subr.mxu0 0.0
  %85 = vmatpush1.msra.mxu0 %v49
  %86 = vmatprep.subr.mxu0 0.0
  %87 = vmatpush1.msra.mxu0 %v48
  %88 = vmatprep.subr.mxu0 0.0
  %89 = vmatpush1.msra.mxu0 %v47
  %90 = vmatprep.subr.mxu0 0.0
  %91 = vmatpush1.msra.mxu0 %v46
  %92 = vmatprep.subr.mxu0 0.0
  %93 = vmatpush1.msra.mxu0 %v45
  %94 = vmatprep.subr.mxu0 0.0
  %95 = vmatpush1.msra.mxu0 %v44
  %96 = vmatprep.subr.mxu0 0.0
  %97 = vmatpush1.msra.mxu0 %v43
  %98 = vmatprep.subr.mxu0 0.0
  %99 = vmatpush2.msra.mxu0 0.0
  %100 = vmatprep.subr.mxu0 0.0
  %101 = vmatpush2.msra.mxu0 0.0
  %102 = vmatprep.subr.mxu0 0.0
  %103 = vmatpush2.msra.mxu0 0.0
  %104 = vmatprep.subr.mxu0 0.0
  %105 = vmatpush2.msra.mxu0 0.0
  %106 = vmatprep.subr.mxu0 0.0
  %107 = vmatpush2.msra.mxu0 0.0
  %108 = vmatprep.subr.mxu0 0.0
  %109 = vmatpush2.msra.mxu0 0.0
  %110 = vmatprep.subr.mxu0 0.0
  %111 = vmatpush2.msra.mxu0 0.0
  %112 = vmatprep.subr.mxu0 0.0
  %113 = vmatpush2.msra.mxu0 0.0
  %114 = vmatprep.subr.mxu0 0.0
  %115 = vmatpush2.msra.mxu0 0.0
  %116 = vmatprep.subr.mxu0 0.0
  %117 = vmatpush2.msra.mxu0 0.0
  %118 = vmatprep.subr.mxu0 0.0
  %119 = vmatpush2.msra.mxu0 0.0
  %120 = vmatprep.subr.mxu0 0.0
  %121 = vmatpush2.msra.mxu0 0.0
  %122 = vmatprep.subr.mxu0 0.0
  %123 = vmatpush2.msra.mxu0 0.0
  %124 = vmatprep.subr.mxu0 0.0
  %125 = vmatpush2.msra.mxu0 0.0
  %126 = vmatprep.subr.mxu0 0.0
  %127 = vmatpush2.msra.mxu0 0.0
  %128 = vmatprep.subr.mxu0 0.0
  %129 = vmatpush2.msra.mxu0 0.0
  %130 = vmatprep.mubr.f32.mxu0 0.0
  %131 = vmatmul.mubr.f32.gmra.mxu0 %v35
  %v132 = vpop.f32.mrf.mxu0
  %v133 = vadd.f32 %v64, %v132
  %v134 = vpop.f32.mrf.mxu0
  %135 = vmatprep.mubr.f32.mxu0 0.0
  %136 = vmatmul.mubr.f32.gmra.mxu0 %v36
  %v137 = vpop.f32.mrf.mxu0
  %v138 = vadd.f32 %v64, %v137
  %v139 = vpop.f32.mrf.mxu0
  %140 = vmatprep.mubr.f32.mxu0 0.0
  %141 = vmatmul.mubr.f32.gmra.mxu0 %v37
  %v142 = vpop.f32.mrf.mxu0
  %v143 = vadd.f32 %v64, %v142
  %v144 = vpop.f32.mrf.mxu0
  %145 = vmatprep.mubr.f32.mxu0 0.0
  %146 = vmatmul.mubr.f32.gmra.mxu0 %v38
  %v147 = vpop.f32.mrf.mxu0
  %v148 = vadd.f32 %v64, %v147
  %v149 = vpop.f32.mrf.mxu0
  %150 = vmatprep.mubr.f32.mxu0 0.0
  %151 = vmatmul.mubr.f32.gmra.mxu0 %v39
  %v152 = vpop.f32.mrf.mxu0
  %v153 = vadd.f32 %v64, %v152
  %v154 = vpop.f32.mrf.mxu0
  %155 = vmatprep.mubr.f32.mxu0 0.0
  %156 = vmatmul.mubr.f32.gmra.mxu0 %v40
  %v157 = vpop.f32.mrf.mxu0
  %v158 = vadd.f32 %v64, %v157
  %v159 = vpop.f32.mrf.mxu0
  %160 = vmatprep.mubr.f32.mxu0 0.0
  %161 = vmatmul.mubr.f32.gmra.mxu0 %v41
  %v162 = vpop.f32.mrf.mxu0
  %v163 = vadd.f32 %v64, %v162
  %v164 = vpop.f32.mrf.mxu0
  %165 = vmatprep.mubr.f32.mxu0 0.0
  %166 = vmatmul.mubr.f32.gmra.mxu0 %v42
  %v167 = vpop.f32.mrf.mxu0
  %v168 = vadd.f32 %v64, %v167
  %v169 = vpop.f32.mrf.mxu0
  %170 = vdwg.mxu0
  %v171 = vld [vmem:[#allocation2] sm:$0xff]
  %v172 = vld [vmem:[#allocation2 + $0x8] sm:$0xff]
  %v173 = vld [vmem:[#allocation2 + $0x10] sm:$0xff]
  %v174 = vld [vmem:[#allocation2 + $0x18] sm:$0xff]
  %v175 = vld [vmem:[#allocation2 + $0x20] sm:$0xff]
  %v176 = vld [vmem:[#allocation2 + $0x28] sm:$0xff]
  %v177 = vld [vmem:[#allocation2 + $0x30] sm:$0xff]
  %v178 = vld [vmem:[#allocation2 + $0x38] sm:$0xff]
  %179 = vmax.xlane.f32.xlu0 %v133
  %v180 = vpop.xlane.xlu0 %179
  %181 = vmax.xlane.f32.xlu0 %v138
  %v182 = vpop.xlane.xlu0 %181
  %183 = vmax.xlane.f32.xlu0 %v143
  %v184 = vpop.xlane.xlu0 %183
  %185 = vmax.xlane.f32.xlu0 %v148
  %v186 = vpop.xlane.xlu0 %185
  %187 = vmax.xlane.f32.xlu0 %v153
  %v188 = vpop.xlane.xlu0 %187
  %189 = vmax.xlane.f32.xlu0 %v158
  %v190 = vpop.xlane.xlu0 %189
  %191 = vmax.xlane.f32.xlu0 %v163
  %v192 = vpop.xlane.xlu0 %191
  %193 = vmax.xlane.f32.xlu0 %v168
  %v194 = vpop.xlane.xlu0 %193
  %v195 = vmax.f32 %v171, %v180
  %v196 = vmax.f32 %v172, %v182
  %v197 = vmax.f32 %v173, %v184
  %v198 = vmax.f32 %v174, %v186
  %v199 = vmax.f32 %v175, %v188
  %v200 = vmax.f32 %v176, %v190
  %v201 = vmax.f32 %v177, %v192
  %v202 = vmax.f32 %v178, %v194
  %v203 = vld [vmem:[#allocation3] sm:$0xff]
  %v204 = vld [vmem:[#allocation3 + $0x8] sm:$0xff]
  %v205 = vld [vmem:[#allocation3 + $0x10] sm:$0xff]
  %v206 = vld [vmem:[#allocation3 + $0x18] sm:$0xff]
  %v207 = vld [vmem:[#allocation3 + $0x20] sm:$0xff]
  %v208 = vld [vmem:[#allocation3 + $0x28] sm:$0xff]
  %v209 = vld [vmem:[#allocation3 + $0x30] sm:$0xff]
  %v210 = vld [vmem:[#allocation3 + $0x38] sm:$0xff]
  %v211 = vsub.f32 %v171, %v195
  %v212 = vsub.f32 %v172, %v196
  %v213 = vsub.f32 %v173, %v197
  %v214 = vsub.f32 %v174, %v198
  %v215 = vsub.f32 %v175, %v199
  %v216 = vsub.f32 %v176, %v200
  %v217 = vsub.f32 %v177, %v201
  %v218 = vsub.f32 %v178, %v202
  %v219 = vmul.f32 %v211, 1.442695
  %v220 = vpow.pop %v219
  %v221 = vmul.f32 %v212, 1.442695
  %v222 = vpow.pop %v221
  %v223 = vmul.f32 %v213, 1.442695
  %v224 = vpow.pop %v223
  %v225 = vmul.f32 %v214, 1.442695
  %v226 = vpow.pop %v225
  %v227 = vmul.f32 %v215, 1.442695
  %v228 = vpow.pop %v227
  %v229 = vmul.f32 %v216, 1.442695
  %v230 = vpow.pop %v229
  %v231 = vmul.f32 %v217, 1.442695
  %v232 = vpow.pop %v231
  %v233 = vmul.f32 %v218, 1.442695
  %v234 = vpow.pop %v233
  %v235 = vmul.f32 %v203, %v220
  %v236 = vmul.f32 %v204, %v222
  %v237 = vmul.f32 %v205, %v224
  %v238 = vmul.f32 %v206, %v226
  %v239 = vmul.f32 %v207, %v228
  %v240 = vmul.f32 %v208, %v230
  %v241 = vmul.f32 %v209, %v232
  %v242 = vmul.f32 %v210, %v234
  %244 = vset.pattern.permute.xlu0 0
  %245 = vperm.xlu0 %244, %v195
  %v246 = vpop.permute.xlu0 %245
  %249 = vset.pattern.permute.xlu0 0
  %250 = vperm.xlu0 %249, %v196
  %v251 = vpop.permute.xlu0 %250
  %254 = vset.pattern.permute.xlu0 0
  %255 = vperm.xlu0 %254, %v197
  %v256 = vpop.permute.xlu0 %255
  %259 = vset.pattern.permute.xlu0 0
  %260 = vperm.xlu0 %259, %v198
  %v261 = vpop.permute.xlu0 %260
  %264 = vset.pattern.permute.xlu0 0
  %265 = vperm.xlu0 %264, %v199
  %v266 = vpop.permute.xlu0 %265
  %269 = vset.pattern.permute.xlu0 0
  %270 = vperm.xlu0 %269, %v200
  %v271 = vpop.permute.xlu0 %270
  %274 = vset.pattern.permute.xlu0 0
  %275 = vperm.xlu0 %274, %v201
  %v276 = vpop.permute.xlu0 %275
  %279 = vset.pattern.permute.xlu0 0
  %280 = vperm.xlu0 %279, %v202
  %v281 = vpop.permute.xlu0 %280
  %v283 = vsub.f32 %v133, %v246
  %v284 = vsub.f32 %v138, %v251
  %v285 = vsub.f32 %v143, %v256
  %v286 = vsub.f32 %v148, %v261
  %v287 = vsub.f32 %v153, %v266
  %v288 = vsub.f32 %v158, %v271
  %v289 = vsub.f32 %v163, %v276
  %v290 = vsub.f32 %v168, %v281
  %v291 = vmul.f32 %v283, 1.442695
  %v292 = vpow.pop %v291
  %v293 = vmul.f32 %v284, 1.442695
  %v294 = vpow.pop %v293
  %v295 = vmul.f32 %v285, 1.442695
  %v296 = vpow.pop %v295
  %v297 = vmul.f32 %v286, 1.442695
  %v298 = vpow.pop %v297
  %v299 = vmul.f32 %v287, 1.442695
  %v300 = vpow.pop %v299
  %v301 = vmul.f32 %v288, 1.442695
  %v302 = vpow.pop %v301
  %v303 = vmul.f32 %v289, 1.442695
  %v304 = vpow.pop %v303
  %v305 = vmul.f32 %v290, 1.442695
  %v306 = vpow.pop %v305
  %307 = vadd.xlane.f32.xlu0 %v292
  %v308 = vpop.xlane.xlu0 %307
  %309 = vadd.xlane.f32.xlu0 %v294
  %v310 = vpop.xlane.xlu0 %309
  %311 = vadd.xlane.f32.xlu0 %v296
  %v312 = vpop.xlane.xlu0 %311
  %313 = vadd.xlane.f32.xlu0 %v298
  %v314 = vpop.xlane.xlu0 %313
  %315 = vadd.xlane.f32.xlu0 %v300
  %v316 = vpop.xlane.xlu0 %315
  %317 = vadd.xlane.f32.xlu0 %v302
  %v318 = vpop.xlane.xlu0 %317
  %319 = vadd.xlane.f32.xlu0 %v304
  %v320 = vpop.xlane.xlu0 %319
  %321 = vadd.xlane.f32.xlu0 %v306
  %v322 = vpop.xlane.xlu0 %321
  %v323 = vadd.f32 %v235, %v308
  %v324 = vadd.f32 %v236, %v310
  %v325 = vadd.f32 %v237, %v312
  %v326 = vadd.f32 %v238, %v314
  %v327 = vadd.f32 %v239, %v316
  %v328 = vadd.f32 %v240, %v318
  %v329 = vadd.f32 %v241, %v320
  %v330 = vadd.f32 %v242, %v322
  %vm331 = vcmask 7168
  %332 = vst.msk [vmem:[#allocation3] sm:$0xff] %vm331, %v323
  %333 = vst.msk [vmem:[#allocation3 + $0x8] sm:$0xff] %vm331, %v324
  %334 = vst.msk [vmem:[#allocation3 + $0x10] sm:$0xff] %vm331, %v325
  %335 = vst.msk [vmem:[#allocation3 + $0x18] sm:$0xff] %vm331, %v326
  %336 = vst.msk [vmem:[#allocation3 + $0x20] sm:$0xff] %vm331, %v327
  %337 = vst.msk [vmem:[#allocation3 + $0x28] sm:$0xff] %vm331, %v328
  %338 = vst.msk [vmem:[#allocation3 + $0x30] sm:$0xff] %vm331, %v329
  %339 = vst.msk [vmem:[#allocation3 + $0x38] sm:$0xff] %vm331, %v330
  %340 = vst.msk [vmem:[#allocation2] sm:$0xff] %vm331, %v195
  %341 = vst.msk [vmem:[#allocation2 + $0x8] sm:$0xff] %vm331, %v196
  %342 = vst.msk [vmem:[#allocation2 + $0x10] sm:$0xff] %vm331, %v197
  %343 = vst.msk [vmem:[#allocation2 + $0x18] sm:$0xff] %vm331, %v198
  %344 = vst.msk [vmem:[#allocation2 + $0x20] sm:$0xff] %vm331, %v199
  %345 = vst.msk [vmem:[#allocation2 + $0x28] sm:$0xff] %vm331, %v200
  %346 = vst.msk [vmem:[#allocation2 + $0x30] sm:$0xff] %vm331, %v201
  %347 = vst.msk [vmem:[#allocation2 + $0x38] sm:$0xff] %vm331, %v202
  // Predicated region
  $region18: #{nrt_forward.4} parent=0 // pred_check
    %p348 = pneg %p14
  $region19: #{nrt_forward.4} parent=0 // pred_check_branch
    %350 = sbr.rel (%p348) target = $region21
  $region20: #{nrt_forward.4} parent=0 // pred_region
    %v351 = vld [vmem:[#allocation2] sm:$0xff]
    %v352 = vld [vmem:[#allocation2 + $0x8] sm:$0xff]
    %v353 = vld [vmem:[#allocation2 + $0x10] sm:$0xff]
    %v354 = vld [vmem:[#allocation2 + $0x18] sm:$0xff]
    %v355 = vld [vmem:[#allocation2 + $0x20] sm:$0xff]
    %v356 = vld [vmem:[#allocation2 + $0x28] sm:$0xff]
    %v357 = vld [vmem:[#allocation2 + $0x30] sm:$0xff]
    %v358 = vld [vmem:[#allocation2 + $0x38] sm:$0xff]
    %v359 = vld [vmem:[#allocation3] sm:$0xff]
    %v360 = vld [vmem:[#allocation3 + $0x8] sm:$0xff]
    %v361 = vld [vmem:[#allocation3 + $0x10] sm:$0xff]
    %v362 = vld [vmem:[#allocation3 + $0x18] sm:$0xff]
    %v363 = vld [vmem:[#allocation3 + $0x20] sm:$0xff]
    %v364 = vld [vmem:[#allocation3 + $0x28] sm:$0xff]
    %v365 = vld [vmem:[#allocation3 + $0x30] sm:$0xff]
    %v366 = vld [vmem:[#allocation3 + $0x38] sm:$0xff]
    %v367 = vlog2.pop %v359
    %v368 = vmul.f32 %v367, 0.6931472
    %v369 = vlog2.pop %v360
    %v370 = vmul.f32 %v369, 0.6931472
    %v371 = vlog2.pop %v361
    %v372 = vmul.f32 %v371, 0.6931472
    %v373 = vlog2.pop %v362
    %v374 = vmul.f32 %v373, 0.6931472
    %v375 = vlog2.pop %v363
    %v376 = vmul.f32 %v375, 0.6931472
    %v377 = vlog2.pop %v364
    %v378 = vmul.f32 %v377, 0.6931472
    %v379 = vlog2.pop %v365
    %v380 = vmul.f32 %v379, 0.6931472
    %v381 = vlog2.pop %v366
    %v382 = vmul.f32 %v381, 0.6931472
    %v383 = vadd.f32 %v351, %v368
    %v384 = vadd.f32 %v352, %v370
    %v385 = vadd.f32 %v353, %v372
    %v386 = vadd.f32 %v354, %v374
    %v387 = vadd.f32 %v355, %v376
    %v388 = vadd.f32 %v356, %v378
    %v389 = vadd.f32 %v357, %v380
    %v390 = vadd.f32 %v358, %v382
    %391 = vst.msk [vmem:[%s3] sm:$0xff] %vm331, %v383
    %392 = vst.msk [vmem:[%s3 + $0x8] sm:$0xff] %vm331, %v384
    %393 = vst.msk [vmem:[%s3 + $0x10] sm:$0xff] %vm331, %v385
    %394 = vst.msk [vmem:[%s3 + $0x18] sm:$0xff] %vm331, %v386
    %395 = vst.msk [vmem:[%s3 + $0x20] sm:$0xff] %vm331, %v387
    %396 = vst.msk [vmem:[%s3 + $0x28] sm:$0xff] %vm331, %v388
    %397 = vst.msk [vmem:[%s3 + $0x30] sm:$0xff] %vm331, %v389
    %398 = vst.msk [vmem:[%s3 + $0x38] sm:$0xff] %vm331, %v390
  $region21: #{nrt_forward.4} parent=0 // pred_fallthru
    _
  // Predicated region
  $region22: #{nrt_forward.4} parent=0 // pred_check
    _
  $region23: #{nrt_forward.4} parent=0 // pred_check_branch
    %400 = sbr.rel (0) target = $region25
  $region24: #{nrt_forward.4} parent=0 // pred_region
    _
  $region25: #{nrt_forward.4} parent=0 // pred_fallthru
    _
  // Predicated region
  $region26: #{nrt_forward.4} parent=0 // pred_check
    _
  $region27: #{nrt_forward.4} parent=0 // pred_check_branch
    %402 = sbr.rel (0) target = $region29
  $region28: #{nrt_forward.4} parent=0 // pred_region
    _
  $region29: #{nrt_forward.4} parent=0 // pred_fallthru
    _

// kernel: nrt_forward.3
$region0: #{nrt_forward.3}
  #allocation0 [shape = 'u32[]', space=smem, size = 0x4, offset = 0x4, fixed_abs, tag = 'smem constant byte address 0x4 - core index']
  #allocation1 [shape = 'u32[144,128]{1,0:T(1,128)}', space=vmem, size = 0x12000, scoped, tag = 'internal scratch']
  #allocation2 [shape = 'f32[64,384]{1,0:T(8,128)}', space=vmem, size = 0x18000, scoped, tag = 'scratch operand']
  #allocation3 [shape = 'f32[1,1]{1,0:T(1,128)S(1)}', space=vmem, size = 0x200, scoped, tag = 'scoped memory for nrt_forward.3']
  %s0 = inlined_call_operand.vmem [shape: f32[8,64], index: 0, kind: input, shape index: {}]
  %s1 = inlined_call_operand.vmem [shape: f32[64,32], index: 1, kind: input, shape index: {}]
  %s2 = inlined_call_operand.vmem [shape: f32[1,32], index: 2, kind: input, shape index: {}]
  %s3 = inlined_call_operand.vmem [shape: f32[4,32,32], index: 3, kind: input, shape index: {}]
  %s4 = inlined_call_operand.vmem [shape: f32[4,1,32], index: 4, kind: input, shape index: {}]
  %s5 = inlined_call_operand.vmem [shape: f32[1,32], index: 5, kind: input, shape index: {}]
  %s6 = inlined_call_operand.<no memory space> [shape: f32[1,1], index: 6, kind: input, shape index: {}]
  %s7 = inlined_call_operand.vmem [shape: f32[64,128], index: 7, kind: input, shape index: {}]
  %s8 = inlined_call_operand.vmem [shape: f32[5,128], index: 8, kind: input, shape index: {}]
  %s9 = inlined_call_operand.vmem [shape: f32[1,128], index: 9, kind: input, shape index: {}]
  %s10 = inlined_call_operand.vmem [shape: f32[64,32], index: 10, kind: input, shape index: {}]
  %s11 = inlined_call_operand.vmem [shape: f32[32,384], index: 11, kind: input, shape index: {}]
  %s12 = inlined_call_operand.vmem [shape: f32[1,384], index: 12, kind: input, shape index: {}]
  %s13 = inlined_call_operand.vmem [shape: f32[128,384], index: 13, kind: input, shape index: {}]
  %s14 = inlined_call_operand.vmem [shape: f32[1,384], index: 14, kind: input, shape index: {}]
  %s15 = inlined_call_operand.vmem [shape: f32[8,1], index: 15, kind: output, shape index: {0}]
  %s16 = inlined_call_operand.vmem [shape: f32[64,128], index: 16, kind: output, shape index: {1}]
  %17 = xla_tuple %s15, %s16
  %s18 = sld [smem:[#allocation0]]
  $region78: #{nrt_forward.3} parent=0
    _
  %s20 = ssub.s32 1, %s18
  %s21 = scalar_select 0, %s20, %s18
  %v22 = vstv %s6
  %23 = vst [vmem:[#allocation3] sm:$0x1] %v22
  // Predicated region
  $region2: #{nrt_forward.3} parent=0 // pred_check
    _
  $region3: #{nrt_forward.3} parent=0 // pred_check_branch
    %25 = sbr.rel (0) target = $region5
  $region4: #{nrt_forward.3} parent=0 // pred_region
    _
  $region5: #{nrt_forward.3} parent=0 // pred_fallthru
    _
  // Predicated region
  $region6: #{nrt_forward.3} parent=0 // pred_check
    _
  $region7: #{nrt_forward.3} parent=0 // pred_check_branch
    %27 = sbr.rel (0) target = $region9
  $region8: #{nrt_forward.3} parent=0 // pred_region
    _
  $region9: #{nrt_forward.3} parent=0 // pred_fallthru
    _
  // Predicated region
  $region10: #{nrt_forward.3} parent=0 // pred_check
    _
  $region11: #{nrt_forward.3} parent=0 // pred_check_branch
    %29 = sbr.rel (0) target = $region13
  $region12: #{nrt_forward.3} parent=0 // pred_region
    _
  $region13: #{nrt_forward.3} parent=0 // pred_fallthru
    _
  // Predicated region
  $region14: #{nrt_forward.3} parent=0 // pred_check
    _
  $region15: #{nrt_forward.3} parent=0 // pred_check_branch
    %31 = sbr.rel (0) target = $region17
  $region16: #{nrt_forward.3} parent=0 // pred_region
    _
  $region17: #{nrt_forward.3} parent=0 // pred_fallthru
    _
  // Predicated region
  $region18: #{nrt_forward.3} parent=0 // pred_check
    _
  $region19: #{nrt_forward.3} parent=0 // pred_check_branch
    %33 = sbr.rel (0) target = $region21
  $region20: #{nrt_forward.3} parent=0 // pred_region
    _
  $region21: #{nrt_forward.3} parent=0 // pred_fallthru
    _
  // Predicated region
  $region22: #{nrt_forward.3} parent=0 // pred_check
    _
  $region23: #{nrt_forward.3} parent=0 // pred_check_branch
    %35 = sbr.rel (0) target = $region25
  $region24: #{nrt_forward.3} parent=0 // pred_region
    _
  $region25: #{nrt_forward.3} parent=0 // pred_fallthru
    _
  // Predicated region
  $region26: #{nrt_forward.3} parent=0 // pred_check
    _
  $region27: #{nrt_forward.3} parent=0 // pred_check_branch
    %37 = sbr.rel (0) target = $region29
  $region28: #{nrt_forward.3} parent=0 // pred_region
    _
  $region29: #{nrt_forward.3} parent=0 // pred_fallthru
    _
  // Predicated region
  $region30: #{nrt_forward.3} parent=0 // pred_check
    _
  $region31: #{nrt_forward.3} parent=0 // pred_check_branch
    %39 = sbr.rel (0) target = $region33
  $region32: #{nrt_forward.3} parent=0 // pred_region
    _
  $region33: #{nrt_forward.3} parent=0 // pred_fallthru
    _
  // Predicated region
  $region34: #{nrt_forward.3} parent=0 // pred_check
    _
  $region35: #{nrt_forward.3} parent=0 // pred_check_branch
    %41 = sbr.rel (0) target = $region37
  $region36: #{nrt_forward.3} parent=0 // pred_region
    _
  $region37: #{nrt_forward.3} parent=0 // pred_fallthru
    _
  // Predicated region
  $region38: #{nrt_forward.3} parent=0 // pred_check
    _
  $region39: #{nrt_forward.3} parent=0 // pred_check_branch
    %43 = sbr.rel (0) target = $region41
  $region40: #{nrt_forward.3} parent=0 // pred_region
    _
  $region41: #{nrt_forward.3} parent=0 // pred_fallthru
    _
  // Predicated region
  $region42: #{nrt_forward.3} parent=0 // pred_check
    _
  $region43: #{nrt_forward.3} parent=0 // pred_check_branch
    %45 = sbr.rel (0) target = $region45
  $region44: #{nrt_forward.3} parent=0 // pred_region
    _
  $region45: #{nrt_forward.3} parent=0 // pred_fallthru
    _
  // Predicated region
  $region46: #{nrt_forward.3} parent=0 // pred_check
    _
  $region47: #{nrt_forward.3} parent=0 // pred_check_branch
    %47 = sbr.rel (0) target = $region49
  $region48: #{nrt_forward.3} parent=0 // pred_region
    _
  $region49: #{nrt_forward.3} parent=0 // pred_fallthru
    _
  // Predicated region
  $region50: #{nrt_forward.3} parent=0 // pred_check
    _
  $region51: #{nrt_forward.3} parent=0 // pred_check_branch
    %49 = sbr.rel (0) target = $region53
  $region52: #{nrt_forward.3} parent=0 // pred_region
    _
  $region53: #{nrt_forward.3} parent=0 // pred_fallthru
    _
  // Predicated region
  $region54: #{nrt_forward.3} parent=0 // pred_check
    _
  $region55: #{nrt_forward.3} parent=0 // pred_check_branch
    %51 = sbr.rel (0) target = $region57
  $region56: #{nrt_forward.3} parent=0 // pred_region
    _
  $region57: #{nrt_forward.3} parent=0 // pred_fallthru
    _
  // Predicated region
  $region58: #{nrt_forward.3} parent=0 // pred_check
    _
  $region59: #{nrt_forward.3} parent=0 // pred_check_branch
    %53 = sbr.rel (0) target = $region61
  $region60: #{nrt_forward.3} parent=0 // pred_region
    _
  $region61: #{nrt_forward.3} parent=0 // pred_fallthru
    _
  %v54 = vld [vmem:[%s0] sm:$0xff]
  %v55 = vld [vmem:[%s1] sm:$0xff]
  %v56 = vld [vmem:[%s1 + $0x8] sm:$0xff]
  %v57 = vld [vmem:[%s1 + $0x10] sm:$0xff]
  %v58 = vld [vmem:[%s1 + $0x18] sm:$0xff]
  %v59 = vld [vmem:[%s1 + $0x20] sm:$0xff]
  %v60 = vld [vmem:[%s1 + $0x28] sm:$0xff]
  %v61 = vld [vmem:[%s1 + $0x30] sm:$0xff]
  %v62 = vld [vmem:[%s1 + $0x38] sm:$0xff]
  %v63 = vld [vmem:[%s2] sm:$0x1]
  %v65 = vlaneseq
  %v66 = vshrl.u32 %v65, 7
  %v67 = vsub.s32 0, %v66
  %v68 = vrot.slane %v63, %v67
  %vm70 = vcmask 523264
  %v72 = vsel %vm70, %v54, 0
  %74 = vmatprep.subr.mxu0 0.0
  %75 = vmatpush1.msra.mxu0 0.0
  %76 = vmatprep.subr.mxu0 0.0
  %77 = vmatpush1.msra.mxu0 0.0
  %78 = vmatprep.subr.mxu0 0.0
  %79 = vmatpush1.msra.mxu0 0.0
  %80 = vmatprep.subr.mxu0 0.0
  %81 = vmatpush1.msra.mxu0 0.0
  %82 = vmatprep.subr.mxu0 0.0
  %83 = vmatpush1.msra.mxu0 0.0
  %84 = vmatprep.subr.mxu0 0.0
  %85 = vmatpush1.msra.mxu0 0.0
  %86 = vmatprep.subr.mxu0 0.0
  %87 = vmatpush1.msra.mxu0 0.0
  %88 = vmatprep.subr.mxu0 0.0
  %89 = vmatpush1.msra.mxu0 0.0
  %90 = vmatprep.subr.mxu0 0.0
  %91 = vmatpush1.msra.mxu0 %v62
  %92 = vmatprep.subr.mxu0 0.0
  %93 = vmatpush1.msra.mxu0 %v61
  %94 = vmatprep.subr.mxu0 0.0
  %95 = vmatpush1.msra.mxu0 %v60
  %96 = vmatprep.subr.mxu0 0.0
  %97 = vmatpush1.msra.mxu0 %v59
  %98 = vmatprep.subr.mxu0 0.0
  %99 = vmatpush1.msra.mxu0 %v58
  %100 = vmatprep.subr.mxu0 0.0
  %101 = vmatpush1.msra.mxu0 %v57
  %102 = vmatprep.subr.mxu0 0.0
  %103 = vmatpush1.msra.mxu0 %v56
  %104 = vmatprep.subr.mxu0 0.0
  %105 = vmatpush1.msra.mxu0 %v55
  %106 = vmatprep.subr.mxu0 0.0
  %107 = vmatpush2.msra.mxu0 0.0
  %108 = vmatprep.subr.mxu0 0.0
  %109 = vmatpush2.msra.mxu0 0.0
  %110 = vmatprep.subr.mxu0 0.0
  %111 = vmatpush2.msra.mxu0 0.0
  %112 = vmatprep.subr.mxu0 0.0
  %113 = vmatpush2.msra.mxu0 0.0
  %114 = vmatprep.subr.mxu0 0.0
  %115 = vmatpush2.msra.mxu0 0.0
  %116 = vmatprep.subr.mxu0 0.0
  %117 = vmatpush2.msra.mxu0 0.0
  %118 = vmatprep.subr.mxu0 0.0
  %119 = vmatpush2.msra.mxu0 0.0
  %120 = vmatprep.subr.mxu0 0.0
  %121 = vmatpush2.msra.mxu0 0.0
  %122 = vmatprep.subr.mxu0 0.0
  %123 = vmatpush2.msra.mxu0 0.0
  %124 = vmatprep.subr.mxu0 0.0
  %125 = vmatpush2.msra.mxu0 0.0
  %126 = vmatprep.subr.mxu0 0.0
  %127 = vmatpush2.msra.mxu0 0.0
  %128 = vmatprep.subr.mxu0 0.0
  %129 = vmatpush2.msra.mxu0 0.0
  %130 = vmatprep.subr.mxu0 0.0
  %131 = vmatpush2.msra.mxu0 0.0
  %132 = vmatprep.subr.mxu0 0.0
  %133 = vmatpush2.msra.mxu0 0.0
  %134 = vmatprep.subr.mxu0 0.0
  %135 = vmatpush2.msra.mxu0 0.0
  %136 = vmatprep.subr.mxu0 0.0
  %137 = vmatpush2.msra.mxu0 0.0
  %138 = vmatprep.mubr.f32.mxu0 0.0
  %139 = vmatmul.mubr.f32.gmra.mxu0 %v72
  %v140 = vpop.f32.mrf.mxu0
  %v141 = vadd.f32 %v68, %v140
  %v142 = vpop.f32.mrf.mxu0
  %143 = vdwg.mxu0
  %v144 = vxor.u32 %v141, 2147483648
  %v145 = vmul.f32 %v144, 1.442695
  %v146 = vpow.pop %v145
  %v147 = vadd.f32 %v146, 1.0
  %v148 = vrcp.pop %v147
  %v149 = vmul.f32 1.0, %v148
  %v150 = vld [vmem:[%s3] sm:$0xff]
  %v151 = vld [vmem:[%s3 + $0x8] sm:$0xff]
  %v152 = vld [vmem:[%s3 + $0x10] sm:$0xff]
  %v153 = vld [vmem:[%s3 + $0x18] sm:$0xff]
  %v154 = vld [vmem:[%s4] sm:$0x1]
  %v156 = vlaneseq
  %v157 = vshrl.u32 %v156, 7
  %v158 = vsub.s32 0, %v157
  %v159 = vrot.slane %v154, %v158
  %vm161 = vcmask 261120
  %v163 = vsel %vm161, %v149, 0
  %165 = vmatprep.subr.mxu0 0.0
  %166 = vmatpush1.msra.mxu0 0.0
  %167 = vmatprep.subr.mxu0 0.0
  %168 = vmatpush1.msra.mxu0 0.0
  %169 = vmatprep.subr.mxu0 0.0
  %170 = vmatpush1.msra.mxu0 0.0
  %171 = vmatprep.subr.mxu0 0.0
  %172 = vmatpush1.msra.mxu0 0.0
  %173 = vmatprep.subr.mxu0 0.0
  %174 = vmatpush1.msra.mxu0 0.0
  %175 = vmatprep.subr.mxu0 0.0
  %176 = vmatpush1.msra.mxu0 0.0
  %177 = vmatprep.subr.mxu0 0.0
  %178 = vmatpush1.msra.mxu0 0.0
  %179 = vmatprep.subr.mxu0 0.0
  %180 = vmatpush1.msra.mxu0 0.0
  %181 = vmatprep.subr.mxu0 0.0
  %182 = vmatpush1.msra.mxu0 0.0
  %183 = vmatprep.subr.mxu0 0.0
  %184 = vmatpush1.msra.mxu0 0.0
  %185 = vmatprep.subr.mxu0 0.0
  %186 = vmatpush1.msra.mxu0 0.0
  %187 = vmatprep.subr.mxu0 0.0
  %188 = vmatpush1.msra.mxu0 0.0
  %189 = vmatprep.subr.mxu0 0.0
  %190 = vmatpush1.msra.mxu0 %v153
  %191 = vmatprep.subr.mxu0 0.0
  %192 = vmatpush1.msra.mxu0 %v152
  %193 = vmatprep.subr.mxu0 0.0
  %194 = vmatpush1.msra.mxu0 %v151
  %195 = vmatprep.subr.mxu0 0.0
  %196 = vmatpush1.msra.mxu0 %v150
  %197 = vmatprep.subr.mxu0 0.0
  %198 = vmatpush2.msra.mxu0 0.0
  %199 = vmatprep.subr.mxu0 0.0
  %200 = vmatpush2.msra.mxu0 0.0
  %201 = vmatprep.subr.mxu0 0.0
  %202 = vmatpush2.msra.mxu0 0.0
  %203 = vmatprep.subr.mxu0 0.0
  %204 = vmatpush2.msra.mxu0 0.0
  %205 = vmatprep.subr.mxu0 0.0
  %206 = vmatpush2.msra.mxu0 0.0
  %207 = vmatprep.subr.mxu0 0.0
  %208 = vmatpush2.msra.mxu0 0.0
  %209 = vmatprep.subr.mxu0 0.0
  %210 = vmatpush2.msra.mxu0 0.0
  %211 = vmatprep.subr.mxu0 0.0
  %212 = vmatpush2.msra.mxu0 0.0
  %213 = vmatprep.subr.mxu0 0.0
  %214 = vmatpush2.msra.mxu0 0.0
  %215 = vmatprep.subr.mxu0 0.0
  %216 = vmatpush2.msra.mxu0 0.0
  %217 = vmatprep.subr.mxu0 0.0
  %218 = vmatpush2.msra.mxu0 0.0
  %219 = vmatprep.subr.mxu0 0.0
  %220 = vmatpush2.msra.mxu0 0.0
  %221 = vmatprep.subr.mxu0 0.0
  %222 = vmatpush2.msra.mxu0 0.0
  %223 = vmatprep.subr.mxu0 0.0
  %224 = vmatpush2.msra.mxu0 0.0
  %225 = vmatprep.subr.mxu0 0.0
  %226 = vmatpush2.msra.mxu0 0.0
  %227 = vmatprep.subr.mxu0 0.0
  %228 = vmatpush2.msra.mxu0 0.0
  %229 = vmatprep.mubr.f32.mxu0 0.0
  %230 = vmatmul.mubr.f32.gmra.mxu0 %v163
  %v231 = vpop.f32.mrf.mxu0
  %v232 = vadd.f32 %v159, %v231
  %v233 = vpop.f32.mrf.mxu0
  %234 = vdwg.mxu0
  %v235 = vxor.u32 %v232, 2147483648
  %v236 = vmul.f32 %v235, 1.442695
  %v237 = vpow.pop %v236
  %v238 = vadd.f32 %v237, 1.0
  %v239 = vrcp.pop %v238
  %v240 = vmul.f32 1.0, %v239
  %s241 = scalar_lea.vmem %s3, 32
  %v242 = vld [vmem:[%s241] sm:$0xff]
  %v243 = vld [vmem:[%s241 + $0x8] sm:$0xff]
  %v244 = vld [vmem:[%s241 + $0x10] sm:$0xff]
  %v245 = vld [vmem:[%s241 + $0x18] sm:$0xff]
  %s246 = scalar_lea.vmem %s4, 1
  %v247 = vld [vmem:[%s246] sm:$0x1]
  %v249 = vlaneseq
  %v250 = vshrl.u32 %v249, 7
  %v251 = vsub.s32 0, %v250
  %v252 = vrot.slane %v247, %v251
  %v255 = vsel %vm161, %v240, 0
  %257 = vmatprep.subr.mxu0 0.0
  %258 = vmatpush1.msra.mxu0 0.0
  %259 = vmatprep.subr.mxu0 0.0
  %260 = vmatpush1.msra.mxu0 0.0
  %261 = vmatprep.subr.mxu0 0.0
  %262 = vmatpush1.msra.mxu0 0.0
  %263 = vmatprep.subr.mxu0 0.0
  %264 = vmatpush1.msra.mxu0 0.0
  %265 = vmatprep.subr.mxu0 0.0
  %266 = vmatpush1.msra.mxu0 0.0
  %267 = vmatprep.subr.mxu0 0.0
  %268 = vmatpush1.msra.mxu0 0.0
  %269 = vmatprep.subr.mxu0 0.0
  %270 = vmatpush1.msra.mxu0 0.0
  %271 = vmatprep.subr.mxu0 0.0
  %272 = vmatpush1.msra.mxu0 0.0
  %273 = vmatprep.subr.mxu0 0.0
  %274 = vmatpush1.msra.mxu0 0.0
  %275 = vmatprep.subr.mxu0 0.0
  %276 = vmatpush1.msra.mxu0 0.0
  %277 = vmatprep.subr.mxu0 0.0
  %278 = vmatpush1.msra.mxu0 0.0
  %279 = vmatprep.subr.mxu0 0.0
  %280 = vmatpush1.msra.mxu0 0.0
  %281 = vmatprep.subr.mxu0 0.0
  %282 = vmatpush1.msra.mxu0 %v245
  %283 = vmatprep.subr.mxu0 0.0
  %284 = vmatpush1.msra.mxu0 %v244
  %285 = vmatprep.subr.mxu0 0.0
  %286 = vmatpush1.msra.mxu0 %v243
  %287 = vmatprep.subr.mxu0 0.0
  %288 = vmatpush1.msra.mxu0 %v242
  %289 = vmatprep.subr.mxu0 0.0
  %290 = vmatpush2.msra.mxu0 0.0
  %291 = vmatprep.subr.mxu0 0.0
  %292 = vmatpush2.msra.mxu0 0.0
  %293 = vmatprep.subr.mxu0 0.0
  %294 = vmatpush2.msra.mxu0 0.0
  %295 = vmatprep.subr.mxu0 0.0
  %296 = vmatpush2.msra.mxu0 0.0
  %297 = vmatprep.subr.mxu0 0.0
  %298 = vmatpush2.msra.mxu0 0.0
  %299 = vmatprep.subr.mxu0 0.0
  %300 = vmatpush2.msra.mxu0 0.0
  %301 = vmatprep.subr.mxu0 0.0
  %302 = vmatpush2.msra.mxu0 0.0
  %303 = vmatprep.subr.mxu0 0.0
  %304 = vmatpush2.msra.mxu0 0.0
  %305 = vmatprep.subr.mxu0 0.0
  %306 = vmatpush2.msra.mxu0 0.0
  %307 = vmatprep.subr.mxu0 0.0
  %308 = vmatpush2.msra.mxu0 0.0
  %309 = vmatprep.subr.mxu0 0.0
  %310 = vmatpush2.msra.mxu0 0.0
  %311 = vmatprep.subr.mxu0 0.0
  %312 = vmatpush2.msra.mxu0 0.0
  %313 = vmatprep.subr.mxu0 0.0
  %314 = vmatpush2.msra.mxu0 0.0
  %315 = vmatprep.subr.mxu0 0.0
  %316 = vmatpush2.msra.mxu0 0.0
  %317 = vmatprep.subr.mxu0 0.0
  %318 = vmatpush2.msra.mxu0 0.0
  %319 = vmatprep.subr.mxu0 0.0
  %320 = vmatpush2.msra.mxu0 0.0
  %321 = vmatprep.mubr.f32.mxu0 0.0
  %322 = vmatmul.mubr.f32.gmra.mxu0 %v255
  %v323 = vpop.f32.mrf.mxu0
  %v324 = vadd.f32 %v252, %v323
  %v325 = vpop.f32.mrf.mxu0
  %326 = vdwg.mxu0
  %v327 = vxor.u32 %v324, 2147483648
  %v328 = vmul.f32 %v327, 1.442695
  %v329 = vpow.pop %v328
  %v330 = vadd.f32 %v329, 1.0
  %v331 = vrcp.pop %v330
  %v332 = vmul.f32 1.0, %v331
  %s333 = scalar_lea.vmem %s3, 64
  %v334 = vld [vmem:[%s333] sm:$0xff]
  %v335 = vld [vmem:[%s333 + $0x8] sm:$0xff]
  %v336 = vld [vmem:[%s333 + $0x10] sm:$0xff]
  %v337 = vld [vmem:[%s333 + $0x18] sm:$0xff]
  %s338 = scalar_lea.vmem %s4, 2
  %v339 = vld [vmem:[%s338] sm:$0x1]
  %v341 = vlaneseq
  %v342 = vshrl.u32 %v341, 7
  %v343 = vsub.s32 0, %v342
  %v344 = vrot.slane %v339, %v343
  %v347 = vsel %vm161, %v332, 0
  %349 = vmatprep.subr.mxu0 0.0
  %350 = vmatpush1.msra.mxu0 0.0
  %351 = vmatprep.subr.mxu0 0.0
  %352 = vmatpush1.msra.mxu0 0.0
  %353 = vmatprep.subr.mxu0 0.0
  %354 = vmatpush1.msra.mxu0 0.0
  %355 = vmatprep.subr.mxu0 0.0
  %356 = vmatpush1.msra.mxu0 0.0
  %357 = vmatprep.subr.mxu0 0.0
  %358 = vmatpush1.msra.mxu0 0.0
  %359 = vmatprep.subr.mxu0 0.0
  %360 = vmatpush1.msra.mxu0 0.0
  %361 = vmatprep.subr.mxu0 0.0
  %362 = vmatpush1.msra.mxu0 0.0
  %363 = vmatprep.subr.mxu0 0.0
  %364 = vmatpush1.msra.mxu0 0.0
  %365 = vmatprep.subr.mxu0 0.0
  %366 = vmatpush1.msra.mxu0 0.0
  %367 = vmatprep.subr.mxu0 0.0
  %368 = vmatpush1.msra.mxu0 0.0
  %369 = vmatprep.subr.mxu0 0.0
  %370 = vmatpush1.msra.mxu0 0.0
  %371 = vmatprep.subr.mxu0 0.0
  %372 = vmatpush1.msra.mxu0 0.0
  %373 = vmatprep.subr.mxu0 0.0
  %374 = vmatpush1.msra.mxu0 %v337
  %375 = vmatprep.subr.mxu0 0.0
  %376 = vmatpush1.msra.mxu0 %v336
  %377 = vmatprep.subr.mxu0 0.0
  %378 = vmatpush1.msra.mxu0 %v335
  %379 = vmatprep.subr.mxu0 0.0
  %380 = vmatpush1.msra.mxu0 %v334
  %381 = vmatprep.subr.mxu0 0.0
  %382 = vmatpush2.msra.mxu0 0.0
  %383 = vmatprep.subr.mxu0 0.0
  %384 = vmatpush2.msra.mxu0 0.0
  %385 = vmatprep.subr.mxu0 0.0
  %386 = vmatpush2.msra.mxu0 0.0
  %387 = vmatprep.subr.mxu0 0.0
  %388 = vmatpush2.msra.mxu0 0.0
  %389 = vmatprep.subr.mxu0 0.0
  %390 = vmatpush2.msra.mxu0 0.0
  %391 = vmatprep.subr.mxu0 0.0
  %392 = vmatpush2.msra.mxu0 0.0
  %393 = vmatprep.subr.mxu0 0.0
  %394 = vmatpush2.msra.mxu0 0.0
  %395 = vmatprep.subr.mxu0 0.0
  %396 = vmatpush2.msra.mxu0 0.0
  %397 = vmatprep.subr.mxu0 0.0
  %398 = vmatpush2.msra.mxu0 0.0
  %399 = vmatprep.subr.mxu0 0.0
  %400 = vmatpush2.msra.mxu0 0.0
  %401 = vmatprep.subr.mxu0 0.0
  %402 = vmatpush2.msra.mxu0 0.0
  %403 = vmatprep.subr.mxu0 0.0
  %404 = vmatpush2.msra.mxu0 0.0
  %405 = vmatprep.subr.mxu0 0.0
  %406 = vmatpush2.msra.mxu0 0.0
  %407 = vmatprep.subr.mxu0 0.0
  %408 = vmatpush2.msra.mxu0 0.0
  %409 = vmatprep.subr.mxu0 0.0
  %410 = vmatpush2.msra.mxu0 0.0
  %411 = vmatprep.subr.mxu0 0.0
  %412 = vmatpush2.msra.mxu0 0.0
  %413 = vmatprep.mubr.f32.mxu0 0.0
  %414 = vmatmul.mubr.f32.gmra.mxu0 %v347
  %v415 = vpop.f32.mrf.mxu0
  %v416 = vadd.f32 %v344, %v415
  %v417 = vpop.f32.mrf.mxu0
  %418 = vdwg.mxu0
  %v419 = vxor.u32 %v416, 2147483648
  %v420 = vmul.f32 %v419, 1.442695
  %v421 = vpow.pop %v420
  %v422 = vadd.f32 %v421, 1.0
  %v423 = vrcp.pop %v422
  %v424 = vmul.f32 1.0, %v423
  %s425 = scalar_lea.vmem %s3, 96
  %v426 = vld [vmem:[%s425] sm:$0xff]
  %v427 = vld [vmem:[%s425 + $0x8] sm:$0xff]
  %v428 = vld [vmem:[%s425 + $0x10] sm:$0xff]
  %v429 = vld [vmem:[%s425 + $0x18] sm:$0xff]
  %s430 = scalar_lea.vmem %s4, 3
  %v431 = vld [vmem:[%s430] sm:$0x1]
  %v433 = vlaneseq
  %v434 = vshrl.u32 %v433, 7
  %v435 = vsub.s32 0, %v434
  %v436 = vrot.slane %v431, %v435
  %v439 = vsel %vm161, %v424, 0
  %441 = vmatprep.subr.mxu0 0.0
  %442 = vmatpush1.msra.mxu0 0.0
  %443 = vmatprep.subr.mxu0 0.0
  %444 = vmatpush1.msra.mxu0 0.0
  %445 = vmatprep.subr.mxu0 0.0
  %446 = vmatpush1.msra.mxu0 0.0
  %447 = vmatprep.subr.mxu0 0.0
  %448 = vmatpush1.msra.mxu0 0.0
  %449 = vmatprep.subr.mxu0 0.0
  %450 = vmatpush1.msra.mxu0 0.0
  %451 = vmatprep.subr.mxu0 0.0
  %452 = vmatpush1.msra.mxu0 0.0
  %453 = vmatprep.subr.mxu0 0.0
  %454 = vmatpush1.msra.mxu0 0.0
  %455 = vmatprep.subr.mxu0 0.0
  %456 = vmatpush1.msra.mxu0 0.0
  %457 = vmatprep.subr.mxu0 0.0
  %458 = vmatpush1.msra.mxu0 0.0
  %459 = vmatprep.subr.mxu0 0.0
  %460 = vmatpush1.msra.mxu0 0.0
  %461 = vmatprep.subr.mxu0 0.0
  %462 = vmatpush1.msra.mxu0 0.0
  %463 = vmatprep.subr.mxu0 0.0
  %464 = vmatpush1.msra.mxu0 0.0
  %465 = vmatprep.subr.mxu0 0.0
  %466 = vmatpush1.msra.mxu0 %v429
  %467 = vmatprep.subr.mxu0 0.0
  %468 = vmatpush1.msra.mxu0 %v428
  %469 = vmatprep.subr.mxu0 0.0
  %470 = vmatpush1.msra.mxu0 %v427
  %471 = vmatprep.subr.mxu0 0.0
  %472 = vmatpush1.msra.mxu0 %v426
  %473 = vmatprep.subr.mxu0 0.0
  %474 = vmatpush2.msra.mxu0 0.0
  %475 = vmatprep.subr.mxu0 0.0
  %476 = vmatpush2.msra.mxu0 0.0
  %477 = vmatprep.subr.mxu0 0.0
  %478 = vmatpush2.msra.mxu0 0.0
  %479 = vmatprep.subr.mxu0 0.0
  %480 = vmatpush2.msra.mxu0 0.0
  %481 = vmatprep.subr.mxu0 0.0
  %482 = vmatpush2.msra.mxu0 0.0
  %483 = vmatprep.subr.mxu0 0.0
  %484 = vmatpush2.msra.mxu0 0.0
  %485 = vmatprep.subr.mxu0 0.0
  %486 = vmatpush2.msra.mxu0 0.0
  %487 = vmatprep.subr.mxu0 0.0
  %488 = vmatpush2.msra.mxu0 0.0
  %489 = vmatprep.subr.mxu0 0.0
  %490 = vmatpush2.msra.mxu0 0.0
  %491 = vmatprep.subr.mxu0 0.0
  %492 = vmatpush2.msra.mxu0 0.0
  %493 = vmatprep.subr.mxu0 0.0
  %494 = vmatpush2.msra.mxu0 0.0
  %495 = vmatprep.subr.mxu0 0.0
  %496 = vmatpush2.msra.mxu0 0.0
  %497 = vmatprep.subr.mxu0 0.0
  %498 = vmatpush2.msra.mxu0 0.0
  %499 = vmatprep.subr.mxu0 0.0
  %500 = vmatpush2.msra.mxu0 0.0
  %501 = vmatprep.subr.mxu0 0.0
  %502 = vmatpush2.msra.mxu0 0.0
  %503 = vmatprep.subr.mxu0 0.0
  %504 = vmatpush2.msra.mxu0 0.0
  %505 = vmatprep.mubr.f32.mxu0 0.0
  %506 = vmatmul.mubr.f32.gmra.mxu0 %v439
  %v507 = vpop.f32.mrf.mxu0
  %v508 = vadd.f32 %v436, %v507
  %v509 = vpop.f32.mrf.mxu0
  %510 = vdwg.mxu0
  %v511 = vxor.u32 %v508, 2147483648
  %v512 = vmul.f32 %v511, 1.442695
  %v513 = vpow.pop %v512
  %v514 = vadd.f32 %v513, 1.0
  %v515 = vrcp.pop %v514
  %v516 = vmul.f32 1.0, %v515
  %v517 = vld [vmem:[%s5] sm:$0x1]
  %v519 = vlaneseq
  %v520 = vshrl.u32 %v519, 7
  %v521 = vsub.s32 0, %v520
  %v522 = vrot.slane %v517, %v521
  %v524 = vmul.f32 %v516, %v522
  %v525 = vsel %vm161, %v524, 0.0
  %526 = vadd.xlane.f32.xlu0 %v525
  %v527 = vpop.xlane.xlu0 %526
  %v528 = vld [vmem:[#allocation3] sm:$0x1]
  %v530 = vlaneseq
  %v531 = vshrl.u32 %v530, 7
  %v532 = vsub.s32 0, %v531
  %v533 = vrot.slane %v528, %v532
  %v535 = vadd.f32 %v527, %v533
  %vm536 = vcmask 7168
  %537 = vst.msk [vmem:[%s15] sm:$0xff] %vm536, %v535
  %v538 = vmax.f32 %v535, 1.0
  %v539 = vmin.f32 %v538, 5.0
  %v540 = vcvt.f32.s32.to.zero.pseudo %v539
  %v541 = vsub.s32 %v540, 1
  %v542 = vld [vmem:[%s7] sm:$0xff]
  %v543 = vld [vmem:[%s7 + $0x8] sm:$0xff]
  %v544 = vld [vmem:[%s7 + $0x10] sm:$0xff]
  %v545 = vld [vmem:[%s7 + $0x18] sm:$0xff]
  %v546 = vld [vmem:[%s7 + $0x20] sm:$0xff]
  %v547 = vld [vmem:[%s7 + $0x28] sm:$0xff]
  %v548 = vld [vmem:[%s7 + $0x30] sm:$0xff]
  %v549 = vld [vmem:[%s7 + $0x38] sm:$0xff]
  %v550 = vld [vmem:[%s9] sm:$0x1]
  %v552 = vlaneseq
  %v553 = vshrl.u32 %v552, 7
  %v554 = vsub.s32 0, %v553
  %v555 = vrot.slane %v550, %v554
  %557 = vmatprep.subr.mxu0 0.0
  %558 = vmatpush1.msra.mxu0 0.0
  %559 = vmatprep.subr.mxu0 0.0
  %560 = vmatpush1.msra.mxu0 0.0
  %561 = vmatprep.subr.mxu0 0.0
  %562 = vmatpush1.msra.mxu0 0.0
  %563 = vmatprep.subr.mxu0 0.0
  %564 = vmatpush1.msra.mxu0 0.0
  %565 = vmatprep.subr.mxu0 0.0
  %566 = vmatpush1.msra.mxu0 0.0
  %567 = vmatprep.subr.mxu0 0.0
  %568 = vmatpush1.msra.mxu0 0.0
  %569 = vmatprep.subr.mxu0 0.0
  %570 = vmatpush1.msra.mxu0 0.0
  %571 = vmatprep.subr.mxu0 0.0
  %572 = vmatpush1.msra.mxu0 0.0
  %573 = vmatprep.subr.mxu0 0.0
  %574 = vmatpush1.msra.mxu0 %v549
  %575 = vmatprep.subr.mxu0 0.0
  %576 = vmatpush1.msra.mxu0 %v548
  %577 = vmatprep.subr.mxu0 0.0
  %578 = vmatpush1.msra.mxu0 %v547
  %579 = vmatprep.subr.mxu0 0.0
  %580 = vmatpush1.msra.mxu0 %v546
  %581 = vmatprep.subr.mxu0 0.0
  %582 = vmatpush1.msra.mxu0 %v545
  %583 = vmatprep.subr.mxu0 0.0
  %584 = vmatpush1.msra.mxu0 %v544
  %585 = vmatprep.subr.mxu0 0.0
  %586 = vmatpush1.msra.mxu0 %v543
  %587 = vmatprep.subr.mxu0 0.0
  %588 = vmatpush1.msra.mxu0 %v542
  %589 = vmatprep.subr.mxu0 0.0
  %590 = vmatpush2.msra.mxu0 0.0
  %591 = vmatprep.subr.mxu0 0.0
  %592 = vmatpush2.msra.mxu0 0.0
  %593 = vmatprep.subr.mxu0 0.0
  %594 = vmatpush2.msra.mxu0 0.0
  %595 = vmatprep.subr.mxu0 0.0
  %596 = vmatpush2.msra.mxu0 0.0
  %597 = vmatprep.subr.mxu0 0.0
  %598 = vmatpush2.msra.mxu0 0.0
  %599 = vmatprep.subr.mxu0 0.0
  %600 = vmatpush2.msra.mxu0 0.0
  %601 = vmatprep.subr.mxu0 0.0
  %602 = vmatpush2.msra.mxu0 0.0
  %603 = vmatprep.subr.mxu0 0.0
  %604 = vmatpush2.msra.mxu0 0.0
  %605 = vmatprep.subr.mxu0 0.0
  %606 = vmatpush2.msra.mxu0 0.0
  %607 = vmatprep.subr.mxu0 0.0
  %608 = vmatpush2.msra.mxu0 0.0
  %609 = vmatprep.subr.mxu0 0.0
  %610 = vmatpush2.msra.mxu0 0.0
  %611 = vmatprep.subr.mxu0 0.0
  %612 = vmatpush2.msra.mxu0 0.0
  %613 = vmatprep.subr.mxu0 0.0
  %614 = vmatpush2.msra.mxu0 0.0
  %615 = vmatprep.subr.mxu0 0.0
  %616 = vmatpush2.msra.mxu0 0.0
  %617 = vmatprep.subr.mxu0 0.0
  %618 = vmatpush2.msra.mxu0 0.0
  %619 = vmatprep.subr.mxu0 0.0
  %620 = vmatpush2.msra.mxu0 0.0
  %621 = vmatprep.mubr.f32.mxu0 0.0
  %622 = vmatmul.mubr.f32.gmra.mxu0 %v72
  %v623 = vpop.f32.mrf.mxu0
  %v624 = vadd.f32 %v555, %v623
  %v625 = vpop.f32.mrf.mxu0
  %626 = vdwg.mxu0
  %vm627 = vcmp.eq.s32.totalorder %v541, 0
  %v628 = vsel %vm627, 1, 0
  %v629 = vcvt.s32.f32 %v628
  %v630 = vld [vmem:[%s8] sm:$0x1]
  %632 = vset.pattern.permute.xlu0 0
  %633 = vperm.xlu0 %632, %v629
  %v634 = vpop.permute.xlu0 %633
  %v636 = vlaneseq
  %v637 = vshrl.u32 %v636, 7
  %v638 = vsub.s32 0, %v637
  %v639 = vrot.slane %v630, %v638
  %v640 = vmul.f32 %v634, %v639
  %v641 = vadd.f32 %v640, 0.0
  %vm642 = vcmp.eq.s32.totalorder %v541, 1
  %v643 = vsel %vm642, 1, 0
  %v644 = vcvt.s32.f32 %v643
  %v645 = vld [vmem:[%s8 + $0x1] sm:$0x1]
  %647 = vset.pattern.permute.xlu0 0
  %648 = vperm.xlu0 %647, %v644
  %v649 = vpop.permute.xlu0 %648
  %v651 = vlaneseq
  %v652 = vshrl.u32 %v651, 7
  %v653 = vsub.s32 0, %v652
  %v654 = vrot.slane %v645, %v653
  %v655 = vmul.f32 %v649, %v654
  %v656 = vadd.f32 %v641, %v655
  %vm657 = vcmp.eq.s32.totalorder %v541, 2
  %v658 = vsel %vm657, 1, 0
  %v659 = vcvt.s32.f32 %v658
  %v660 = vld [vmem:[%s8 + $0x2] sm:$0x1]
  %662 = vset.pattern.permute.xlu0 0
  %663 = vperm.xlu0 %662, %v659
  %v664 = vpop.permute.xlu0 %663
  %v666 = vlaneseq
  %v667 = vshrl.u32 %v666, 7
  %v668 = vsub.s32 0, %v667
  %v669 = vrot.slane %v660, %v668
  %v670 = vmul.f32 %v664, %v669
  %v671 = vadd.f32 %v656, %v670
  %vm672 = vcmp.eq.s32.totalorder %v541, 3
  %v673 = vsel %vm672, 1, 0
  %v674 = vcvt.s32.f32 %v673
  %v675 = vld [vmem:[%s8 + $0x3] sm:$0x1]
  %677 = vset.pattern.permute.xlu0 0
  %678 = vperm.xlu0 %677, %v674
  %v679 = vpop.permute.xlu0 %678
  %v681 = vlaneseq
  %v682 = vshrl.u32 %v681, 7
  %v683 = vsub.s32 0, %v682
  %v684 = vrot.slane %v675, %v683
  %v685 = vmul.f32 %v679, %v684
  %v686 = vadd.f32 %v671, %v685
  %vm687 = vcmp.eq.s32.totalorder %v541, 4
  %v688 = vsel %vm687, 1, 0
  %v689 = vcvt.s32.f32 %v688
  %v690 = vld [vmem:[%s8 + $0x4] sm:$0x1]
  %692 = vset.pattern.permute.xlu0 0
  %693 = vperm.xlu0 %692, %v689
  %v694 = vpop.permute.xlu0 %693
  %v696 = vlaneseq
  %v697 = vshrl.u32 %v696, 7
  %v698 = vsub.s32 0, %v697
  %v699 = vrot.slane %v690, %v698
  %v700 = vmul.f32 %v694, %v699
  %v701 = vadd.f32 %v686, %v700
  %v702 = vadd.f32 %v624, %v701
  %v703 = vtanh.pop %v702
  %v704 = vld [vmem:[%s10] sm:$0xff]
  %v705 = vld [vmem:[%s10 + $0x8] sm:$0xff]
  %v706 = vld [vmem:[%s10 + $0x10] sm:$0xff]
  %v707 = vld [vmem:[%s10 + $0x18] sm:$0xff]
  %v708 = vld [vmem:[%s10 + $0x20] sm:$0xff]
  %v709 = vld [vmem:[%s10 + $0x28] sm:$0xff]
  %v710 = vld [vmem:[%s10 + $0x30] sm:$0xff]
  %v711 = vld [vmem:[%s10 + $0x38] sm:$0xff]
  %v712 = vld [vmem:[%s11] sm:$0xff]
  %v713 = vld [vmem:[%s11 + $0x8] sm:$0xff]
  %v714 = vld [vmem:[%s11 + $0x10] sm:$0xff]
  %v715 = vld [vmem:[%s11 + $0x18] sm:$0xff]
  %v716 = vld [vmem:[%s11 + $0x20] sm:$0xff]
  %v717 = vld [vmem:[%s11 + $0x28] sm:$0xff]
  %v718 = vld [vmem:[%s11 + $0x30] sm:$0xff]
  %v719 = vld [vmem:[%s11 + $0x38] sm:$0xff]
  %v720 = vld [vmem:[%s11 + $0x40] sm:$0xff]
  %v721 = vld [vmem:[%s11 + $0x48] sm:$0xff]
  %v722 = vld [vmem:[%s11 + $0x50] sm:$0xff]
  %v723 = vld [vmem:[%s11 + $0x58] sm:$0xff]
  %v724 = vld [vmem:[%s12] sm:$0x7]
  %v726 = vlaneseq
  %v727 = vshrl.u32 %v726, 7
  %v728 = vsub.s32 0, %v727
  %v729 = vrot.slane %v724, %v728
  %v730 = vlaneseq
  %v731 = vshrl.u32 %v730, 7
  %v732 = vsub.s32 1, %v731
  %v733 = vrot.slane %v724, %v732
  %v734 = vlaneseq
  %v735 = vshrl.u32 %v734, 7
  %v736 = vsub.s32 2, %v735
  %v737 = vrot.slane %v724, %v736
  %v742 = vsel %vm161, %v704, 0
  %v745 = vsel %vm161, %v705, 0
  %v748 = vsel %vm161, %v706, 0
  %v751 = vsel %vm161, %v707, 0
  %v754 = vsel %vm161, %v708, 0
  %v757 = vsel %vm161, %v709, 0
  %v760 = vsel %vm161, %v710, 0
  %v763 = vsel %vm161, %v711, 0
  %765 = vmatprep.subr.mxu0 0.0
  %766 = vmatpush1.msra.mxu0 0.0
  %767 = vmatprep.subr.mxu0 0.0
  %768 = vmatpush1.msra.mxu0 0.0
  %769 = vmatprep.subr.mxu0 0.0
  %770 = vmatpush1.msra.mxu0 0.0
  %771 = vmatprep.subr.mxu0 0.0
  %772 = vmatpush1.msra.mxu0 0.0
  %773 = vmatprep.subr.mxu0 0.0
  %774 = vmatpush1.msra.mxu0 0.0
  %775 = vmatprep.subr.mxu0 0.0
  %776 = vmatpush1.msra.mxu0 0.0
  %777 = vmatprep.subr.mxu0 0.0
  %778 = vmatpush1.msra.mxu0 0.0
  %779 = vmatprep.subr.mxu0 0.0
  %780 = vmatpush1.msra.mxu0 0.0
  %781 = vmatprep.subr.mxu0 0.0
  %782 = vmatpush1.msra.mxu0 0.0
  %783 = vmatprep.subr.mxu0 0.0
  %784 = vmatpush1.msra.mxu0 0.0
  %785 = vmatprep.subr.mxu0 0.0
  %786 = vmatpush1.msra.mxu0 0.0
  %787 = vmatprep.subr.mxu0 0.0
  %788 = vmatpush1.msra.mxu0 0.0
  %789 = vmatprep.subr.mxu0 %v722
  %790 = vmatpush1.msra.mxu0 %v721
  %791 = vmatprep.subr.mxu0 %v719
  %792 = vmatpush1.msra.mxu0 %v718
  %793 = vmatprep.subr.mxu0 %v716
  %794 = vmatpush1.msra.mxu0 %v715
  %795 = vmatprep.subr.mxu0 %v713
  %796 = vmatpush1.msra.mxu0 %v712
  %797 = vmatprep.subr.mxu0 0.0
  %798 = vmatpush2.msra.mxu0 0.0
  %799 = vmatprep.subr.mxu0 0.0
  %800 = vmatpush2.msra.mxu0 0.0
  %801 = vmatprep.subr.mxu0 0.0
  %802 = vmatpush2.msra.mxu0 0.0
  %803 = vmatprep.subr.mxu0 0.0
  %804 = vmatpush2.msra.mxu0 0.0
  %805 = vmatprep.subr.mxu0 0.0
  %806 = vmatpush2.msra.mxu0 0.0
  %807 = vmatprep.subr.mxu0 0.0
  %808 = vmatpush2.msra.mxu0 0.0
  %809 = vmatprep.subr.mxu0 0.0
  %810 = vmatpush2.msra.mxu0 0.0
  %811 = vmatprep.subr.mxu0 0.0
  %812 = vmatpush2.msra.mxu0 0.0
  %813 = vmatprep.subr.mxu0 0.0
  %814 = vmatpush2.msra.mxu0 0.0
  %815 = vmatprep.subr.mxu0 0.0
  %816 = vmatpush2.msra.mxu0 0.0
  %817 = vmatprep.subr.mxu0 0.0
  %818 = vmatpush2.msra.mxu0 0.0
  %819 = vmatprep.subr.mxu0 0.0
  %820 = vmatpush2.msra.mxu0 0.0
  %821 = vmatprep.subr.mxu0 0.0
  %822 = vmatpush2.msra.mxu0 0.0
  %823 = vmatprep.subr.mxu0 0.0
  %824 = vmatpush2.msra.mxu0 0.0
  %825 = vmatprep.subr.mxu0 0.0
  %826 = vmatpush2.msra.mxu0 0.0
  %827 = vmatprep.subr.mxu0 0.0
  %828 = vmatpush2.msra.mxu0 0.0
  %829 = vmatprep.mubr.f32.mxu0 0.0
  %830 = vmatmul.mubr.f32.gmra.mxu0 %v742
  %v831 = vpop.f32.mrf.mxu0
  %v832 = vadd.f32 %v729, %v831
  %v833 = vpop.f32.mrf.mxu0
  %v834 = vadd.f32 %v733, %v833
  %835 = vmatprep.mubr.f32.mxu0 0.0
  %836 = vmatmul.mubr.f32.gmra.mxu0 %v745
  %v837 = vpop.f32.mrf.mxu0
  %v838 = vadd.f32 %v729, %v837
  %v839 = vpop.f32.mrf.mxu0
  %v840 = vadd.f32 %v733, %v839
  %841 = vmatprep.mubr.f32.mxu0 0.0
  %842 = vmatmul.mubr.f32.gmra.mxu0 %v748
  %v843 = vpop.f32.mrf.mxu0
  %v844 = vadd.f32 %v729, %v843
  %v845 = vpop.f32.mrf.mxu0
  %v846 = vadd.f32 %v733, %v845
  %847 = vmatprep.mubr.f32.mxu0 0.0
  %848 = vmatmul.mubr.f32.gmra.mxu0 %v751
  %v849 = vpop.f32.mrf.mxu0
  %v850 = vadd.f32 %v729, %v849
  %v851 = vpop.f32.mrf.mxu0
  %v852 = vadd.f32 %v733, %v851
  %853 = vmatprep.mubr.f32.mxu0 0.0
  %854 = vmatmul.mubr.f32.gmra.mxu0 %v754
  %v855 = vpop.f32.mrf.mxu0
  %v856 = vadd.f32 %v729, %v855
  %v857 = vpop.f32.mrf.mxu0
  %v858 = vadd.f32 %v733, %v857
  %859 = vmatprep.mubr.f32.mxu0 0.0
  %860 = vmatmul.mubr.f32.gmra.mxu0 %v757
  %v861 = vpop.f32.mrf.mxu0
  %v862 = vadd.f32 %v729, %v861
  %v863 = vpop.f32.mrf.mxu0
  %v864 = vadd.f32 %v733, %v863
  %865 = vmatprep.mubr.f32.mxu0 0.0
  %866 = vmatmul.mubr.f32.gmra.mxu0 %v760
  %v867 = vpop.f32.mrf.mxu0
  %v868 = vadd.f32 %v729, %v867
  %v869 = vpop.f32.mrf.mxu0
  %v870 = vadd.f32 %v733, %v869
  %871 = vmatprep.mubr.f32.mxu0 0.0
  %872 = vmatmul.mubr.f32.gmra.mxu0 %v763
  %v873 = vpop.f32.mrf.mxu0
  %v874 = vadd.f32 %v729, %v873
  %v875 = vpop.f32.mrf.mxu0
  %v876 = vadd.f32 %v733, %v875
  %877 = vdwg.mxu0
  %878 = vmatprep.subr.mxu0 0.0
  %879 = vmatpush1.msra.mxu0 0.0
  %880 = vmatprep.subr.mxu0 0.0
  %881 = vmatpush1.msra.mxu0 0.0
  %882 = vmatprep.subr.mxu0 0.0
  %883 = vmatpush1.msra.mxu0 0.0
  %884 = vmatprep.subr.mxu0 0.0
  %885 = vmatpush1.msra.mxu0 0.0
  %886 = vmatprep.subr.mxu0 0.0
  %887 = vmatpush1.msra.mxu0 0.0
  %888 = vmatprep.subr.mxu0 0.0
  %889 = vmatpush1.msra.mxu0 0.0
  %890 = vmatprep.subr.mxu0 0.0
  %891 = vmatpush1.msra.mxu0 0.0
  %892 = vmatprep.subr.mxu0 0.0
  %893 = vmatpush1.msra.mxu0 0.0
  %894 = vmatprep.subr.mxu0 0.0
  %895 = vmatpush1.msra.mxu0 0.0
  %896 = vmatprep.subr.mxu0 0.0
  %897 = vmatpush1.msra.mxu0 0.0
  %898 = vmatprep.subr.mxu0 0.0
  %899 = vmatpush1.msra.mxu0 0.0
  %900 = vmatprep.subr.mxu0 0.0
  %901 = vmatpush1.msra.mxu0 0.0
  %902 = vmatprep.subr.mxu0 0.0
  %903 = vmatpush1.msra.mxu0 %v723
  %904 = vmatprep.subr.mxu0 0.0
  %905 = vmatpush1.msra.mxu0 %v720
  %906 = vmatprep.subr.mxu0 0.0
  %907 = vmatpush1.msra.mxu0 %v717
  %908 = vmatprep.subr.mxu0 0.0
  %909 = vmatpush1.msra.mxu0 %v714
  %910 = vmatprep.subr.mxu0 0.0
  %911 = vmatpush2.msra.mxu0 0.0
  %912 = vmatprep.subr.mxu0 0.0
  %913 = vmatpush2.msra.mxu0 0.0
  %914 = vmatprep.subr.mxu0 0.0
  %915 = vmatpush2.msra.mxu0 0.0
  %916 = vmatprep.subr.mxu0 0.0
  %917 = vmatpush2.msra.mxu0 0.0
  %918 = vmatprep.subr.mxu0 0.0
  %919 = vmatpush2.msra.mxu0 0.0
  %920 = vmatprep.subr.mxu0 0.0
  %921 = vmatpush2.msra.mxu0 0.0
  %922 = vmatprep.subr.mxu0 0.0
  %923 = vmatpush2.msra.mxu0 0.0
  %924 = vmatprep.subr.mxu0 0.0
  %925 = vmatpush2.msra.mxu0 0.0
  %926 = vmatprep.subr.mxu0 0.0
  %927 = vmatpush2.msra.mxu0 0.0
  %928 = vmatprep.subr.mxu0 0.0
  %929 = vmatpush2.msra.mxu0 0.0
  %930 = vmatprep.subr.mxu0 0.0
  %931 = vmatpush2.msra.mxu0 0.0
  %932 = vmatprep.subr.mxu0 0.0
  %933 = vmatpush2.msra.mxu0 0.0
  %934 = vmatprep.subr.mxu0 0.0
  %935 = vmatpush2.msra.mxu0 0.0
  %936 = vmatprep.subr.mxu0 0.0
  %937 = vmatpush2.msra.mxu0 0.0
  %938 = vmatprep.subr.mxu0 0.0
  %939 = vmatpush2.msra.mxu0 0.0
  %940 = vmatprep.subr.mxu0 0.0
  %941 = vmatpush2.msra.mxu0 0.0
  %942 = vmatprep.mubr.f32.mxu0 0.0
  %943 = vmatmul.mubr.f32.gmra.mxu0 %v742
  %v944 = vpop.f32.mrf.mxu0
  %v945 = vadd.f32 %v737, %v944
  %v946 = vpop.f32.mrf.mxu0
  %947 = vmatprep.mubr.f32.mxu0 0.0
  %948 = vmatmul.mubr.f32.gmra.mxu0 %v745
  %v949 = vpop.f32.mrf.mxu0
  %v950 = vadd.f32 %v737, %v949
  %v951 = vpop.f32.mrf.mxu0
  %952 = vmatprep.mubr.f32.mxu0 0.0
  %953 = vmatmul.mubr.f32.gmra.mxu0 %v748
  %v954 = vpop.f32.mrf.mxu0
  %v955 = vadd.f32 %v737, %v954
  %v956 = vpop.f32.mrf.mxu0
  %957 = vmatprep.mubr.f32.mxu0 0.0
  %958 = vmatmul.mubr.f32.gmra.mxu0 %v751
  %v959 = vpop.f32.mrf.mxu0
  %v960 = vadd.f32 %v737, %v959
  %v961 = vpop.f32.mrf.mxu0
  %962 = vmatprep.mubr.f32.mxu0 0.0
  %963 = vmatmul.mubr.f32.gmra.mxu0 %v754
  %v964 = vpop.f32.mrf.mxu0
  %v965 = vadd.f32 %v737, %v964
  %v966 = vpop.f32.mrf.mxu0
  %967 = vmatprep.mubr.f32.mxu0 0.0
  %968 = vmatmul.mubr.f32.gmra.mxu0 %v757
  %v969 = vpop.f32.mrf.mxu0
  %v970 = vadd.f32 %v737, %v969
  %v971 = vpop.f32.mrf.mxu0
  %972 = vmatprep.mubr.f32.mxu0 0.0
  %973 = vmatmul.mubr.f32.gmra.mxu0 %v760
  %v974 = vpop.f32.mrf.mxu0
  %v975 = vadd.f32 %v737, %v974
  %v976 = vpop.f32.mrf.mxu0
  %977 = vmatprep.mubr.f32.mxu0 0.0
  %978 = vmatmul.mubr.f32.gmra.mxu0 %v763
  %v979 = vpop.f32.mrf.mxu0
  %v980 = vadd.f32 %v737, %v979
  %v981 = vpop.f32.mrf.mxu0
  %982 = vdwg.mxu0
  %983 = vst [vmem:[#allocation2] sm:$0xff] %v832
  %984 = vst [vmem:[#allocation2 + $0x8] sm:$0xff] %v834
  %985 = vst [vmem:[#allocation2 + $0x10] sm:$0xff] %v945
  %986 = vst [vmem:[#allocation2 + $0x18] sm:$0xff] %v838
  %987 = vst [vmem:[#allocation2 + $0x20] sm:$0xff] %v840
  %988 = vst [vmem:[#allocation2 + $0x28] sm:$0xff] %v950
  %989 = vst [vmem:[#allocation2 + $0x30] sm:$0xff] %v844
  %990 = vst [vmem:[#allocation2 + $0x38] sm:$0xff] %v846
  %991 = vst [vmem:[#allocation2 + $0x40] sm:$0xff] %v955
  %992 = vst [vmem:[#allocation2 + $0x48] sm:$0xff] %v850
  %993 = vst [vmem:[#allocation2 + $0x50] sm:$0xff] %v852
  %994 = vst [vmem:[#allocation2 + $0x58] sm:$0xff] %v960
  %995 = vst [vmem:[#allocation2 + $0x60] sm:$0xff] %v856
  %996 = vst [vmem:[#allocation2 + $0x68] sm:$0xff] %v858
  %997 = vst [vmem:[#allocation2 + $0x70] sm:$0xff] %v965
  %998 = vst [vmem:[#allocation2 + $0x78] sm:$0xff] %v862
  %999 = vst [vmem:[#allocation2 + $0x80] sm:$0xff] %v864
  %1000 = vst [vmem:[#allocation2 + $0x88] sm:$0xff] %v970
  %1001 = vst [vmem:[#allocation2 + $0x90] sm:$0xff] %v868
  %1002 = vst [vmem:[#allocation2 + $0x98] sm:$0xff] %v870
  %1003 = vst [vmem:[#allocation2 + $0xa0] sm:$0xff] %v975
  %1004 = vst [vmem:[#allocation2 + $0xa8] sm:$0xff] %v874
  %1005 = vst [vmem:[#allocation2 + $0xb0] sm:$0xff] %v876
  %1006 = vst [vmem:[#allocation2 + $0xb8] sm:$0xff] %v980
  %v1007 = vld [vmem:[%s13] sm:$0xff]
  %v1008 = vld [vmem:[%s13 + $0x8] sm:$0xff]
  %v1009 = vld [vmem:[%s13 + $0x10] sm:$0xff]
  %v1010 = vld [vmem:[%s13 + $0x18] sm:$0xff]
  %v1011 = vld [vmem:[%s13 + $0x20] sm:$0xff]
  %v1012 = vld [vmem:[%s13 + $0x28] sm:$0xff]
  %v1013 = vld [vmem:[%s13 + $0x30] sm:$0xff]
  %v1014 = vld [vmem:[%s13 + $0x38] sm:$0xff]
  %v1015 = vld [vmem:[%s13 + $0x40] sm:$0xff]
  %v1016 = vld [vmem:[%s13 + $0x48] sm:$0xff]
  %v1017 = vld [vmem:[%s13 + $0x50] sm:$0xff]
  %v1018 = vld [vmem:[%s13 + $0x58] sm:$0xff]
  %v1019 = vld [vmem:[%s13 + $0x60] sm:$0xff]
  %v1020 = vld [vmem:[%s13 + $0x68] sm:$0xff]
  %v1021 = vld [vmem:[%s13 + $0x70] sm:$0xff]
  %v1022 = vld [vmem:[%s13 + $0x78] sm:$0xff]
  %v1023 = vld [vmem:[%s13 + $0x80] sm:$0xff]
  %v1024 = vld [vmem:[%s13 + $0x88] sm:$0xff]
  %v1025 = vld [vmem:[%s13 + $0x90] sm:$0xff]
  %v1026 = vld [vmem:[%s13 + $0x98] sm:$0xff]
  %v1027 = vld [vmem:[%s13 + $0xa0] sm:$0xff]
  %v1028 = vld [vmem:[%s13 + $0xa8] sm:$0xff]
  %v1029 = vld [vmem:[%s13 + $0xb0] sm:$0xff]
  %v1030 = vld [vmem:[%s13 + $0xb8] sm:$0xff]
  %v1031 = vld [vmem:[%s13 + $0xc0] sm:$0xff]
  %v1032 = vld [vmem:[%s13 + $0xc8] sm:$0xff]
  %v1033 = vld [vmem:[%s13 + $0xd0] sm:$0xff]
  %v1034 = vld [vmem:[%s13 + $0xd8] sm:$0xff]
  %v1035 = vld [vmem:[%s13 + $0xe0] sm:$0xff]
  %v1036 = vld [vmem:[%s13 + $0xe8] sm:$0xff]
  %v1037 = vld [vmem:[%s13 + $0xf0] sm:$0xff]
  %v1038 = vld [vmem:[%s13 + $0xf8] sm:$0xff]
  %v1039 = vld [vmem:[%s13 + $0x100] sm:$0xff]
  %v1040 = vld [vmem:[%s13 + $0x108] sm:$0xff]
  %v1041 = vld [vmem:[%s13 + $0x110] sm:$0xff]
  %v1042 = vld [vmem:[%s13 + $0x118] sm:$0xff]
  %v1043 = vld [vmem:[%s13 + $0x120] sm:$0xff]
  %v1044 = vld [vmem:[%s13 + $0x128] sm:$0xff]
  %v1045 = vld [vmem:[%s13 + $0x130] sm:$0xff]
  %v1046 = vld [vmem:[%s13 + $0x138] sm:$0xff]
  %v1047 = vld [vmem:[%s13 + $0x140] sm:$0xff]
  %v1048 = vld [vmem:[%s13 + $0x148] sm:$0xff]
  %v1049 = vld [vmem:[%s13 + $0x150] sm:$0xff]
  %v1050 = vld [vmem:[%s13 + $0x158] sm:$0xff]
  %v1051 = vld [vmem:[%s13 + $0x160] sm:$0xff]
  %v1052 = vld [vmem:[%s13 + $0x168] sm:$0xff]
  %v1053 = vld [vmem:[%s13 + $0x170] sm:$0xff]
  %v1054 = vld [vmem:[%s13 + $0x178] sm:$0xff]
  %v1055 = vld [vmem:[%s14] sm:$0x7]
  %s1056 = smul.u32 0, 3
  %s1057 = smul.addr %s1056, 8
  %s1058 = scalar_lea.vmem [#allocation2], %s1057
  %v1059 = vld [vmem:[%s1058] sm:$0xff]
  %v1060 = vld [vmem:[%s1058 + $0x8] sm:$0xff]
  %v1061 = vld [vmem:[%s1058 + $0x10] sm:$0xff]
  %v1063 = vlaneseq
  %v1064 = vshrl.u32 %v1063, 7
  %v1065 = vsub.s32 0, %v1064
  %v1066 = vrot.slane %v1055, %v1065
  %v1067 = vlaneseq
  %v1068 = vshrl.u32 %v1067, 7
  %v1069 = vsub.s32 1, %v1068
  %v1070 = vrot.slane %v1055, %v1069
  %v1071 = vlaneseq
  %v1072 = vshrl.u32 %v1071, 7
  %v1073 = vsub.s32 2, %v1072
  %v1074 = vrot.slane %v1055, %v1073
  %1078 = vmatprep.subr.mxu0 %v1053
  %1079 = vmatpush1.msra.mxu0 %v1052
  %1080 = vmatprep.subr.mxu0 %v1050
  %1081 = vmatpush1.msra.mxu0 %v1049
  %1082 = vmatprep.subr.mxu0 %v1047
  %1083 = vmatpush1.msra.mxu0 %v1046
  %1084 = vmatprep.subr.mxu0 %v1044
  %1085 = vmatpush1.msra.mxu0 %v1043
  %1086 = vmatprep.subr.mxu0 %v1041
  %1087 = vmatpush1.msra.mxu0 %v1040
  %1088 = vmatprep.subr.mxu0 %v1038
  %1089 = vmatpush1.msra.mxu0 %v1037
  %1090 = vmatprep.subr.mxu0 %v1035
  %1091 = vmatpush1.msra.mxu0 %v1034
  %1092 = vmatprep.subr.mxu0 %v1032
  %1093 = vmatpush1.msra.mxu0 %v1031
  %1094 = vmatprep.subr.mxu0 %v1029
  %1095 = vmatpush1.msra.mxu0 %v1028
  %1096 = vmatprep.subr.mxu0 %v1026
  %1097 = vmatpush1.msra.mxu0 %v1025
  %1098 = vmatprep.subr.mxu0 %v1023
  %1099 = vmatpush1.msra.mxu0 %v1022
  %1100 = vmatprep.subr.mxu0 %v1020
  %1101 = vmatpush1.msra.mxu0 %v1019
  %1102 = vmatprep.subr.mxu0 %v1017
  %1103 = vmatpush1.msra.mxu0 %v1016
  %1104 = vmatprep.subr.mxu0 %v1014
  %1105 = vmatpush1.msra.mxu0 %v1013
  %1106 = vmatprep.subr.mxu0 %v1011
  %1107 = vmatpush1.msra.mxu0 %v1010
  %1108 = vmatprep.subr.mxu0 %v1008
  %1109 = vmatpush1.msra.mxu0 %v1007
  %1110 = vmatprep.subr.mxu0 0.0
  %1111 = vmatpush2.msra.mxu0 0.0
  %1112 = vmatprep.subr.mxu0 0.0
  %1113 = vmatpush2.msra.mxu0 0.0
  %1114 = vmatprep.subr.mxu0 0.0
  %1115 = vmatpush2.msra.mxu0 0.0
  %1116 = vmatprep.subr.mxu0 0.0
  %1117 = vmatpush2.msra.mxu0 0.0
  %1118 = vmatprep.subr.mxu0 0.0
  %1119 = vmatpush2.msra.mxu0 0.0
  %1120 = vmatprep.subr.mxu0 0.0
  %1121 = vmatpush2.msra.mxu0 0.0
  %1122 = vmatprep.subr.mxu0 0.0
  %1123 = vmatpush2.msra.mxu0 0.0
  %1124 = vmatprep.subr.mxu0 0.0
  %1125 = vmatpush2.msra.mxu0 0.0
  %1126 = vmatprep.subr.mxu0 0.0
  %1127 = vmatpush2.msra.mxu0 0.0
  %1128 = vmatprep.subr.mxu0 0.0
  %1129 = vmatpush2.msra.mxu0 0.0
  %1130 = vmatprep.subr.mxu0 0.0
  %1131 = vmatpush2.msra.mxu0 0.0
  %1132 = vmatprep.subr.mxu0 0.0
  %1133 = vmatpush2.msra.mxu0 0.0
  %1134 = vmatprep.subr.mxu0 0.0
  %1135 = vmatpush2.msra.mxu0 0.0
  %1136 = vmatprep.subr.mxu0 0.0
  %1137 = vmatpush2.msra.mxu0 0.0
  %1138 = vmatprep.subr.mxu0 0.0
  %1139 = vmatpush2.msra.mxu0 0.0
  %1140 = vmatprep.subr.mxu0 0.0
  %1141 = vmatpush2.msra.mxu0 0.0
  %1142 = vmatprep.mubr.f32.mxu0 0.0
  %1143 = vmatmul.mubr.f32.gmra.mxu0 %v703
  %v1144 = vpop.f32.mrf.mxu0
  %v1145 = vadd.f32 %v1066, %v1144
  %v1146 = vpop.f32.mrf.mxu0
  %v1147 = vadd.f32 %v1070, %v1146
  %1148 = vdwg.mxu0
  %1149 = vmatprep.subr.mxu0 0.0
  %1150 = vmatpush1.msra.mxu0 %v1054
  %1151 = vmatprep.subr.mxu0 0.0
  %1152 = vmatpush1.msra.mxu0 %v1051
  %1153 = vmatprep.subr.mxu0 0.0
  %1154 = vmatpush1.msra.mxu0 %v1048
  %1155 = vmatprep.subr.mxu0 0.0
  %1156 = vmatpush1.msra.mxu0 %v1045
  %1157 = vmatprep.subr.mxu0 0.0
  %1158 = vmatpush1.msra.mxu0 %v1042
  %1159 = vmatprep.subr.mxu0 0.0
  %1160 = vmatpush1.msra.mxu0 %v1039
  %1161 = vmatprep.subr.mxu0 0.0
  %1162 = vmatpush1.msra.mxu0 %v1036
  %1163 = vmatprep.subr.mxu0 0.0
  %1164 = vmatpush1.msra.mxu0 %v1033
  %1165 = vmatprep.subr.mxu0 0.0
  %1166 = vmatpush1.msra.mxu0 %v1030
  %1167 = vmatprep.subr.mxu0 0.0
  %1168 = vmatpush1.msra.mxu0 %v1027
  %1169 = vmatprep.subr.mxu0 0.0
  %1170 = vmatpush1.msra.mxu0 %v1024
  %1171 = vmatprep.subr.mxu0 0.0
  %1172 = vmatpush1.msra.mxu0 %v1021
  %1173 = vmatprep.subr.mxu0 0.0
  %1174 = vmatpush1.msra.mxu0 %v1018
  %1175 = vmatprep.subr.mxu0 0.0
  %1176 = vmatpush1.msra.mxu0 %v1015
  %1177 = vmatprep.subr.mxu0 0.0
  %1178 = vmatpush1.msra.mxu0 %v1012
  %1179 = vmatprep.subr.mxu0 0.0
  %1180 = vmatpush1.msra.mxu0 %v1009
  %1181 = vmatprep.subr.mxu0 0.0
  %1182 = vmatpush2.msra.mxu0 0.0
  %1183 = vmatprep.subr.mxu0 0.0
  %1184 = vmatpush2.msra.mxu0 0.0
  %1185 = vmatprep.subr.mxu0 0.0
  %1186 = vmatpush2.msra.mxu0 0.0
  %1187 = vmatprep.subr.mxu0 0.0
  %1188 = vmatpush2.msra.mxu0 0.0
  %1189 = vmatprep.subr.mxu0 0.0
  %1190 = vmatpush2.msra.mxu0 0.0
  %1191 = vmatprep.subr.mxu0 0.0
  %1192 = vmatpush2.msra.mxu0 0.0
  %1193 = vmatprep.subr.mxu0 0.0
  %1194 = vmatpush2.msra.mxu0 0.0
  %1195 = vmatprep.subr.mxu0 0.0
  %1196 = vmatpush2.msra.mxu0 0.0
  %1197 = vmatprep.subr.mxu0 0.0
  %1198 = vmatpush2.msra.mxu0 0.0
  %1199 = vmatprep.subr.mxu0 0.0
  %1200 = vmatpush2.msra.mxu0 0.0
  %1201 = vmatprep.subr.mxu0 0.0
  %1202 = vmatpush2.msra.mxu0 0.0
  %1203 = vmatprep.subr.mxu0 0.0
  %1204 = vmatpush2.msra.mxu0 0.0
  %1205 = vmatprep.subr.mxu0 0.0
  %1206 = vmatpush2.msra.mxu0 0.0
  %1207 = vmatprep.subr.mxu0 0.0
  %1208 = vmatpush2.msra.mxu0 0.0
  %1209 = vmatprep.subr.mxu0 0.0
  %1210 = vmatpush2.msra.mxu0 0.0
  %1211 = vmatprep.subr.mxu0 0.0
  %1212 = vmatpush2.msra.mxu0 0.0
  %1213 = vmatprep.mubr.f32.mxu0 0.0
  %1214 = vmatmul.mubr.f32.gmra.mxu0 %v703
  %v1215 = vpop.f32.mrf.mxu0
  %v1216 = vadd.f32 %v1074, %v1215
  %v1217 = vpop.f32.mrf.mxu0
  %1218 = vdwg.mxu0
  %v1219 = vadd.f32 %v1059, %v1145
  %v1220 = vxor.u32 %v1219, 2147483648
  %v1221 = vmul.f32 %v1220, 1.442695
  %v1222 = vpow.pop %v1221
  %v1223 = vadd.f32 %v1222, 1.0
  %v1224 = vrcp.pop %v1223
  %v1225 = vmul.f32 1.0, %v1224
  %v1226 = vadd.f32 %v1060, %v1147
  %v1227 = vxor.u32 %v1226, 2147483648
  %v1228 = vmul.f32 %v1227, 1.442695
  %v1229 = vpow.pop %v1228
  %v1230 = vadd.f32 %v1229, 1.0
  %v1231 = vrcp.pop %v1230
  %v1232 = vmul.f32 1.0, %v1231
  %v1233 = vmul.f32 %v1225, %v1216
  %v1234 = vadd.f32 %v1061, %v1233
  %v1235 = vtanh.pop %v1234
  %v1236 = vsub.f32 1.0, %v1232
  %v1237 = vmul.f32 %v1236, %v1235
  %v1238 = vmul.f32 %v1232, %v703
  %v1239 = vadd.f32 %v1237, %v1238
  %1240 = vst [vmem:[%s16] sm:$0xff] %v1239
  %s1241 = smul.u32 1, 3
  %s1242 = smul.addr %s1241, 8
  %s1243 = scalar_lea.vmem [#allocation2], %s1242
  %v1244 = vld [vmem:[%s1243] sm:$0xff]
  %v1245 = vld [vmem:[%s1243 + $0x8] sm:$0xff]
  %v1246 = vld [vmem:[%s1243 + $0x10] sm:$0xff]
  %1247 = vmatprep.subr.mxu0 %v1053
  %1248 = vmatpush1.msra.mxu0 %v1052
  %1249 = vmatprep.subr.mxu0 %v1050
  %1250 = vmatpush1.msra.mxu0 %v1049
  %1251 = vmatprep.subr.mxu0 %v1047
  %1252 = vmatpush1.msra.mxu0 %v1046
  %1253 = vmatprep.subr.mxu0 %v1044
  %1254 = vmatpush1.msra.mxu0 %v1043
  %1255 = vmatprep.subr.mxu0 %v1041
  %1256 = vmatpush1.msra.mxu0 %v1040
  %1257 = vmatprep.subr.mxu0 %v1038
  %1258 = vmatpush1.msra.mxu0 %v1037
  %1259 = vmatprep.subr.mxu0 %v1035
  %1260 = vmatpush1.msra.mxu0 %v1034
  %1261 = vmatprep.subr.mxu0 %v1032
  %1262 = vmatpush1.msra.mxu0 %v1031
  %1263 = vmatprep.subr.mxu0 %v1029
  %1264 = vmatpush1.msra.mxu0 %v1028
  %1265 = vmatprep.subr.mxu0 %v1026
  %1266 = vmatpush1.msra.mxu0 %v1025
  %1267 = vmatprep.subr.mxu0 %v1023
  %1268 = vmatpush1.msra.mxu0 %v1022
  %1269 = vmatprep.subr.mxu0 %v1020
  %1270 = vmatpush1.msra.mxu0 %v1019
  %1271 = vmatprep.subr.mxu0 %v1017
  %1272 = vmatpush1.msra.mxu0 %v1016
  %1273 = vmatprep.subr.mxu0 %v1014
  %1274 = vmatpush1.msra.mxu0 %v1013
  %1275 = vmatprep.subr.mxu0 %v1011
  %1276 = vmatpush1.msra.mxu0 %v1010
  %1277 = vmatprep.subr.mxu0 %v1008
  %1278 = vmatpush1.msra.mxu0 %v1007
  %1279 = vmatprep.subr.mxu0 0.0
  %1280 = vmatpush2.msra.mxu0 0.0
  %1281 = vmatprep.subr.mxu0 0.0
  %1282 = vmatpush2.msra.mxu0 0.0
  %1283 = vmatprep.subr.mxu0 0.0
  %1284 = vmatpush2.msra.mxu0 0.0
  %1285 = vmatprep.subr.mxu0 0.0
  %1286 = vmatpush2.msra.mxu0 0.0
  %1287 = vmatprep.subr.mxu0 0.0
  %1288 = vmatpush2.msra.mxu0 0.0
  %1289 = vmatprep.subr.mxu0 0.0
  %1290 = vmatpush2.msra.mxu0 0.0
  %1291 = vmatprep.subr.mxu0 0.0
  %1292 = vmatpush2.msra.mxu0 0.0
  %1293 = vmatprep.subr.mxu0 0.0
  %1294 = vmatpush2.msra.mxu0 0.0
  %1295 = vmatprep.subr.mxu0 0.0
  %1296 = vmatpush2.msra.mxu0 0.0
  %1297 = vmatprep.subr.mxu0 0.0
  %1298 = vmatpush2.msra.mxu0 0.0
  %1299 = vmatprep.subr.mxu0 0.0
  %1300 = vmatpush2.msra.mxu0 0.0
  %1301 = vmatprep.subr.mxu0 0.0
  %1302 = vmatpush2.msra.mxu0 0.0
  %1303 = vmatprep.subr.mxu0 0.0
  %1304 = vmatpush2.msra.mxu0 0.0
  %1305 = vmatprep.subr.mxu0 0.0
  %1306 = vmatpush2.msra.mxu0 0.0
  %1307 = vmatprep.subr.mxu0 0.0
  %1308 = vmatpush2.msra.mxu0 0.0
  %1309 = vmatprep.subr.mxu0 0.0
  %1310 = vmatpush2.msra.mxu0 0.0
  %1311 = vmatprep.mubr.f32.mxu0 0.0
  %1312 = vmatmul.mubr.f32.gmra.mxu0 %v1239
  %v1313 = vpop.f32.mrf.mxu0
  %v1314 = vadd.f32 %v1066, %v1313
  %v1315 = vpop.f32.mrf.mxu0
  %v1316 = vadd.f32 %v1070, %v1315
  %1317 = vdwg.mxu0
  %1318 = vmatprep.subr.mxu0 0.0
  %1319 = vmatpush1.msra.mxu0 %v1054
  %1320 = vmatprep.subr.mxu0 0.0
  %1321 = vmatpush1.msra.mxu0 %v1051
  %1322 = vmatprep.subr.mxu0 0.0
  %1323 = vmatpush1.msra.mxu0 %v1048
  %1324 = vmatprep.subr.mxu0 0.0
  %1325 = vmatpush1.msra.mxu0 %v1045
  %1326 = vmatprep.subr.mxu0 0.0
  %1327 = vmatpush1.msra.mxu0 %v1042
  %1328 = vmatprep.subr.mxu0 0.0
  %1329 = vmatpush1.msra.mxu0 %v1039
  %1330 = vmatprep.subr.mxu0 0.0
  %1331 = vmatpush1.msra.mxu0 %v1036
  %1332 = vmatprep.subr.mxu0 0.0
  %1333 = vmatpush1.msra.mxu0 %v1033
  %1334 = vmatprep.subr.mxu0 0.0
  %1335 = vmatpush1.msra.mxu0 %v1030
  %1336 = vmatprep.subr.mxu0 0.0
  %1337 = vmatpush1.msra.mxu0 %v1027
  %1338 = vmatprep.subr.mxu0 0.0
  %1339 = vmatpush1.msra.mxu0 %v1024
  %1340 = vmatprep.subr.mxu0 0.0
  %1341 = vmatpush1.msra.mxu0 %v1021
  %1342 = vmatprep.subr.mxu0 0.0
  %1343 = vmatpush1.msra.mxu0 %v1018
  %1344 = vmatprep.subr.mxu0 0.0
  %1345 = vmatpush1.msra.mxu0 %v1015
  %1346 = vmatprep.subr.mxu0 0.0
  %1347 = vmatpush1.msra.mxu0 %v1012
  %1348 = vmatprep.subr.mxu0 0.0
  %1349 = vmatpush1.msra.mxu0 %v1009
  %1350 = vmatprep.subr.mxu0 0.0
  %1351 = vmatpush2.msra.mxu0 0.0
  %1352 = vmatprep.subr.mxu0 0.0
  %1353 = vmatpush2.msra.mxu0 0.0
  %1354 = vmatprep.subr.mxu0 0.0
  %1355 = vmatpush2.msra.mxu0 0.0
  %1356 = vmatprep.subr.mxu0 0.0
  %1357 = vmatpush2.msra.mxu0 0.0
  %1358 = vmatprep.subr.mxu0 0.0
  %1359 = vmatpush2.msra.mxu0 0.0
  %1360 = vmatprep.subr.mxu0 0.0
  %1361 = vmatpush2.msra.mxu0 0.0
  %1362 = vmatprep.subr.mxu0 0.0
  %1363 = vmatpush2.msra.mxu0 0.0
  %1364 = vmatprep.subr.mxu0 0.0
  %1365 = vmatpush2.msra.mxu0 0.0
  %1366 = vmatprep.subr.mxu0 0.0
  %1367 = vmatpush2.msra.mxu0 0.0
  %1368 = vmatprep.subr.mxu0 0.0
  %1369 = vmatpush2.msra.mxu0 0.0
  %1370 = vmatprep.subr.mxu0 0.0
  %1371 = vmatpush2.msra.mxu0 0.0
  %1372 = vmatprep.subr.mxu0 0.0
  %1373 = vmatpush2.msra.mxu0 0.0
  %1374 = vmatprep.subr.mxu0 0.0
  %1375 = vmatpush2.msra.mxu0 0.0
  %1376 = vmatprep.subr.mxu0 0.0
  %1377 = vmatpush2.msra.mxu0 0.0
  %1378 = vmatprep.subr.mxu0 0.0
  %1379 = vmatpush2.msra.mxu0 0.0
  %1380 = vmatprep.subr.mxu0 0.0
  %1381 = vmatpush2.msra.mxu0 0.0
  %1382 = vmatprep.mubr.f32.mxu0 0.0
  %1383 = vmatmul.mubr.f32.gmra.mxu0 %v1239
  %v1384 = vpop.f32.mrf.mxu0
  %v1385 = vadd.f32 %v1074, %v1384
  %v1386 = vpop.f32.mrf.mxu0
  %1387 = vdwg.mxu0
  %v1388 = vadd.f32 %v1244, %v1314
  %v1389 = vxor.u32 %v1388, 2147483648
  %v1390 = vmul.f32 %v1389, 1.442695
  %v1391 = vpow.pop %v1390
  %v1392 = vadd.f32 %v1391, 1.0
  %v1393 = vrcp.pop %v1392
  %v1394 = vmul.f32 1.0, %v1393
  %v1395 = vadd.f32 %v1245, %v1316
  %v1396 = vxor.u32 %v1395, 2147483648
  %v1397 = vmul.f32 %v1396, 1.442695
  %v1398 = vpow.pop %v1397
  %v1399 = vadd.f32 %v1398, 1.0
  %v1400 = vrcp.pop %v1399
  %v1401 = vmul.f32 1.0, %v1400
  %v1402 = vmul.f32 %v1394, %v1385
  %v1403 = vadd.f32 %v1246, %v1402
  %v1404 = vtanh.pop %v1403
  %v1405 = vsub.f32 1.0, %v1401
  %v1406 = vmul.f32 %v1405, %v1404
  %v1407 = vmul.f32 %v1401, %v1239
  %v1408 = vadd.f32 %v1406, %v1407
  %s1409 = scalar_lea.vmem %s16, 8
  %1410 = vst [vmem:[%s1409] sm:$0xff] %v1408
  %s1411 = smul.u32 2, 3
  %s1412 = smul.addr %s1411, 8
  %s1413 = scalar_lea.vmem [#allocation2], %s1412
  %v1414 = vld [vmem:[%s1413] sm:$0xff]
  %v1415 = vld [vmem:[%s1413 + $0x8] sm:$0xff]
  %v1416 = vld [vmem:[%s1413 + $0x10] sm:$0xff]
  %1417 = vmatprep.subr.mxu0 %v1053
  %1418 = vmatpush1.msra.mxu0 %v1052
  %1419 = vmatprep.subr.mxu0 %v1050
  %1420 = vmatpush1.msra.mxu0 %v1049
  %1421 = vmatprep.subr.mxu0 %v1047
  %1422 = vmatpush1.msra.mxu0 %v1046
  %1423 = vmatprep.subr.mxu0 %v1044
  %1424 = vmatpush1.msra.mxu0 %v1043
  %1425 = vmatprep.subr.mxu0 %v1041
  %1426 = vmatpush1.msra.mxu0 %v1040
  %1427 = vmatprep.subr.mxu0 %v1038
  %1428 = vmatpush1.msra.mxu0 %v1037
  %1429 = vmatprep.subr.mxu0 %v1035
  %1430 = vmatpush1.msra.mxu0 %v1034
  %1431 = vmatprep.subr.mxu0 %v1032
  %1432 = vmatpush1.msra.mxu0 %v1031
  %1433 = vmatprep.subr.mxu0 %v1029
  %1434 = vmatpush1.msra.mxu0 %v1028
  %1435 = vmatprep.subr.mxu0 %v1026
  %1436 = vmatpush1.msra.mxu0 %v1025
  %1437 = vmatprep.subr.mxu0 %v1023
  %1438 = vmatpush1.msra.mxu0 %v1022
  %1439 = vmatprep.subr.mxu0 %v1020
  %1440 = vmatpush1.msra.mxu0 %v1019
  %1441 = vmatprep.subr.mxu0 %v1017
  %1442 = vmatpush1.msra.mxu0 %v1016
  %1443 = vmatprep.subr.mxu0 %v1014
  %1444 = vmatpush1.msra.mxu0 %v1013
  %1445 = vmatprep.subr.mxu0 %v1011
  %1446 = vmatpush1.msra.mxu0 %v1010
  %1447 = vmatprep.subr.mxu0 %v1008
  %1448 = vmatpush1.msra.mxu0 %v1007
  %1449 = vmatprep.subr.mxu0 0.0
  %1450 = vmatpush2.msra.mxu0 0.0
  %1451 = vmatprep.subr.mxu0 0.0
  %1452 = vmatpush2.msra.mxu0 0.0
  %1453 = vmatprep.subr.mxu0 0.0
  %1454 = vmatpush2.msra.mxu0 0.0
  %1455 = vmatprep.subr.mxu0 0.0
  %1456 = vmatpush2.msra.mxu0 0.0
  %1457 = vmatprep.subr.mxu0 0.0
  %1458 = vmatpush2.msra.mxu0 0.0
  %1459 = vmatprep.subr.mxu0 0.0
  %1460 = vmatpush2.msra.mxu0 0.0
  %1461 = vmatprep.subr.mxu0 0.0
  %1462 = vmatpush2.msra.mxu0 0.0
  %1463 = vmatprep.subr.mxu0 0.0
  %1464 = vmatpush2.msra.mxu0 0.0
  %1465 = vmatprep.subr.mxu0 0.0
  %1466 = vmatpush2.msra.mxu0 0.0
  %1467 = vmatprep.subr.mxu0 0.0
  %1468 = vmatpush2.msra.mxu0 0.0
  %1469 = vmatprep.subr.mxu0 0.0
  %1470 = vmatpush2.msra.mxu0 0.0
  %1471 = vmatprep.subr.mxu0 0.0
  %1472 = vmatpush2.msra.mxu0 0.0
  %1473 = vmatprep.subr.mxu0 0.0
  %1474 = vmatpush2.msra.mxu0 0.0
  %1475 = vmatprep.subr.mxu0 0.0
  %1476 = vmatpush2.msra.mxu0 0.0
  %1477 = vmatprep.subr.mxu0 0.0
  %1478 = vmatpush2.msra.mxu0 0.0
  %1479 = vmatprep.subr.mxu0 0.0
  %1480 = vmatpush2.msra.mxu0 0.0
  %1481 = vmatprep.mubr.f32.mxu0 0.0
  %1482 = vmatmul.mubr.f32.gmra.mxu0 %v1408
  %v1483 = vpop.f32.mrf.mxu0
  %v1484 = vadd.f32 %v1066, %v1483
  %v1485 = vpop.f32.mrf.mxu0
  %v1486 = vadd.f32 %v1070, %v1485
  %1487 = vdwg.mxu0
  %1488 = vmatprep.subr.mxu0 0.0
  %1489 = vmatpush1.msra.mxu0 %v1054
  %1490 = vmatprep.subr.mxu0 0.0
  %1491 = vmatpush1.msra.mxu0 %v1051
  %1492 = vmatprep.subr.mxu0 0.0
  %1493 = vmatpush1.msra.mxu0 %v1048
  %1494 = vmatprep.subr.mxu0 0.0
  %1495 = vmatpush1.msra.mxu0 %v1045
  %1496 = vmatprep.subr.mxu0 0.0
  %1497 = vmatpush1.msra.mxu0 %v1042
  %1498 = vmatprep.subr.mxu0 0.0
  %1499 = vmatpush1.msra.mxu0 %v1039
  %1500 = vmatprep.subr.mxu0 0.0
  %1501 = vmatpush1.msra.mxu0 %v1036
  %1502 = vmatprep.subr.mxu0 0.0
  %1503 = vmatpush1.msra.mxu0 %v1033
  %1504 = vmatprep.subr.mxu0 0.0
  %1505 = vmatpush1.msra.mxu0 %v1030
  %1506 = vmatprep.subr.mxu0 0.0
  %1507 = vmatpush1.msra.mxu0 %v1027
  %1508 = vmatprep.subr.mxu0 0.0
  %1509 = vmatpush1.msra.mxu0 %v1024
  %1510 = vmatprep.subr.mxu0 0.0
  %1511 = vmatpush1.msra.mxu0 %v1021
  %1512 = vmatprep.subr.mxu0 0.0
  %1513 = vmatpush1.msra.mxu0 %v1018
  %1514 = vmatprep.subr.mxu0 0.0
  %1515 = vmatpush1.msra.mxu0 %v1015
  %1516 = vmatprep.subr.mxu0 0.0
  %1517 = vmatpush1.msra.mxu0 %v1012
  %1518 = vmatprep.subr.mxu0 0.0
  %1519 = vmatpush1.msra.mxu0 %v1009
  %1520 = vmatprep.subr.mxu0 0.0
  %1521 = vmatpush2.msra.mxu0 0.0
  %1522 = vmatprep.subr.mxu0 0.0
  %1523 = vmatpush2.msra.mxu0 0.0
  %1524 = vmatprep.subr.mxu0 0.0
  %1525 = vmatpush2.msra.mxu0 0.0
  %1526 = vmatprep.subr.mxu0 0.0
  %1527 = vmatpush2.msra.mxu0 0.0
  %1528 = vmatprep.subr.mxu0 0.0
  %1529 = vmatpush2.msra.mxu0 0.0
  %1530 = vmatprep.subr.mxu0 0.0
  %1531 = vmatpush2.msra.mxu0 0.0
  %1532 = vmatprep.subr.mxu0 0.0
  %1533 = vmatpush2.msra.mxu0 0.0
  %1534 = vmatprep.subr.mxu0 0.0
  %1535 = vmatpush2.msra.mxu0 0.0
  %1536 = vmatprep.subr.mxu0 0.0
  %1537 = vmatpush2.msra.mxu0 0.0
  %1538 = vmatprep.subr.mxu0 0.0
  %1539 = vmatpush2.msra.mxu0 0.0
  %1540 = vmatprep.subr.mxu0 0.0
  %1541 = vmatpush2.msra.mxu0 0.0
  %1542 = vmatprep.subr.mxu0 0.0
  %1543 = vmatpush2.msra.mxu0 0.0
  %1544 = vmatprep.subr.mxu0 0.0
  %1545 = vmatpush2.msra.mxu0 0.0
  %1546 = vmatprep.subr.mxu0 0.0
  %1547 = vmatpush2.msra.mxu0 0.0
  %1548 = vmatprep.subr.mxu0 0.0
  %1549 = vmatpush2.msra.mxu0 0.0
  %1550 = vmatprep.subr.mxu0 0.0
  %1551 = vmatpush2.msra.mxu0 0.0
  %1552 = vmatprep.mubr.f32.mxu0 0.0
  %1553 = vmatmul.mubr.f32.gmra.mxu0 %v1408
  %v1554 = vpop.f32.mrf.mxu0
  %v1555 = vadd.f32 %v1074, %v1554
  %v1556 = vpop.f32.mrf.mxu0
  %1557 = vdwg.mxu0
  %v1558 = vadd.f32 %v1414, %v1484
  %v1559 = vxor.u32 %v1558, 2147483648
  %v1560 = vmul.f32 %v1559, 1.442695
  %v1561 = vpow.pop %v1560
  %v1562 = vadd.f32 %v1561, 1.0
  %v1563 = vrcp.pop %v1562
  %v1564 = vmul.f32 1.0, %v1563
  %v1565 = vadd.f32 %v1415, %v1486
  %v1566 = vxor.u32 %v1565, 2147483648
  %v1567 = vmul.f32 %v1566, 1.442695
  %v1568 = vpow.pop %v1567
  %v1569 = vadd.f32 %v1568, 1.0
  %v1570 = vrcp.pop %v1569
  %v1571 = vmul.f32 1.0, %v1570
  %v1572 = vmul.f32 %v1564, %v1555
  %v1573 = vadd.f32 %v1416, %v1572
  %v1574 = vtanh.pop %v1573
  %v1575 = vsub.f32 1.0, %v1571
  %v1576 = vmul.f32 %v1575, %v1574
  %v1577 = vmul.f32 %v1571, %v1408
  %v1578 = vadd.f32 %v1576, %v1577
  %s1579 = scalar_lea.vmem %s16, 16
  %1580 = vst [vmem:[%s1579] sm:$0xff] %v1578
  %s1581 = smul.u32 3, 3
  %s1582 = smul.addr %s1581, 8
  %s1583 = scalar_lea.vmem [#allocation2], %s1582
  %v1584 = vld [vmem:[%s1583] sm:$0xff]
  %v1585 = vld [vmem:[%s1583 + $0x8] sm:$0xff]
  %v1586 = vld [vmem:[%s1583 + $0x10] sm:$0xff]
  %1587 = vmatprep.subr.mxu0 %v1053
  %1588 = vmatpush1.msra.mxu0 %v1052
  %1589 = vmatprep.subr.mxu0 %v1050
  %1590 = vmatpush1.msra.mxu0 %v1049
  %1591 = vmatprep.subr.mxu0 %v1047
  %1592 = vmatpush1.msra.mxu0 %v1046
  %1593 = vmatprep.subr.mxu0 %v1044
  %1594 = vmatpush1.msra.mxu0 %v1043
  %1595 = vmatprep.subr.mxu0 %v1041
  %1596 = vmatpush1.msra.mxu0 %v1040
  %1597 = vmatprep.subr.mxu0 %v1038
  %1598 = vmatpush1.msra.mxu0 %v1037
  %1599 = vmatprep.subr.mxu0 %v1035
  %1600 = vmatpush1.msra.mxu0 %v1034
  %1601 = vmatprep.subr.mxu0 %v1032
  %1602 = vmatpush1.msra.mxu0 %v1031
  %1603 = vmatprep.subr.mxu0 %v1029
  %1604 = vmatpush1.msra.mxu0 %v1028
  %1605 = vmatprep.subr.mxu0 %v1026
  %1606 = vmatpush1.msra.mxu0 %v1025
  %1607 = vmatprep.subr.mxu0 %v1023
  %1608 = vmatpush1.msra.mxu0 %v1022
  %1609 = vmatprep.subr.mxu0 %v1020
  %1610 = vmatpush1.msra.mxu0 %v1019
  %1611 = vmatprep.subr.mxu0 %v1017
  %1612 = vmatpush1.msra.mxu0 %v1016
  %1613 = vmatprep.subr.mxu0 %v1014
  %1614 = vmatpush1.msra.mxu0 %v1013
  %1615 = vmatprep.subr.mxu0 %v1011
  %1616 = vmatpush1.msra.mxu0 %v1010
  %1617 = vmatprep.subr.mxu0 %v1008
  %1618 = vmatpush1.msra.mxu0 %v1007
  %1619 = vmatprep.subr.mxu0 0.0
  %1620 = vmatpush2.msra.mxu0 0.0
  %1621 = vmatprep.subr.mxu0 0.0
  %1622 = vmatpush2.msra.mxu0 0.0
  %1623 = vmatprep.subr.mxu0 0.0
  %1624 = vmatpush2.msra.mxu0 0.0
  %1625 = vmatprep.subr.mxu0 0.0
  %1626 = vmatpush2.msra.mxu0 0.0
  %1627 = vmatprep.subr.mxu0 0.0
  %1628 = vmatpush2.msra.mxu0 0.0
  %1629 = vmatprep.subr.mxu0 0.0
  %1630 = vmatpush2.msra.mxu0 0.0
  %1631 = vmatprep.subr.mxu0 0.0
  %1632 = vmatpush2.msra.mxu0 0.0
  %1633 = vmatprep.subr.mxu0 0.0
  %1634 = vmatpush2.msra.mxu0 0.0
  %1635 = vmatprep.subr.mxu0 0.0
  %1636 = vmatpush2.msra.mxu0 0.0
  %1637 = vmatprep.subr.mxu0 0.0
  %1638 = vmatpush2.msra.mxu0 0.0
  %1639 = vmatprep.subr.mxu0 0.0
  %1640 = vmatpush2.msra.mxu0 0.0
  %1641 = vmatprep.subr.mxu0 0.0
  %1642 = vmatpush2.msra.mxu0 0.0
  %1643 = vmatprep.subr.mxu0 0.0
  %1644 = vmatpush2.msra.mxu0 0.0
  %1645 = vmatprep.subr.mxu0 0.0
  %1646 = vmatpush2.msra.mxu0 0.0
  %1647 = vmatprep.subr.mxu0 0.0
  %1648 = vmatpush2.msra.mxu0 0.0
  %1649 = vmatprep.subr.mxu0 0.0
  %1650 = vmatpush2.msra.mxu0 0.0
  %1651 = vmatprep.mubr.f32.mxu0 0.0
  %1652 = vmatmul.mubr.f32.gmra.mxu0 %v1578
  %v1653 = vpop.f32.mrf.mxu0
  %v1654 = vadd.f32 %v1066, %v1653
  %v1655 = vpop.f32.mrf.mxu0
  %v1656 = vadd.f32 %v1070, %v1655
  %1657 = vdwg.mxu0
  %1658 = vmatprep.subr.mxu0 0.0
  %1659 = vmatpush1.msra.mxu0 %v1054
  %1660 = vmatprep.subr.mxu0 0.0
  %1661 = vmatpush1.msra.mxu0 %v1051
  %1662 = vmatprep.subr.mxu0 0.0
  %1663 = vmatpush1.msra.mxu0 %v1048
  %1664 = vmatprep.subr.mxu0 0.0
  %1665 = vmatpush1.msra.mxu0 %v1045
  %1666 = vmatprep.subr.mxu0 0.0
  %1667 = vmatpush1.msra.mxu0 %v1042
  %1668 = vmatprep.subr.mxu0 0.0
  %1669 = vmatpush1.msra.mxu0 %v1039
  %1670 = vmatprep.subr.mxu0 0.0
  %1671 = vmatpush1.msra.mxu0 %v1036
  %1672 = vmatprep.subr.mxu0 0.0
  %1673 = vmatpush1.msra.mxu0 %v1033
  %1674 = vmatprep.subr.mxu0 0.0
  %1675 = vmatpush1.msra.mxu0 %v1030
  %1676 = vmatprep.subr.mxu0 0.0
  %1677 = vmatpush1.msra.mxu0 %v1027
  %1678 = vmatprep.subr.mxu0 0.0
  %1679 = vmatpush1.msra.mxu0 %v1024
  %1680 = vmatprep.subr.mxu0 0.0
  %1681 = vmatpush1.msra.mxu0 %v1021
  %1682 = vmatprep.subr.mxu0 0.0
  %1683 = vmatpush1.msra.mxu0 %v1018
  %1684 = vmatprep.subr.mxu0 0.0
  %1685 = vmatpush1.msra.mxu0 %v1015
  %1686 = vmatprep.subr.mxu0 0.0
  %1687 = vmatpush1.msra.mxu0 %v1012
  %1688 = vmatprep.subr.mxu0 0.0
  %1689 = vmatpush1.msra.mxu0 %v1009
  %1690 = vmatprep.subr.mxu0 0.0
  %1691 = vmatpush2.msra.mxu0 0.0
  %1692 = vmatprep.subr.mxu0 0.0
  %1693 = vmatpush2.msra.mxu0 0.0
  %1694 = vmatprep.subr.mxu0 0.0
  %1695 = vmatpush2.msra.mxu0 0.0
  %1696 = vmatprep.subr.mxu0 0.0
  %1697 = vmatpush2.msra.mxu0 0.0
  %1698 = vmatprep.subr.mxu0 0.0
  %1699 = vmatpush2.msra.mxu0 0.0
  %1700 = vmatprep.subr.mxu0 0.0
  %1701 = vmatpush2.msra.mxu0 0.0
  %1702 = vmatprep.subr.mxu0 0.0
  %1703 = vmatpush2.msra.mxu0 0.0
  %1704 = vmatprep.subr.mxu0 0.0
  %1705 = vmatpush2.msra.mxu0 0.0
  %1706 = vmatprep.subr.mxu0 0.0
  %1707 = vmatpush2.msra.mxu0 0.0
  %1708 = vmatprep.subr.mxu0 0.0
  %1709 = vmatpush2.msra.mxu0 0.0
  %1710 = vmatprep.subr.mxu0 0.0
  %1711 = vmatpush2.msra.mxu0 0.0
  %1712 = vmatprep.subr.mxu0 0.0
  %1713 = vmatpush2.msra.mxu0 0.0
  %1714 = vmatprep.subr.mxu0 0.0
  %1715 = vmatpush2.msra.mxu0 0.0
  %1716 = vmatprep.subr.mxu0 0.0
  %1717 = vmatpush2.msra.mxu0 0.0
  %1718 = vmatprep.subr.mxu0 0.0
  %1719 = vmatpush2.msra.mxu0 0.0
  %1720 = vmatprep.subr.mxu0 0.0
  %1721 = vmatpush2.msra.mxu0 0.0
  %1722 = vmatprep.mubr.f32.mxu0 0.0
  %1723 = vmatmul.mubr.f32.gmra.mxu0 %v1578
  %v1724 = vpop.f32.mrf.mxu0
  %v1725 = vadd.f32 %v1074, %v1724
  %v1726 = vpop.f32.mrf.mxu0
  %1727 = vdwg.mxu0
  %v1728 = vadd.f32 %v1584, %v1654
  %v1729 = vxor.u32 %v1728, 2147483648
  %v1730 = vmul.f32 %v1729, 1.442695
  %v1731 = vpow.pop %v1730
  %v1732 = vadd.f32 %v1731, 1.0
  %v1733 = vrcp.pop %v1732
  %v1734 = vmul.f32 1.0, %v1733
  %v1735 = vadd.f32 %v1585, %v1656
  %v1736 = vxor.u32 %v1735, 2147483648
  %v1737 = vmul.f32 %v1736, 1.442695
  %v1738 = vpow.pop %v1737
  %v1739 = vadd.f32 %v1738, 1.0
  %v1740 = vrcp.pop %v1739
  %v1741 = vmul.f32 1.0, %v1740
  %v1742 = vmul.f32 %v1734, %v1725
  %v1743 = vadd.f32 %v1586, %v1742
  %v1744 = vtanh.pop %v1743
  %v1745 = vsub.f32 1.0, %v1741
  %v1746 = vmul.f32 %v1745, %v1744
  %v1747 = vmul.f32 %v1741, %v1578
  %v1748 = vadd.f32 %v1746, %v1747
  %s1749 = scalar_lea.vmem %s16, 24
  %1750 = vst [vmem:[%s1749] sm:$0xff] %v1748
  %s1751 = smul.u32 4, 3
  %s1752 = smul.addr %s1751, 8
  %s1753 = scalar_lea.vmem [#allocation2], %s1752
  %v1754 = vld [vmem:[%s1753] sm:$0xff]
  %v1755 = vld [vmem:[%s1753 + $0x8] sm:$0xff]
  %v1756 = vld [vmem:[%s1753 + $0x10] sm:$0xff]
  %1757 = vmatprep.subr.mxu0 %v1053
  %1758 = vmatpush1.msra.mxu0 %v1052
  %1759 = vmatprep.subr.mxu0 %v1050
  %1760 = vmatpush1.msra.mxu0 %v1049
  %1761 = vmatprep.subr.mxu0 %v1047
  %1762 = vmatpush1.msra.mxu0 %v1046
  %1763 = vmatprep.subr.mxu0 %v1044
  %1764 = vmatpush1.msra.mxu0 %v1043
  %1765 = vmatprep.subr.mxu0 %v1041
  %1766 = vmatpush1.msra.mxu0 %v1040
  %1767 = vmatprep.subr.mxu0 %v1038
  %1768 = vmatpush1.msra.mxu0 %v1037
  %1769 = vmatprep.subr.mxu0 %v1035
  %1770 = vmatpush1.msra.mxu0 %v1034
  %1771 = vmatprep.subr.mxu0 %v1032
  %1772 = vmatpush1.msra.mxu0 %v1031
  %1773 = vmatprep.subr.mxu0 %v1029
  %1774 = vmatpush1.msra.mxu0 %v1028
  %1775 = vmatprep.subr.mxu0 %v1026
  %1776 = vmatpush1.msra.mxu0 %v1025
  %1777 = vmatprep.subr.mxu0 %v1023
  %1778 = vmatpush1.msra.mxu0 %v1022
  %1779 = vmatprep.subr.mxu0 %v1020
  %1780 = vmatpush1.msra.mxu0 %v1019
  %1781 = vmatprep.subr.mxu0 %v1017
  %1782 = vmatpush1.msra.mxu0 %v1016
  %1783 = vmatprep.subr.mxu0 %v1014
  %1784 = vmatpush1.msra.mxu0 %v1013
  %1785 = vmatprep.subr.mxu0 %v1011
  %1786 = vmatpush1.msra.mxu0 %v1010
  %1787 = vmatprep.subr.mxu0 %v1008
  %1788 = vmatpush1.msra.mxu0 %v1007
  %1789 = vmatprep.subr.mxu0 0.0
  %1790 = vmatpush2.msra.mxu0 0.0
  %1791 = vmatprep.subr.mxu0 0.0
  %1792 = vmatpush2.msra.mxu0 0.0
  %1793 = vmatprep.subr.mxu0 0.0
  %1794 = vmatpush2.msra.mxu0 0.0
  %1795 = vmatprep.subr.mxu0 0.0
  %1796 = vmatpush2.msra.mxu0 0.0
  %1797 = vmatprep.subr.mxu0 0.0
  %1798 = vmatpush2.msra.mxu0 0.0
  %1799 = vmatprep.subr.mxu0 0.0
  %1800 = vmatpush2.msra.mxu0 0.0
  %1801 = vmatprep.subr.mxu0 0.0
  %1802 = vmatpush2.msra.mxu0 0.0
  %1803 = vmatprep.subr.mxu0 0.0
  %1804 = vmatpush2.msra.mxu0 0.0
  %1805 = vmatprep.subr.mxu0 0.0
  %1806 = vmatpush2.msra.mxu0 0.0
  %1807 = vmatprep.subr.mxu0 0.0
  %1808 = vmatpush2.msra.mxu0 0.0
  %1809 = vmatprep.subr.mxu0 0.0
  %1810 = vmatpush2.msra.mxu0 0.0
  %1811 = vmatprep.subr.mxu0 0.0
  %1812 = vmatpush2.msra.mxu0 0.0
  %1813 = vmatprep.subr.mxu0 0.0
  %1814 = vmatpush2.msra.mxu0 0.0
  %1815 = vmatprep.subr.mxu0 0.0
  %1816 = vmatpush2.msra.mxu0 0.0
  %1817 = vmatprep.subr.mxu0 0.0
  %1818 = vmatpush2.msra.mxu0 0.0
  %1819 = vmatprep.subr.mxu0 0.0
  %1820 = vmatpush2.msra.mxu0 0.0
  %1821 = vmatprep.mubr.f32.mxu0 0.0
  %1822 = vmatmul.mubr.f32.gmra.mxu0 %v1748
  %v1823 = vpop.f32.mrf.mxu0
  %v1824 = vadd.f32 %v1066, %v1823
  %v1825 = vpop.f32.mrf.mxu0
  %v1826 = vadd.f32 %v1070, %v1825
  %1827 = vdwg.mxu0
  %1828 = vmatprep.subr.mxu0 0.0
  %1829 = vmatpush1.msra.mxu0 %v1054
  %1830 = vmatprep.subr.mxu0 0.0
  %1831 = vmatpush1.msra.mxu0 %v1051
  %1832 = vmatprep.subr.mxu0 0.0
  %1833 = vmatpush1.msra.mxu0 %v1048
  %1834 = vmatprep.subr.mxu0 0.0
  %1835 = vmatpush1.msra.mxu0 %v1045
  %1836 = vmatprep.subr.mxu0 0.0
  %1837 = vmatpush1.msra.mxu0 %v1042
  %1838 = vmatprep.subr.mxu0 0.0
  %1839 = vmatpush1.msra.mxu0 %v1039
  %1840 = vmatprep.subr.mxu0 0.0
  %1841 = vmatpush1.msra.mxu0 %v1036
  %1842 = vmatprep.subr.mxu0 0.0
  %1843 = vmatpush1.msra.mxu0 %v1033
  %1844 = vmatprep.subr.mxu0 0.0
  %1845 = vmatpush1.msra.mxu0 %v1030
  %1846 = vmatprep.subr.mxu0 0.0
  %1847 = vmatpush1.msra.mxu0 %v1027
  %1848 = vmatprep.subr.mxu0 0.0
  %1849 = vmatpush1.msra.mxu0 %v1024
  %1850 = vmatprep.subr.mxu0 0.0
  %1851 = vmatpush1.msra.mxu0 %v1021
  %1852 = vmatprep.subr.mxu0 0.0
  %1853 = vmatpush1.msra.mxu0 %v1018
  %1854 = vmatprep.subr.mxu0 0.0
  %1855 = vmatpush1.msra.mxu0 %v1015
  %1856 = vmatprep.subr.mxu0 0.0
  %1857 = vmatpush1.msra.mxu0 %v1012
  %1858 = vmatprep.subr.mxu0 0.0
  %1859 = vmatpush1.msra.mxu0 %v1009
  %1860 = vmatprep.subr.mxu0 0.0
  %1861 = vmatpush2.msra.mxu0 0.0
  %1862 = vmatprep.subr.mxu0 0.0
  %1863 = vmatpush2.msra.mxu0 0.0
  %1864 = vmatprep.subr.mxu0 0.0
  %1865 = vmatpush2.msra.mxu0 0.0
  %1866 = vmatprep.subr.mxu0 0.0
  %1867 = vmatpush2.msra.mxu0 0.0
  %1868 = vmatprep.subr.mxu0 0.0
  %1869 = vmatpush2.msra.mxu0 0.0
  %1870 = vmatprep.subr.mxu0 0.0
  %1871 = vmatpush2.msra.mxu0 0.0
  %1872 = vmatprep.subr.mxu0 0.0
  %1873 = vmatpush2.msra.mxu0 0.0
  %1874 = vmatprep.subr.mxu0 0.0
  %1875 = vmatpush2.msra.mxu0 0.0
  %1876 = vmatprep.subr.mxu0 0.0
  %1877 = vmatpush2.msra.mxu0 0.0
  %1878 = vmatprep.subr.mxu0 0.0
  %1879 = vmatpush2.msra.mxu0 0.0
  %1880 = vmatprep.subr.mxu0 0.0
  %1881 = vmatpush2.msra.mxu0 0.0
  %1882 = vmatprep.subr.mxu0 0.0
  %1883 = vmatpush2.msra.mxu0 0.0
  %1884 = vmatprep.subr.mxu0 0.0
  %1885 = vmatpush2.msra.mxu0 0.0
  %1886 = vmatprep.subr.mxu0 0.0
  %1887 = vmatpush2.msra.mxu0 0.0
  %1888 = vmatprep.subr.mxu0 0.0
  %1889 = vmatpush2.msra.mxu0 0.0
  %1890 = vmatprep.subr.mxu0 0.0
  %1891 = vmatpush2.msra.mxu0 0.0
  %1892 = vmatprep.mubr.f32.mxu0 0.0
  %1893 = vmatmul.mubr.f32.gmra.mxu0 %v1748
  %v1894 = vpop.f32.mrf.mxu0
  %v1895 = vadd.f32 %v1074, %v1894
  %v1896 = vpop.f32.mrf.mxu0
  %1897 = vdwg.mxu0
  %v1898 = vadd.f32 %v1754, %v1824
  %v1899 = vxor.u32 %v1898, 2147483648
  %v1900 = vmul.f32 %v1899, 1.442695
  %v1901 = vpow.pop %v1900
  %v1902 = vadd.f32 %v1901, 1.0
  %v1903 = vrcp.pop %v1902
  %v1904 = vmul.f32 1.0, %v1903
  %v1905 = vadd.f32 %v1755, %v1826
  %v1906 = vxor.u32 %v1905, 2147483648
  %v1907 = vmul.f32 %v1906, 1.442695
  %v1908 = vpow.pop %v1907
  %v1909 = vadd.f32 %v1908, 1.0
  %v1910 = vrcp.pop %v1909
  %v1911 = vmul.f32 1.0, %v1910
  %v1912 = vmul.f32 %v1904, %v1895
  %v1913 = vadd.f32 %v1756, %v1912
  %v1914 = vtanh.pop %v1913
  %v1915 = vsub.f32 1.0, %v1911
  %v1916 = vmul.f32 %v1915, %v1914
  %v1917 = vmul.f32 %v1911, %v1748
  %v1918 = vadd.f32 %v1916, %v1917
  %s1919 = scalar_lea.vmem %s16, 32
  %1920 = vst [vmem:[%s1919] sm:$0xff] %v1918
  %s1921 = smul.u32 5, 3
  %s1922 = smul.addr %s1921, 8
  %s1923 = scalar_lea.vmem [#allocation2], %s1922
  %v1924 = vld [vmem:[%s1923] sm:$0xff]
  %v1925 = vld [vmem:[%s1923 + $0x8] sm:$0xff]
  %v1926 = vld [vmem:[%s1923 + $0x10] sm:$0xff]
  %1927 = vmatprep.subr.mxu0 %v1053
  %1928 = vmatpush1.msra.mxu0 %v1052
  %1929 = vmatprep.subr.mxu0 %v1050
  %1930 = vmatpush1.msra.mxu0 %v1049
  %1931 = vmatprep.subr.mxu0 %v1047
  %1932 = vmatpush1.msra.mxu0 %v1046
  %1933 = vmatprep.subr.mxu0 %v1044
  %1934 = vmatpush1.msra.mxu0 %v1043
  %1935 = vmatprep.subr.mxu0 %v1041
  %1936 = vmatpush1.msra.mxu0 %v1040
  %1937 = vmatprep.subr.mxu0 %v1038
  %1938 = vmatpush1.msra.mxu0 %v1037
  %1939 = vmatprep.subr.mxu0 %v1035
  %1940 = vmatpush1.msra.mxu0 %v1034
  %1941 = vmatprep.subr.mxu0 %v1032
  %1942 = vmatpush1.msra.mxu0 %v1031
  %1943 = vmatprep.subr.mxu0 %v1029
  %1944 = vmatpush1.msra.mxu0 %v1028
  %1945 = vmatprep.subr.mxu0 %v1026
  %1946 = vmatpush1.msra.mxu0 %v1025
  %1947 = vmatprep.subr.mxu0 %v1023
  %1948 = vmatpush1.msra.mxu0 %v1022
  %1949 = vmatprep.subr.mxu0 %v1020
  %1950 = vmatpush1.msra.mxu0 %v1019
  %1951 = vmatprep.subr.mxu0 %v1017
  %1952 = vmatpush1.msra.mxu0 %v1016
  %1953 = vmatprep.subr.mxu0 %v1014
  %1954 = vmatpush1.msra.mxu0 %v1013
  %1955 = vmatprep.subr.mxu0 %v1011
  %1956 = vmatpush1.msra.mxu0 %v1010
  %1957 = vmatprep.subr.mxu0 %v1008
  %1958 = vmatpush1.msra.mxu0 %v1007
  %1959 = vmatprep.subr.mxu0 0.0
  %1960 = vmatpush2.msra.mxu0 0.0
  %1961 = vmatprep.subr.mxu0 0.0
  %1962 = vmatpush2.msra.mxu0 0.0
  %1963 = vmatprep.subr.mxu0 0.0
  %1964 = vmatpush2.msra.mxu0 0.0
  %1965 = vmatprep.subr.mxu0 0.0
  %1966 = vmatpush2.msra.mxu0 0.0
  %1967 = vmatprep.subr.mxu0 0.0
  %1968 = vmatpush2.msra.mxu0 0.0
  %1969 = vmatprep.subr.mxu0 0.0
  %1970 = vmatpush2.msra.mxu0 0.0
  %1971 = vmatprep.subr.mxu0 0.0
  %1972 = vmatpush2.msra.mxu0 0.0
  %1973 = vmatprep.subr.mxu0 0.0
  %1974 = vmatpush2.msra.mxu0 0.0
  %1975 = vmatprep.subr.mxu0 0.0
  %1976 = vmatpush2.msra.mxu0 0.0
  %1977 = vmatprep.subr.mxu0 0.0
  %1978 = vmatpush2.msra.mxu0 0.0
  %1979 = vmatprep.subr.mxu0 0.0
  %1980 = vmatpush2.msra.mxu0 0.0
  %1981 = vmatprep.subr.mxu0 0.0
  %1982 = vmatpush2.msra.mxu0 0.0
  %1983 = vmatprep.subr.mxu0 0.0
  %1984 = vmatpush2.msra.mxu0 0.0
  %1985 = vmatprep.subr.mxu0 0.0
  %1986 = vmatpush2.msra.mxu0 0.0
  %1987 = vmatprep.subr.mxu0 0.0
  %1988 = vmatpush2.msra.mxu0 0.0
  %1989 = vmatprep.subr.mxu0 0.0
  %1990 = vmatpush2.msra.mxu0 0.0
  %1991 = vmatprep.mubr.f32.mxu0 0.0
  %1992 = vmatmul.mubr.f32.gmra.mxu0 %v1918
  %v1993 = vpop.f32.mrf.mxu0
  %v1994 = vadd.f32 %v1066, %v1993
  %v1995 = vpop.f32.mrf.mxu0
  %v1996 = vadd.f32 %v1070, %v1995
  %1997 = vdwg.mxu0
  %1998 = vmatprep.subr.mxu0 0.0
  %1999 = vmatpush1.msra.mxu0 %v1054
  %2000 = vmatprep.subr.mxu0 0.0
  %2001 = vmatpush1.msra.mxu0 %v1051
  %2002 = vmatprep.subr.mxu0 0.0
  %2003 = vmatpush1.msra.mxu0 %v1048
  %2004 = vmatprep.subr.mxu0 0.0
  %2005 = vmatpush1.msra.mxu0 %v1045
  %2006 = vmatprep.subr.mxu0 0.0
  %2007 = vmatpush1.msra.mxu0 %v1042
  %2008 = vmatprep.subr.mxu0 0.0
  %2009 = vmatpush1.msra.mxu0 %v1039
  %2010 = vmatprep.subr.mxu0 0.0
  %2011 = vmatpush1.msra.mxu0 %v1036
  %2012 = vmatprep.subr.mxu0 0.0
  %2013 = vmatpush1.msra.mxu0 %v1033
  %2014 = vmatprep.subr.mxu0 0.0
  %2015 = vmatpush1.msra.mxu0 %v1030
  %2016 = vmatprep.subr.mxu0 0.0
  %2017 = vmatpush1.msra.mxu0 %v1027
  %2018 = vmatprep.subr.mxu0 0.0
  %2019 = vmatpush1.msra.mxu0 %v1024
  %2020 = vmatprep.subr.mxu0 0.0
  %2021 = vmatpush1.msra.mxu0 %v1021
  %2022 = vmatprep.subr.mxu0 0.0
  %2023 = vmatpush1.msra.mxu0 %v1018
  %2024 = vmatprep.subr.mxu0 0.0
  %2025 = vmatpush1.msra.mxu0 %v1015
  %2026 = vmatprep.subr.mxu0 0.0
  %2027 = vmatpush1.msra.mxu0 %v1012
  %2028 = vmatprep.subr.mxu0 0.0
  %2029 = vmatpush1.msra.mxu0 %v1009
  %2030 = vmatprep.subr.mxu0 0.0
  %2031 = vmatpush2.msra.mxu0 0.0
  %2032 = vmatprep.subr.mxu0 0.0
  %2033 = vmatpush2.msra.mxu0 0.0
  %2034 = vmatprep.subr.mxu0 0.0
  %2035 = vmatpush2.msra.mxu0 0.0
  %2036 = vmatprep.subr.mxu0 0.0
  %2037 = vmatpush2.msra.mxu0 0.0
  %2038 = vmatprep.subr.mxu0 0.0
  %2039 = vmatpush2.msra.mxu0 0.0
  %2040 = vmatprep.subr.mxu0 0.0
  %2041 = vmatpush2.msra.mxu0 0.0
  %2042 = vmatprep.subr.mxu0 0.0
  %2043 = vmatpush2.msra.mxu0 0.0
  %2044 = vmatprep.subr.mxu0 0.0
  %2045 = vmatpush2.msra.mxu0 0.0
  %2046 = vmatprep.subr.mxu0 0.0
  %2047 = vmatpush2.msra.mxu0 0.0
  %2048 = vmatprep.subr.mxu0 0.0
  %2049 = vmatpush2.msra.mxu0 0.0
  %2050 = vmatprep.subr.mxu0 0.0
  %2051 = vmatpush2.msra.mxu0 0.0
  %2052 = vmatprep.subr.mxu0 0.0
  %2053 = vmatpush2.msra.mxu0 0.0
  %2054 = vmatprep.subr.mxu0 0.0
  %2055 = vmatpush2.msra.mxu0 0.0
  %2056 = vmatprep.subr.mxu0 0.0
  %2057 = vmatpush2.msra.mxu0 0.0
  %2058 = vmatprep.subr.mxu0 0.0
  %2059 = vmatpush2.msra.mxu0 0.0
  %2060 = vmatprep.subr.mxu0 0.0
  %2061 = vmatpush2.msra.mxu0 0.0
  %2062 = vmatprep.mubr.f32.mxu0 0.0
  %2063 = vmatmul.mubr.f32.gmra.mxu0 %v1918
  %v2064 = vpop.f32.mrf.mxu0
  %v2065 = vadd.f32 %v1074, %v2064
  %v2066 = vpop.f32.mrf.mxu0
  %2067 = vdwg.mxu0
  %v2068 = vadd.f32 %v1924, %v1994
  %v2069 = vxor.u32 %v2068, 2147483648
  %v2070 = vmul.f32 %v2069, 1.442695
  %v2071 = vpow.pop %v2070
  %v2072 = vadd.f32 %v2071, 1.0
  %v2073 = vrcp.pop %v2072
  %v2074 = vmul.f32 1.0, %v2073
  %v2075 = vadd.f32 %v1925, %v1996
  %v2076 = vxor.u32 %v2075, 2147483648
  %v2077 = vmul.f32 %v2076, 1.442695
  %v2078 = vpow.pop %v2077
  %v2079 = vadd.f32 %v2078, 1.0
  %v2080 = vrcp.pop %v2079
  %v2081 = vmul.f32 1.0, %v2080
  %v2082 = vmul.f32 %v2074, %v2065
  %v2083 = vadd.f32 %v1926, %v2082
  %v2084 = vtanh.pop %v2083
  %v2085 = vsub.f32 1.0, %v2081
  %v2086 = vmul.f32 %v2085, %v2084
  %v2087 = vmul.f32 %v2081, %v1918
  %v2088 = vadd.f32 %v2086, %v2087
  %s2089 = scalar_lea.vmem %s16, 40
  %2090 = vst [vmem:[%s2089] sm:$0xff] %v2088
  %s2091 = smul.u32 6, 3
  %s2092 = smul.addr %s2091, 8
  %s2093 = scalar_lea.vmem [#allocation2], %s2092
  %v2094 = vld [vmem:[%s2093] sm:$0xff]
  %v2095 = vld [vmem:[%s2093 + $0x8] sm:$0xff]
  %v2096 = vld [vmem:[%s2093 + $0x10] sm:$0xff]
  %2097 = vmatprep.subr.mxu0 %v1053
  %2098 = vmatpush1.msra.mxu0 %v1052
  %2099 = vmatprep.subr.mxu0 %v1050
  %2100 = vmatpush1.msra.mxu0 %v1049
  %2101 = vmatprep.subr.mxu0 %v1047
  %2102 = vmatpush1.msra.mxu0 %v1046
  %2103 = vmatprep.subr.mxu0 %v1044
  %2104 = vmatpush1.msra.mxu0 %v1043
  %2105 = vmatprep.subr.mxu0 %v1041
  %2106 = vmatpush1.msra.mxu0 %v1040
  %2107 = vmatprep.subr.mxu0 %v1038
  %2108 = vmatpush1.msra.mxu0 %v1037
  %2109 = vmatprep.subr.mxu0 %v1035
  %2110 = vmatpush1.msra.mxu0 %v1034
  %2111 = vmatprep.subr.mxu0 %v1032
  %2112 = vmatpush1.msra.mxu0 %v1031
  %2113 = vmatprep.subr.mxu0 %v1029
  %2114 = vmatpush1.msra.mxu0 %v1028
  %2115 = vmatprep.subr.mxu0 %v1026
  %2116 = vmatpush1.msra.mxu0 %v1025
  %2117 = vmatprep.subr.mxu0 %v1023
  %2118 = vmatpush1.msra.mxu0 %v1022
  %2119 = vmatprep.subr.mxu0 %v1020
  %2120 = vmatpush1.msra.mxu0 %v1019
  %2121 = vmatprep.subr.mxu0 %v1017
  %2122 = vmatpush1.msra.mxu0 %v1016
  %2123 = vmatprep.subr.mxu0 %v1014
  %2124 = vmatpush1.msra.mxu0 %v1013
  %2125 = vmatprep.subr.mxu0 %v1011
  %2126 = vmatpush1.msra.mxu0 %v1010
  %2127 = vmatprep.subr.mxu0 %v1008
  %2128 = vmatpush1.msra.mxu0 %v1007
  %2129 = vmatprep.subr.mxu0 0.0
  %2130 = vmatpush2.msra.mxu0 0.0
  %2131 = vmatprep.subr.mxu0 0.0
  %2132 = vmatpush2.msra.mxu0 0.0
  %2133 = vmatprep.subr.mxu0 0.0
  %2134 = vmatpush2.msra.mxu0 0.0
  %2135 = vmatprep.subr.mxu0 0.0
  %2136 = vmatpush2.msra.mxu0 0.0
  %2137 = vmatprep.subr.mxu0 0.0
  %2138 = vmatpush2.msra.mxu0 0.0
  %2139 = vmatprep.subr.mxu0 0.0
  %2140 = vmatpush2.msra.mxu0 0.0
  %2141 = vmatprep.subr.mxu0 0.0
  %2142 = vmatpush2.msra.mxu0 0.0
  %2143 = vmatprep.subr.mxu0 0.0
  %2144 = vmatpush2.msra.mxu0 0.0
  %2145 = vmatprep.subr.mxu0 0.0
  %2146 = vmatpush2.msra.mxu0 0.0
  %2147 = vmatprep.subr.mxu0 0.0
  %2148 = vmatpush2.msra.mxu0 0.0
  %2149 = vmatprep.subr.mxu0 0.0
  %2150 = vmatpush2.msra.mxu0 0.0
  %2151 = vmatprep.subr.mxu0 0.0
  %2152 = vmatpush2.msra.mxu0 0.0
  %2153 = vmatprep.subr.mxu0 0.0
  %2154 = vmatpush2.msra.mxu0 0.0
  %2155 = vmatprep.subr.mxu0 0.0
  %2156 = vmatpush2.msra.mxu0 0.0
  %2157 = vmatprep.subr.mxu0 0.0
  %2158 = vmatpush2.msra.mxu0 0.0
  %2159 = vmatprep.subr.mxu0 0.0
  %2160 = vmatpush2.msra.mxu0 0.0
  %2161 = vmatprep.mubr.f32.mxu0 0.0
  %2162 = vmatmul.mubr.f32.gmra.mxu0 %v2088
  %v2163 = vpop.f32.mrf.mxu0
  %v2164 = vadd.f32 %v1066, %v2163
  %v2165 = vpop.f32.mrf.mxu0
  %v2166 = vadd.f32 %v1070, %v2165
  %2167 = vdwg.mxu0
  %2168 = vmatprep.subr.mxu0 0.0
  %2169 = vmatpush1.msra.mxu0 %v1054
  %2170 = vmatprep.subr.mxu0 0.0
  %2171 = vmatpush1.msra.mxu0 %v1051
  %2172 = vmatprep.subr.mxu0 0.0
  %2173 = vmatpush1.msra.mxu0 %v1048
  %2174 = vmatprep.subr.mxu0 0.0
  %2175 = vmatpush1.msra.mxu0 %v1045
  %2176 = vmatprep.subr.mxu0 0.0
  %2177 = vmatpush1.msra.mxu0 %v1042
  %2178 = vmatprep.subr.mxu0 0.0
  %2179 = vmatpush1.msra.mxu0 %v1039
  %2180 = vmatprep.subr.mxu0 0.0
  %2181 = vmatpush1.msra.mxu0 %v1036
  %2182 = vmatprep.subr.mxu0 0.0
  %2183 = vmatpush1.msra.mxu0 %v1033
  %2184 = vmatprep.subr.mxu0 0.0
  %2185 = vmatpush1.msra.mxu0 %v1030
  %2186 = vmatprep.subr.mxu0 0.0
  %2187 = vmatpush1.msra.mxu0 %v1027
  %2188 = vmatprep.subr.mxu0 0.0
  %2189 = vmatpush1.msra.mxu0 %v1024
  %2190 = vmatprep.subr.mxu0 0.0
  %2191 = vmatpush1.msra.mxu0 %v1021
  %2192 = vmatprep.subr.mxu0 0.0
  %2193 = vmatpush1.msra.mxu0 %v1018
  %2194 = vmatprep.subr.mxu0 0.0
  %2195 = vmatpush1.msra.mxu0 %v1015
  %2196 = vmatprep.subr.mxu0 0.0
  %2197 = vmatpush1.msra.mxu0 %v1012
  %2198 = vmatprep.subr.mxu0 0.0
  %2199 = vmatpush1.msra.mxu0 %v1009
  %2200 = vmatprep.subr.mxu0 0.0
  %2201 = vmatpush2.msra.mxu0 0.0
  %2202 = vmatprep.subr.mxu0 0.0
  %2203 = vmatpush2.msra.mxu0 0.0
  %2204 = vmatprep.subr.mxu0 0.0
  %2205 = vmatpush2.msra.mxu0 0.0
  %2206 = vmatprep.subr.mxu0 0.0
  %2207 = vmatpush2.msra.mxu0 0.0
  %2208 = vmatprep.subr.mxu0 0.0
  %2209 = vmatpush2.msra.mxu0 0.0
  %2210 = vmatprep.subr.mxu0 0.0
  %2211 = vmatpush2.msra.mxu0 0.0
  %2212 = vmatprep.subr.mxu0 0.0
  %2213 = vmatpush2.msra.mxu0 0.0
  %2214 = vmatprep.subr.mxu0 0.0
  %2215 = vmatpush2.msra.mxu0 0.0
  %2216 = vmatprep.subr.mxu0 0.0
  %2217 = vmatpush2.msra.mxu0 0.0
  %2218 = vmatprep.subr.mxu0 0.0
  %2219 = vmatpush2.msra.mxu0 0.0
  %2220 = vmatprep.subr.mxu0 0.0
  %2221 = vmatpush2.msra.mxu0 0.0
  %2222 = vmatprep.subr.mxu0 0.0
  %2223 = vmatpush2.msra.mxu0 0.0
  %2224 = vmatprep.subr.mxu0 0.0
  %2225 = vmatpush2.msra.mxu0 0.0
  %2226 = vmatprep.subr.mxu0 0.0
  %2227 = vmatpush2.msra.mxu0 0.0
  %2228 = vmatprep.subr.mxu0 0.0
  %2229 = vmatpush2.msra.mxu0 0.0
  %2230 = vmatprep.subr.mxu0 0.0
  %2231 = vmatpush2.msra.mxu0 0.0
  %2232 = vmatprep.mubr.f32.mxu0 0.0
  %2233 = vmatmul.mubr.f32.gmra.mxu0 %v2088
  %v2234 = vpop.f32.mrf.mxu0
  %v2235 = vadd.f32 %v1074, %v2234
  %v2236 = vpop.f32.mrf.mxu0
  %2237 = vdwg.mxu0
  %v2238 = vadd.f32 %v2094, %v2164
  %v2239 = vxor.u32 %v2238, 2147483648
  %v2240 = vmul.f32 %v2239, 1.442695
  %v2241 = vpow.pop %v2240
  %v2242 = vadd.f32 %v2241, 1.0
  %v2243 = vrcp.pop %v2242
  %v2244 = vmul.f32 1.0, %v2243
  %v2245 = vadd.f32 %v2095, %v2166
  %v2246 = vxor.u32 %v2245, 2147483648
  %v2247 = vmul.f32 %v2246, 1.442695
  %v2248 = vpow.pop %v2247
  %v2249 = vadd.f32 %v2248, 1.0
  %v2250 = vrcp.pop %v2249
  %v2251 = vmul.f32 1.0, %v2250
  %v2252 = vmul.f32 %v2244, %v2235
  %v2253 = vadd.f32 %v2096, %v2252
  %v2254 = vtanh.pop %v2253
  %v2255 = vsub.f32 1.0, %v2251
  %v2256 = vmul.f32 %v2255, %v2254
  %v2257 = vmul.f32 %v2251, %v2088
  %v2258 = vadd.f32 %v2256, %v2257
  %s2259 = scalar_lea.vmem %s16, 48
  %2260 = vst [vmem:[%s2259] sm:$0xff] %v2258
  %s2261 = smul.u32 7, 3
  %s2262 = smul.addr %s2261, 8
  %s2263 = scalar_lea.vmem [#allocation2], %s2262
  %v2264 = vld [vmem:[%s2263] sm:$0xff]
  %v2265 = vld [vmem:[%s2263 + $0x8] sm:$0xff]
  %v2266 = vld [vmem:[%s2263 + $0x10] sm:$0xff]
  %2267 = vmatprep.subr.mxu0 %v1053
  %2268 = vmatpush1.msra.mxu0 %v1052
  %2269 = vmatprep.subr.mxu0 %v1050
  %2270 = vmatpush1.msra.mxu0 %v1049
  %2271 = vmatprep.subr.mxu0 %v1047
  %2272 = vmatpush1.msra.mxu0 %v1046
  %2273 = vmatprep.subr.mxu0 %v1044
  %2274 = vmatpush1.msra.mxu0 %v1043
  %2275 = vmatprep.subr.mxu0 %v1041
  %2276 = vmatpush1.msra.mxu0 %v1040
  %2277 = vmatprep.subr.mxu0 %v1038
  %2278 = vmatpush1.msra.mxu0 %v1037
  %2279 = vmatprep.subr.mxu0 %v1035
  %2280 = vmatpush1.msra.mxu0 %v1034
  %2281 = vmatprep.subr.mxu0 %v1032
  %2282 = vmatpush1.msra.mxu0 %v1031
  %2283 = vmatprep.subr.mxu0 %v1029
  %2284 = vmatpush1.msra.mxu0 %v1028
  %2285 = vmatprep.subr.mxu0 %v1026
  %2286 = vmatpush1.msra.mxu0 %v1025
  %2287 = vmatprep.subr.mxu0 %v1023
  %2288 = vmatpush1.msra.mxu0 %v1022
  %2289 = vmatprep.subr.mxu0 %v1020
  %2290 = vmatpush1.msra.mxu0 %v1019
  %2291 = vmatprep.subr.mxu0 %v1017
  %2292 = vmatpush1.msra.mxu0 %v1016
  %2293 = vmatprep.subr.mxu0 %v1014
  %2294 = vmatpush1.msra.mxu0 %v1013
  %2295 = vmatprep.subr.mxu0 %v1011
  %2296 = vmatpush1.msra.mxu0 %v1010
  %2297 = vmatprep.subr.mxu0 %v1008
  %2298 = vmatpush1.msra.mxu0 %v1007
  %2299 = vmatprep.subr.mxu0 0.0
  %2300 = vmatpush2.msra.mxu0 0.0
  %2301 = vmatprep.subr.mxu0 0.0
  %2302 = vmatpush2.msra.mxu0 0.0
  %2303 = vmatprep.subr.mxu0 0.0
  %2304 = vmatpush2.msra.mxu0 0.0
  %2305 = vmatprep.subr.mxu0 0.0
  %2306 = vmatpush2.msra.mxu0 0.0
  %2307 = vmatprep.subr.mxu0 0.0
  %2308 = vmatpush2.msra.mxu0 0.0
  %2309 = vmatprep.subr.mxu0 0.0
  %2310 = vmatpush2.msra.mxu0 0.0
  %2311 = vmatprep.subr.mxu0 0.0
  %2312 = vmatpush2.msra.mxu0 0.0
  %2313 = vmatprep.subr.mxu0 0.0
  %2314 = vmatpush2.msra.mxu0 0.0
  %2315 = vmatprep.subr.mxu0 0.0
  %2316 = vmatpush2.msra.mxu0 0.0
  %2317 = vmatprep.subr.mxu0 0.0
  %2318 = vmatpush2.msra.mxu0 0.0
  %2319 = vmatprep.subr.mxu0 0.0
  %2320 = vmatpush2.msra.mxu0 0.0
  %2321 = vmatprep.subr.mxu0 0.0
  %2322 = vmatpush2.msra.mxu0 0.0
  %2323 = vmatprep.subr.mxu0 0.0
  %2324 = vmatpush2.msra.mxu0 0.0
  %2325 = vmatprep.subr.mxu0 0.0
  %2326 = vmatpush2.msra.mxu0 0.0
  %2327 = vmatprep.subr.mxu0 0.0
  %2328 = vmatpush2.msra.mxu0 0.0
  %2329 = vmatprep.subr.mxu0 0.0
  %2330 = vmatpush2.msra.mxu0 0.0
  %2331 = vmatprep.mubr.f32.mxu0 0.0
  %2332 = vmatmul.mubr.f32.gmra.mxu0 %v2258
  %v2333 = vpop.f32.mrf.mxu0
  %v2334 = vadd.f32 %v1066, %v2333
  %v2335 = vpop.f32.mrf.mxu0
  %v2336 = vadd.f32 %v1070, %v2335
  %2337 = vdwg.mxu0
  %2338 = vmatprep.subr.mxu0 0.0
  %2339 = vmatpush1.msra.mxu0 %v1054
  %2340 = vmatprep.subr.mxu0 0.0
  %2341 = vmatpush1.msra.mxu0 %v1051
  %2342 = vmatprep.subr.mxu0 0.0
  %2343 = vmatpush1.msra.mxu0 %v1048
  %2344 = vmatprep.subr.mxu0 0.0
  %2345 = vmatpush1.msra.mxu0 %v1045
  %2346 = vmatprep.subr.mxu0 0.0
  %2347 = vmatpush1.msra.mxu0 %v1042
  %2348 = vmatprep.subr.mxu0 0.0
  %2349 = vmatpush1.msra.mxu0 %v1039
  %2350 = vmatprep.subr.mxu0 0.0
  %2351 = vmatpush1.msra.mxu0 %v1036
  %2352 = vmatprep.subr.mxu0 0.0
  %2353 = vmatpush1.msra.mxu0 %v1033
  %2354 = vmatprep.subr.mxu0 0.0
  %2355 = vmatpush1.msra.mxu0 %v1030
  %2356 = vmatprep.subr.mxu0 0.0
  %2357 = vmatpush1.msra.mxu0 %v1027
  %2358 = vmatprep.subr.mxu0 0.0
  %2359 = vmatpush1.msra.mxu0 %v1024
  %2360 = vmatprep.subr.mxu0 0.0
  %2361 = vmatpush1.msra.mxu0 %v1021
  %2362 = vmatprep.subr.mxu0 0.0
  %2363 = vmatpush1.msra.mxu0 %v1018
  %2364 = vmatprep.subr.mxu0 0.0
  %2365 = vmatpush1.msra.mxu0 %v1015
  %2366 = vmatprep.subr.mxu0 0.0
  %2367 = vmatpush1.msra.mxu0 %v1012
  %2368 = vmatprep.subr.mxu0 0.0
  %2369 = vmatpush1.msra.mxu0 %v1009
  %2370 = vmatprep.subr.mxu0 0.0
  %2371 = vmatpush2.msra.mxu0 0.0
  %2372 = vmatprep.subr.mxu0 0.0
  %2373 = vmatpush2.msra.mxu0 0.0
  %2374 = vmatprep.subr.mxu0 0.0
  %2375 = vmatpush2.msra.mxu0 0.0
  %2376 = vmatprep.subr.mxu0 0.0
  %2377 = vmatpush2.msra.mxu0 0.0
  %2378 = vmatprep.subr.mxu0 0.0
  %2379 = vmatpush2.msra.mxu0 0.0
  %2380 = vmatprep.subr.mxu0 0.0
  %2381 = vmatpush2.msra.mxu0 0.0
  %2382 = vmatprep.subr.mxu0 0.0
  %2383 = vmatpush2.msra.mxu0 0.0
  %2384 = vmatprep.subr.mxu0 0.0
  %2385 = vmatpush2.msra.mxu0 0.0
  %2386 = vmatprep.subr.mxu0 0.0
  %2387 = vmatpush2.msra.mxu0 0.0
  %2388 = vmatprep.subr.mxu0 0.0
  %2389 = vmatpush2.msra.mxu0 0.0
  %2390 = vmatprep.subr.mxu0 0.0
  %2391 = vmatpush2.msra.mxu0 0.0
  %2392 = vmatprep.subr.mxu0 0.0
  %2393 = vmatpush2.msra.mxu0 0.0
  %2394 = vmatprep.subr.mxu0 0.0
  %2395 = vmatpush2.msra.mxu0 0.0
  %2396 = vmatprep.subr.mxu0 0.0
  %2397 = vmatpush2.msra.mxu0 0.0
  %2398 = vmatprep.subr.mxu0 0.0
  %2399 = vmatpush2.msra.mxu0 0.0
  %2400 = vmatprep.subr.mxu0 0.0
  %2401 = vmatpush2.msra.mxu0 0.0
  %2402 = vmatprep.mubr.f32.mxu0 0.0
  %2403 = vmatmul.mubr.f32.gmra.mxu0 %v2258
  %v2404 = vpop.f32.mrf.mxu0
  %v2405 = vadd.f32 %v1074, %v2404
  %v2406 = vpop.f32.mrf.mxu0
  %2407 = vdwg.mxu0
  %v2408 = vadd.f32 %v2264, %v2334
  %v2409 = vxor.u32 %v2408, 2147483648
  %v2410 = vmul.f32 %v2409, 1.442695
  %v2411 = vpow.pop %v2410
  %v2412 = vadd.f32 %v2411, 1.0
  %v2413 = vrcp.pop %v2412
  %v2414 = vmul.f32 1.0, %v2413
  %v2415 = vadd.f32 %v2265, %v2336
  %v2416 = vxor.u32 %v2415, 2147483648
  %v2417 = vmul.f32 %v2416, 1.442695
  %v2418 = vpow.pop %v2417
  %v2419 = vadd.f32 %v2418, 1.0
  %v2420 = vrcp.pop %v2419
  %v2421 = vmul.f32 1.0, %v2420
  %v2422 = vmul.f32 %v2414, %v2405
  %v2423 = vadd.f32 %v2266, %v2422
  %v2424 = vtanh.pop %v2423
  %v2425 = vsub.f32 1.0, %v2421
  %v2426 = vmul.f32 %v2425, %v2424
  %v2427 = vmul.f32 %v2421, %v2258
  %v2428 = vadd.f32 %v2426, %v2427
  %s2429 = scalar_lea.vmem %s16, 56
  %2430 = vst [vmem:[%s2429] sm:$0xff] %v2428
  // Predicated region
  $region62: #{nrt_forward.3} parent=0 // pred_check
    _
  $region63: #{nrt_forward.3} parent=0 // pred_check_branch
    %2432 = sbr.rel (0) target = $region65
  $region64: #{nrt_forward.3} parent=0 // pred_region
    _
  $region65: #{nrt_forward.3} parent=0 // pred_fallthru
    _
  // Predicated region
  $region66: #{nrt_forward.3} parent=0 // pred_check
    _
  $region67: #{nrt_forward.3} parent=0 // pred_check_branch
    %2434 = sbr.rel (0) target = $region69
  $region68: #{nrt_forward.3} parent=0 // pred_region
    _
  $region69: #{nrt_forward.3} parent=0 // pred_fallthru
    _
  // Predicated region
  $region70: #{nrt_forward.3} parent=0 // pred_check
    _
  $region71: #{nrt_forward.3} parent=0 // pred_check_branch
    %2436 = sbr.rel (0) target = $region73
  $region72: #{nrt_forward.3} parent=0 // pred_region
    _
  $region73: #{nrt_forward.3} parent=0 // pred_fallthru
    _
  // Predicated region
  $region74: #{nrt_forward.3} parent=0 // pred_check
    _
  $region75: #{nrt_forward.3} parent=0 // pred_check_branch
    %2438 = sbr.rel (0) target = $region77
  $region76: #{nrt_forward.3} parent=0 // pred_region
    _
  $region77: #{nrt_forward.3} parent=0 // pred_fallthru
    _

</llo_original>
